<compile_context>
chip_gen: v7x
topology: tpu7x:2x2x1
jax: 0.10.0
libtpu: 0.0.40
codegen_flags: <defaults>
</compile_context>

<pallas_src>
import functools

import numpy as np
import jax
import jax.numpy as jnp
from jax.experimental import pallas as pl
from jax.experimental.pallas import tpu as pltpu

OMEGA0 = 30.0   # SIREN first-layer frequency scale
LANE = 128      # TPU lane width; feature dims are zero-padded to this

_VMEM = pl.BlockSpec(memory_space=pltpu.MemorySpace.VMEM)
_SMEM = pl.BlockSpec(memory_space=pltpu.MemorySpace.SMEM)


# ----------------------------------------------------------------------------
# Shared SIREN feature computation (traced inside the kernel, MXU matmuls)
# ----------------------------------------------------------------------------
def _siren_repr(x, w0, b0, w1, b1, w2, b2):
    h = jnp.dot(x, w0, preferred_element_type=jnp.float32) + b0
    h = jnp.sin(OMEGA0 * h)
    h = jnp.dot(h, w1, preferred_element_type=jnp.float32) + b1
    h = jnp.sin(h)
    return jnp.dot(h, w2, preferred_element_type=jnp.float32) + b2


# ----------------------------------------------------------------------------
# Kernel 1 (fused): SIREN MLP over [x_context; x_target] -> mask -> cov / xty
#                   and the target representation (single weight load, one MLP pass)
#   cov  = R_masked^T R_masked + exp(log_noise_var) * I
#   xty  = R_masked^T Y_masked
#   trep = target representation (rows n_context:)
# ----------------------------------------------------------------------------
def _fused_repr_kernel(noise_ref, x_ref, w0_ref, b0_ref, w1_ref, b1_ref,
                       w2_ref, b2_ref, y_ref, mask_ref,
                       cov_ref, xty_ref, trep_ref, *, n_context):
    r_all = _siren_repr(x_ref[...], w0_ref[...], b0_ref[...], w1_ref[...],
                        b1_ref[...], w2_ref[...], b2_ref[...])       # [Nc+Nt, Rp]
    trep_ref[...] = r_all[n_context:]                                # [Nt, Rp]

    r = r_all[:n_context]                                            # [Nc, Rp]
    valid = mask_ref[...] != 0                                       # [Nc, 1] -> lanes
    r = jnp.where(valid, r, 0.0)
    y = jnp.where(valid, y_ref[...], 0.0)

    cov = jax.lax.dot_general(r, r, (((0,), (0,)), ((), ())),
                              preferred_element_type=jnp.float32)    # [Rp, Rp]
    d = cov_ref.shape[0]
    rows = jax.lax.broadcasted_iota(jnp.int32, (d, d), 0)
    cols = jax.lax.broadcasted_iota(jnp.int32, (d, d), 1)
    eye = (rows == cols).astype(jnp.float32)
    cov_ref[...] = cov + eye * noise_ref[0]                          # noise_ref: SMEM scalar
    xty_ref[...] = jax.lax.dot_general(r, y, (((0,), (0,)), ((), ())),
                                       preferred_element_type=jnp.float32)


# ----------------------------------------------------------------------------
# Kernel 2: y_pred = target_repr @ w  (lane-dense [Nt, Yp] store)
# ----------------------------------------------------------------------------
def _predict_kernel(t_ref, w_ref, o_ref):
    o_ref[...] = jnp.dot(t_ref[...], w_ref[...], preferred_element_type=jnp.float32)


# ----------------------------------------------------------------------------
# Padding helpers (exact zero-padding of feature dims to 128 lanes)
# ----------------------------------------------------------------------------
def _round_up(n, m):
    return ((n + m - 1) // m) * m


def _pad_to(a, shape):
    a = a.astype(jnp.float32)
    if tuple(a.shape) == tuple(shape):
        return a
    out = jnp.zeros(shape, jnp.float32)
    return out.at[tuple(slice(0, s) for s in a.shape)].set(a)


# ----------------------------------------------------------------------------
# Full DeepTime forward
# ----------------------------------------------------------------------------
def deeptime_forward(params, x_context, y_context, valid_idx, x_target):
    (w0, b0, w1, b1, w2, b2), log_noise_var = params
    n_context = x_context.shape[0]
    n_target = x_target.shape[0]
    x_dim = x_context.shape[1]
    y_dim = y_context.shape[1]
    h1, h2, r_dim = w0.shape[1], w1.shape[1], w2.shape[1]

    h1p = _round_up(h1, LANE)
    h2p = _round_up(h2, LANE)
    rp = _round_up(r_dim, LANE)
    yp = _round_up(y_dim, LANE)

    padded_params = (
        _pad_to(w0, (x_dim, h1p)), _pad_to(b0, (1, h1p)),
        _pad_to(w1, (h1p, h2p)),   _pad_to(b1, (1, h2p)),
        _pad_to(w2, (h2p, rp)),    _pad_to(b2, (1, rp)),
    )
    y_pad = _pad_to(y_context, (n_context, yp))
    mask_i32 = valid_idx.reshape(n_context, 1).astype(jnp.int32)
    noise_var_1 = jnp.exp(log_noise_var).astype(jnp.float32).reshape((1,))
    x_all = jnp.concatenate(
        [x_context.astype(jnp.float32), x_target.astype(jnp.float32)], axis=0)

    # fused: one SIREN MLP pass -> masked Gram / cross-covariance + target repr
    cov, xty, t_repr = pl.pallas_call(
        functools.partial(_fused_repr_kernel, n_context=n_context),
        out_shape=(jax.ShapeDtypeStruct((rp, rp), jnp.float32),
                   jax.ShapeDtypeStruct((rp, yp), jnp.float32),
                   jax.ShapeDtypeStruct((n_target, rp), jnp.float32)),
        in_specs=[_SMEM] + [_VMEM] * 9,
        out_specs=(_VMEM, _VMEM, _VMEM),
    )(noise_var_1, x_all, *padded_params, y_pad, mask_i32)

    # TODO(synk): Cholesky + triangular solve stay in plain JAX (small dense system).
    # Padded block of cov is exactly noise*I with zero RHS => slicing is exact.
    cov_s = cov[:r_dim, :r_dim]
    xty_s = xty[:r_dim, :y_dim]
    chol = jnp.linalg.cholesky(cov_s)
    w_s = jax.scipy.linalg.cho_solve((chol, True), xty_s)            # [r_dim, y_dim]
    w_pad = jnp.zeros((rp, yp), jnp.float32).at[:r_dim, :y_dim].set(w_s)

    # prediction with lane-dense MXU tiles / stores
    y_pred_pad = pl.pallas_call(
        _predict_kernel,
        out_shape=jax.ShapeDtypeStruct((n_target, yp), jnp.float32),
        in_specs=[_VMEM, _VMEM],
        out_specs=_VMEM,
    )(t_repr, w_pad)
    return y_pred_pad[:, :y_dim]


# ----------------------------------------------------------------------------
# Deterministic parameter init (SIREN-style, unpadded model definition)
# ----------------------------------------------------------------------------
def init_params(key, x_dim, hidden_dims, repr_dim):
    h1, h2 = hidden_dims
    k = jax.random.split(key, 6)
    u = lambda kk, shape, bound: jax.random.uniform(
        kk, shape, jnp.float32, minval=-bound, maxval=bound)
    w0 = u(k[0], (x_dim, h1), 1.0 / x_dim)
    b0 = u(k[1], (1, h1), 1.0 / np.sqrt(x_dim))
    w1 = u(k[2], (h1, h2), np.sqrt(6.0 / h1) / OMEGA0)
    b1 = u(k[3], (1, h2), 1.0 / np.sqrt(h1))
    w2 = u(k[4], (h2, repr_dim), np.sqrt(6.0 / h2) / OMEGA0)
    b2 = u(k[5], (1, repr_dim), 1.0 / np.sqrt(h2))
    log_noise_var = jnp.asarray(np.log(0.01), dtype=jnp.float32)
    return (w0, b0, w1, b1, w2, b2), log_noise_var


if __name__ == "__main__":
    # small shapes consistent with the module's forward
    x_dim, y_dim = 4, 2
    hidden_dims = (32, 32)
    repr_dim = 32
    n_context, n_target = 64, 32

    key = jax.random.PRNGKey(0)
    kp, kc, ky, kt = jax.random.split(key, 4)

    params = init_params(kp, x_dim, hidden_dims, repr_dim)
    x_context = jax.random.normal(kc, (n_context, x_dim), jnp.float32)
    y_context = jax.random.normal(ky, (n_context, y_dim), jnp.float32)
    x_target = jax.random.normal(kt, (n_target, x_dim), jnp.float32)
    valid_idx = (jnp.arange(n_context) % 7 != 0).reshape(n_context, 1)   # bool [Nc, 1]

    y_pred = jax.jit(deeptime_forward)(params, x_context, y_context, valid_idx, x_target)
    y_pred = jax.block_until_ready(y_pred)

    assert y_pred.shape == (n_target, y_dim)
    assert bool(jnp.all(jnp.isfinite(y_pred)))
    print("KERNEL_OK")
</pallas_src>

<mosaic_0001>
module attributes {stable_mosaic.version = 11 : i64} {
  func.func @_fused_repr_kernel(%arg0: memref<1xf32, #tpu.memory_space<smem>>, %arg1: memref<96x4xf32, #tpu.memory_space<vmem>>, %arg2: memref<4x128xf32, #tpu.memory_space<vmem>>, %arg3: memref<1x128xf32, #tpu.memory_space<vmem>>, %arg4: memref<128x128xf32, #tpu.memory_space<vmem>>, %arg5: memref<1x128xf32, #tpu.memory_space<vmem>>, %arg6: memref<128x128xf32, #tpu.memory_space<vmem>>, %arg7: memref<1x128xf32, #tpu.memory_space<vmem>>, %arg8: memref<64x128xf32, #tpu.memory_space<vmem>>, %arg9: memref<64x1xi32, #tpu.memory_space<vmem>>, %arg10: memref<128x128xf32, #tpu.memory_space<vmem>>, %arg11: memref<128x128xf32, #tpu.memory_space<vmem>>, %arg12: memref<32x128xf32, #tpu.memory_space<vmem>>) attributes {dimension_semantics = [], scalar_prefetch = 0 : i64, scratch_operands = 0 : i64, tpu.core_type = #tpu.core_type<tc>} {
    %c0 = arith.constant 0 : index
    %c0_0 = arith.constant 0 : index
    %0 = vector.load %arg1[%c0, %c0_0] : memref<96x4xf32, #tpu.memory_space<vmem>>, vector<96x4xf32>
    %c0_1 = arith.constant 0 : index
    %c0_2 = arith.constant 0 : index
    %1 = vector.load %arg2[%c0_1, %c0_2] : memref<4x128xf32, #tpu.memory_space<vmem>>, vector<4x128xf32>
    %c0_3 = arith.constant 0 : index
    %c0_4 = arith.constant 0 : index
    %2 = vector.load %arg3[%c0_3, %c0_4] : memref<1x128xf32, #tpu.memory_space<vmem>>, vector<1x128xf32>
    %c0_5 = arith.constant 0 : index
    %c0_6 = arith.constant 0 : index
    %3 = vector.load %arg4[%c0_5, %c0_6] : memref<128x128xf32, #tpu.memory_space<vmem>>, vector<128x128xf32>
    %c0_7 = arith.constant 0 : index
    %c0_8 = arith.constant 0 : index
    %4 = vector.load %arg5[%c0_7, %c0_8] : memref<1x128xf32, #tpu.memory_space<vmem>>, vector<1x128xf32>
    %c0_9 = arith.constant 0 : index
    %c0_10 = arith.constant 0 : index
    %5 = vector.load %arg6[%c0_9, %c0_10] : memref<128x128xf32, #tpu.memory_space<vmem>>, vector<128x128xf32>
    %c0_11 = arith.constant 0 : index
    %c0_12 = arith.constant 0 : index
    %6 = vector.load %arg7[%c0_11, %c0_12] : memref<1x128xf32, #tpu.memory_space<vmem>>, vector<1x128xf32>
    %cst = arith.constant dense<0.000000e+00> : vector<96x128xf32>
    %7 = tpu.matmul %0, %1, %cst {dimension_numbers = #tpu.dot_dimension_numbers<[1], [0], [0], [1], [0, 0, 1, 1], [], []>} : vector<96x4xf32>, vector<4x128xf32>, vector<96x128xf32> -> vector<96x128xf32>
    %8 = vector.broadcast %2 : vector<1x128xf32> to vector<96x128xf32>
    %9 = arith.addf %7, %8 : vector<96x128xf32>
    %cst_13 = arith.constant 3.000000e+01 : f32
    %10 = vector.broadcast %cst_13 : f32 to vector<96x128xf32>
    %11 = arith.mulf %10, %9 : vector<96x128xf32>
    %12 = math.sin %11 : vector<96x128xf32>
    %cst_14 = arith.constant dense<0.000000e+00> : vector<96x128xf32>
    %13 = tpu.matmul %12, %3, %cst_14 {dimension_numbers = #tpu.dot_dimension_numbers<[1], [0], [0], [1], [0, 0, 1, 1], [], []>} : vector<96x128xf32>, vector<128x128xf32>, vector<96x128xf32> -> vector<96x128xf32>
    %14 = vector.broadcast %4 : vector<1x128xf32> to vector<96x128xf32>
    %15 = arith.addf %13, %14 : vector<96x128xf32>
    %16 = math.sin %15 : vector<96x128xf32>
    %cst_15 = arith.constant dense<0.000000e+00> : vector<96x128xf32>
    %17 = tpu.matmul %16, %5, %cst_15 {dimension_numbers = #tpu.dot_dimension_numbers<[1], [0], [0], [1], [0, 0, 1, 1], [], []>} : vector<96x128xf32>, vector<128x128xf32>, vector<96x128xf32> -> vector<96x128xf32>
    %18 = vector.broadcast %6 : vector<1x128xf32> to vector<96x128xf32>
    %19 = arith.addf %17, %18 : vector<96x128xf32>
    %20 = vector.extract_strided_slice %19 {offsets = [64, 0], sizes = [32, 128], strides = [1, 1]} : vector<96x128xf32> to vector<32x128xf32>
    %c0_16 = arith.constant 0 : index
    %c0_17 = arith.constant 0 : index
    %21 = vector.load %arg12[%c0_16, %c0_17] : memref<32x128xf32, #tpu.memory_space<vmem>>, vector<32x128xf32>
    tpu.vector_store %arg12[%c0_16, %c0_17], %20 {strides = array<i32>} : memref<32x128xf32, #tpu.memory_space<vmem>>, vector<32x128xf32>,
    %22 = vector.extract_strided_slice %19 {offsets = [0, 0], sizes = [64, 128], strides = [1, 1]} : vector<96x128xf32> to vector<64x128xf32>
    %c0_18 = arith.constant 0 : index
    %c0_19 = arith.constant 0 : index
    %23 = vector.load %arg9[%c0_18, %c0_19] : memref<64x1xi32, #tpu.memory_space<vmem>>, vector<64x1xi32>
    %c0_i32 = arith.constant 0 : i32
    %24 = vector.broadcast %c0_i32 : i32 to vector<64x1xi32>
    %25 = arith.cmpi ne, %23, %24 : vector<64x1xi32>
    %cst_20 = arith.constant 0.000000e+00 : f32
    %26 = vector.shape_cast %25 : vector<64x1xi1> to vector<64x1xi1>
    %27 = vector.broadcast %26 : vector<64x1xi1> to vector<64x128xi1>
    %28 = vector.broadcast %cst_20 : f32 to vector<64x128xf32>
    %29 = arith.select %27, %22, %28 : vector<64x128xi1>, vector<64x128xf32>
    %c0_21 = arith.constant 0 : index
    %c0_22 = arith.constant 0 : index
    %30 = vector.load %arg8[%c0_21, %c0_22] : memref<64x128xf32, #tpu.memory_space<vmem>>, vector<64x128xf32>
    %cst_23 = arith.constant 0.000000e+00 : f32
    %31 = vector.shape_cast %25 : vector<64x1xi1> to vector<64x1xi1>
    %32 = vector.broadcast %31 : vector<64x1xi1> to vector<64x128xi1>
    %33 = vector.broadcast %cst_23 : f32 to vector<64x128xf32>
    %34 = arith.select %32, %30, %33 : vector<64x128xi1>, vector<64x128xf32>
    %cst_24 = arith.constant dense<0.000000e+00> : vector<128x128xf32>
    %35 = tpu.matmul %29, %29, %cst_24 {dimension_numbers = #tpu.dot_dimension_numbers<[0], [0], [1], [1], [0, 1, 1, 1], [], []>} : vector<64x128xf32>, vector<64x128xf32>, vector<128x128xf32> -> vector<128x128xf32>
    %36 = tpu.iota {dimensions = array<i32: 0>} : vector<128x128xi32>
    %37 = tpu.iota {dimensions = array<i32: 1>} : vector<128x128xi32>
    %38 = arith.cmpi eq, %36, %37 : vector<128x128xi32>
    %39 = arith.extui %38 : vector<128x128xi1> to vector<128x128xi32>
    %40 = arith.sitofp %39 : vector<128x128xi32> to vector<128x128xf32>
    %c0_25 = arith.constant 0 : index
    %41 = memref.load %arg0[%c0_25] : memref<1xf32, #tpu.memory_space<smem>>
    %42 = vector.broadcast %41 : f32 to vector<128x128xf32>
    %43 = arith.mulf %40, %42 : vector<128x128xf32>
    %44 = arith.addf %35, %43 : vector<128x128xf32>
    %c0_26 = arith.constant 0 : index
    %c0_27 = arith.constant 0 : index
    %45 = vector.load %arg10[%c0_26, %c0_27] : memref<128x128xf32, #tpu.memory_space<vmem>>, vector<128x128xf32>
    tpu.vector_store %arg10[%c0_26, %c0_27], %44 {strides = array<i32>} : memref<128x128xf32, #tpu.memory_space<vmem>>, vector<128x128xf32>,
    %cst_28 = arith.constant dense<0.000000e+00> : vector<128x128xf32>
    %46 = tpu.matmul %29, %34, %cst_28 {dimension_numbers = #tpu.dot_dimension_numbers<[0], [0], [1], [1], [0, 1, 1, 1], [], []>} : vector<64x128xf32>, vector<64x128xf32>, vector<128x128xf32> -> vector<128x128xf32>
    %c0_29 = arith.constant 0 : index
    %c0_30 = arith.constant 0 : index
    %47 = vector.load %arg11[%c0_29, %c0_30] : memref<128x128xf32, #tpu.memory_space<vmem>>, vector<128x128xf32>
    tpu.vector_store %arg11[%c0_29, %c0_30], %46 {strides = array<i32>} : memref<128x128xf32, #tpu.memory_space<vmem>>, vector<128x128xf32>,
    return
  }
}

module attributes {stable_mosaic.version = 11 : i64} {
  func.func @_predict_kernel(%arg0: memref<32x128xf32, #tpu.memory_space<vmem>>, %arg1: memref<128x128xf32, #tpu.memory_space<vmem>>, %arg2: memref<32x128xf32, #tpu.memory_space<vmem>>) attributes {dimension_semantics = [], scalar_prefetch = 0 : i64, scratch_operands = 0 : i64, tpu.core_type = #tpu.core_type<tc>} {
    %c0 = arith.constant 0 : index
    %c0_0 = arith.constant 0 : index
    %0 = vector.load %arg0[%c0, %c0_0] : memref<32x128xf32, #tpu.memory_space<vmem>>, vector<32x128xf32>
    %c0_1 = arith.constant 0 : index
    %c0_2 = arith.constant 0 : index
    %1 = vector.load %arg1[%c0_1, %c0_2] : memref<128x128xf32, #tpu.memory_space<vmem>>, vector<128x128xf32>
    %cst = arith.constant dense<0.000000e+00> : vector<32x128xf32>
    %2 = tpu.matmul %0, %1, %cst {dimension_numbers = #tpu.dot_dimension_numbers<[1], [0], [0], [1], [0, 0, 1, 1], [], []>} : vector<32x128xf32>, vector<128x128xf32>, vector<32x128xf32> -> vector<32x128xf32>
    %c0_3 = arith.constant 0 : index
    %c0_4 = arith.constant 0 : index
    %3 = vector.load %arg2[%c0_3, %c0_4] : memref<32x128xf32, #tpu.memory_space<vmem>>, vector<32x128xf32>
    tpu.vector_store %arg2[%c0_3, %c0_4], %2 {strides = array<i32>} : memref<32x128xf32, #tpu.memory_space<vmem>>, vector<32x128xf32>,
    return
  }
}

</mosaic_0001>

<llo_original>
// kernel: custom-call.6
$region0: #{custom-call.6}
  %s0 = inlined_call_operand.vmem [shape: f32[32,32], index: 0, kind: input, shape index: {}]
  %s1 = inlined_call_operand.vmem [shape: f32[32,32], index: 1, kind: output, shape index: {}]
  $region1: #{custom-call.6} parent=0
    #allocation0 [shape = 'u8[16384]{0}', space=vmem, size = 0x4000, scoped, tag = 'operand span for operand 0']
    #allocation1 [shape = 'u8[16384]{0}', space=vmem, size = 0x4000, scoped, tag = 'operand span for operand 1']
    // Predicated region
    $region2: #{custom-call.6} parent=1 // pred_check
      _
    $region3: #{custom-call.6} parent=1 // pred_check_branch
      %3 = sbr.rel (0) target = $region5
    $region4: #{custom-call.6} parent=1 // pred_region
      // Predicated region
      $region6: #{custom-call.6} parent=4 // pred_check
        _
      $region7: #{custom-call.6} parent=4 // pred_check_branch
        %5 = sbr.rel (0) target = $region9
      $region8: #{custom-call.6} parent=4 // pred_region
        // Predicated region
        $region21: #{custom-call.6} parent=8 // pred_check
          _
        $region22: #{custom-call.6} parent=8 // pred_check_branch
          %26 = sbr.rel (0) target = $region24
        $region23: #{custom-call.6} parent=8 // pred_region
          loop: start=0, step=1, limit=1
          $region25: #{custom-call.6} parent=23 // loop_pre_header
            _
          $region26: #{custom-call.6} parent=23 // loop_header
            %s28 = sphi 0, %s32
            %p29 = scmp.ge.s32.totalorder %s28, 1
            %s33 = sphi %s0, %s0
            %s34 = sphi [#allocation0], [#allocation0]
          $region27: #{custom-call.6} parent=23 // loop_header_branch
            %31 = sbr.rel (%p29) target = $region31
          $region28: #{custom-call.6} parent=23 // loop_body
            %v35 = vld [vmem:[%s33] sm:$0xff]
            %36 = vst [vmem:[%s34] sm:$0xff] %v35
            %v37 = vld [vmem:[%s33 + $0x8] sm:$0xff]
            %38 = vst [vmem:[%s34 + $0x8] sm:$0xff] %v37
            %v39 = vld [vmem:[%s33 + $0x10] sm:$0xff]
            %40 = vst [vmem:[%s34 + $0x10] sm:$0xff] %v39
            %v41 = vld [vmem:[%s33 + $0x18] sm:$0xff]
            %42 = vst [vmem:[%s34 + $0x18] sm:$0xff] %v41
          $region29: #{custom-call.6} parent=23 // loop_footer
            %s32 = sadd.s32 1, %s28
          $region30: #{custom-call.6} parent=23 // loop_footer_branch
            %27 = sbr.rel target = $region26
          $region31: #{custom-call.6} parent=23 // loop_exit
            _
        $region24: #{custom-call.6} parent=8 // pred_fallthru
          _
        // Predicated region
        $region32: #{custom-call.6} parent=8 // pred_check
          _
        $region33: #{custom-call.6} parent=8 // pred_check_branch
          %44 = sbr.rel target = $region35
        $region34: #{custom-call.6} parent=8 // pred_region
          _
        $region35: #{custom-call.6} parent=8 // pred_fallthru
          _
      $region9: #{custom-call.6} parent=4 // pred_fallthru
        _
      // Predicated region
      $region10: #{custom-call.6} parent=4 // pred_check
        _
      $region11: #{custom-call.6} parent=4 // pred_check_branch
        %7 = sbr.rel target = $region13
      $region12: #{custom-call.6} parent=4 // pred_region
        loop: start=0, step=1, limit=1
        $region14: #{custom-call.6} parent=12 // loop_pre_header
          _
        $region15: #{custom-call.6} parent=12 // loop_header
          %s10 = sphi 0, %s14
          %p11 = scmp.ge.s32.totalorder %s10, 1
          %s15 = sphi %s0, %s0
          %s16 = sphi [#allocation0], [#allocation0]
        $region16: #{custom-call.6} parent=12 // loop_header_branch
          %13 = sbr.rel (%p11) target = $region20
        $region17: #{custom-call.6} parent=12 // loop_body
          %v17 = vld [vmem:[%s15] sm:$0xff]
          %18 = vst [vmem:[%s16] sm:$0xff] %v17
          %v19 = vld [vmem:[%s15 + $0x8] sm:$0xff]
          %20 = vst [vmem:[%s16 + $0x8] sm:$0xff] %v19
          %v21 = vld [vmem:[%s15 + $0x10] sm:$0xff]
          %22 = vst [vmem:[%s16 + $0x10] sm:$0xff] %v21
          %v23 = vld [vmem:[%s15 + $0x18] sm:$0xff]
          %24 = vst [vmem:[%s16 + $0x18] sm:$0xff] %v23
        $region18: #{custom-call.6} parent=12 // loop_footer
          %s14 = sadd.s32 1, %s10
        $region19: #{custom-call.6} parent=12 // loop_footer_branch
          %9 = sbr.rel target = $region15
        $region20: #{custom-call.6} parent=12 // loop_exit
          _
      $region13: #{custom-call.6} parent=4 // pred_fallthru
        _
    $region5: #{custom-call.6} parent=1 // pred_fallthru
      _
    %45 = vnop
    %46 = vst [vmem:[#allocation1] sm:$0xff] 0.0
    %s47 = scalar_lea.vmem [#allocation1], 8
    %48 = vst [vmem:[%s47] sm:$0xff] 0.0
    %s49 = scalar_lea.vmem [#allocation1], 16
    %50 = vst [vmem:[%s49] sm:$0xff] 0.0
    %s51 = scalar_lea.vmem [#allocation1], 24
    %52 = vst [vmem:[%s51] sm:$0xff] 0.0
    %vm53 = vcmask 7168
    %v54 = vld [vmem:[#allocation1] ss:$0 sm:$0xff]
    %v55 = vld [vmem:[#allocation0] ss:$0 sm:$0xff]
    %v56 = vmul.f32 %v54, %v54
    %57 = vadd.xlane.f32.xlu0 %v56
    %v58 = vpop.xlane.xlu0 %57
    %v59 = vsub.f32 %v55, %v58
    %v60 = vrsqrt.pop %v59
    %v61 = vld [vmem:[#allocation0] sm:$0xff]
    %v62 = vld [vmem:[#allocation1] sm:$0xff]
    %v63 = vmul.f32 %v62, %v54
    %64 = vadd.xlane.f32.xlu0 %v63
    %v65 = vpop.xlane.xlu0 %64
    %v66 = vsub.f32 %v61, %v65
    %v67 = vmul.f32 %v66, %v60
    %v68 = vsel %vm53, %v67, 0.0
    %v69 = vadd.f32 %v62, %v68
    %70 = vst [vmem:[#allocation1] sm:$0xff] %v69
    %s71 = scalar_lea.vmem [#allocation0], 8
    %v72 = vld [vmem:[%s71] sm:$0xff]
    %s73 = scalar_lea.vmem [#allocation1], 8
    %v74 = vld [vmem:[%s73] sm:$0xff]
    %v75 = vmul.f32 %v74, %v54
    %76 = vadd.xlane.f32.xlu0 %v75
    %v77 = vpop.xlane.xlu0 %76
    %v78 = vsub.f32 %v72, %v77
    %v79 = vmul.f32 %v78, %v60
    %v80 = vsel %vm53, %v79, 0.0
    %v81 = vadd.f32 %v74, %v80
    %s82 = scalar_lea.vmem [#allocation1], 8
    %83 = vst [vmem:[%s82] sm:$0xff] %v81
    %s84 = scalar_lea.vmem [#allocation0], 16
    %v85 = vld [vmem:[%s84] sm:$0xff]
    %s86 = scalar_lea.vmem [#allocation1], 16
    %v87 = vld [vmem:[%s86] sm:$0xff]
    %v88 = vmul.f32 %v87, %v54
    %89 = vadd.xlane.f32.xlu0 %v88
    %v90 = vpop.xlane.xlu0 %89
    %v91 = vsub.f32 %v85, %v90
    %v92 = vmul.f32 %v91, %v60
    %v93 = vsel %vm53, %v92, 0.0
    %v94 = vadd.f32 %v87, %v93
    %s95 = scalar_lea.vmem [#allocation1], 16
    %96 = vst [vmem:[%s95] sm:$0xff] %v94
    %s97 = scalar_lea.vmem [#allocation0], 24
    %v98 = vld [vmem:[%s97] sm:$0xff]
    %s99 = scalar_lea.vmem [#allocation1], 24
    %v100 = vld [vmem:[%s99] sm:$0xff]
    %v101 = vmul.f32 %v100, %v54
    %102 = vadd.xlane.f32.xlu0 %v101
    %v103 = vpop.xlane.xlu0 %102
    %v104 = vsub.f32 %v98, %v103
    %v105 = vmul.f32 %v104, %v60
    %v106 = vsel %vm53, %v105, 0.0
    %v107 = vadd.f32 %v100, %v106
    %s108 = scalar_lea.vmem [#allocation1], 24
    %109 = vst [vmem:[%s108] sm:$0xff] %v107
    %vm110 = vcmask 15368
    %s111 = scalar_lea.vmem [#allocation1], 1
    %v112 = vld [vmem:[%s111] ss:$0 sm:$0xff]
    %s113 = scalar_lea.vmem [#allocation0], 1
    %v114 = vld [vmem:[%s113] ss:$0 sm:$0xff]
    %v115 = vmul.f32 %v112, %v112
    %116 = vadd.xlane.f32.xlu0 %v115
    %v117 = vpop.xlane.xlu0 %116
    %v118 = vsub.f32 %v114, %v117
    %v119 = vrsqrt.pop %v118
    %v120 = vld [vmem:[#allocation0] sm:$0xff]
    %v121 = vld [vmem:[#allocation1] sm:$0xff]
    %v122 = vmul.f32 %v121, %v112
    %123 = vadd.xlane.f32.xlu0 %v122
    %v124 = vpop.xlane.xlu0 %123
    %v125 = vsub.f32 %v120, %v124
    %v126 = vmul.f32 %v125, %v119
    %vm127 = vcmask 1047553
    %vm128 = vmand %vm110, %vm127
    %v129 = vsel %vm128, %v126, 0.0
    %v130 = vadd.f32 %v121, %v129
    %131 = vst [vmem:[#allocation1] sm:$0xff] %v130
    %s132 = scalar_lea.vmem [#allocation0], 8
    %v133 = vld [vmem:[%s132] sm:$0xff]
    %s134 = scalar_lea.vmem [#allocation1], 8
    %v135 = vld [vmem:[%s134] sm:$0xff]
    %v136 = vmul.f32 %v135, %v112
    %137 = vadd.xlane.f32.xlu0 %v136
    %v138 = vpop.xlane.xlu0 %137
    %v139 = vsub.f32 %v133, %v138
    %v140 = vmul.f32 %v139, %v119
    %v141 = vsel %vm110, %v140, 0.0
    %v142 = vadd.f32 %v135, %v141
    %s143 = scalar_lea.vmem [#allocation1], 8
    %144 = vst [vmem:[%s143] sm:$0xff] %v142
    %s145 = scalar_lea.vmem [#allocation0], 16
    %v146 = vld [vmem:[%s145] sm:$0xff]
    %s147 = scalar_lea.vmem [#allocation1], 16
    %v148 = vld [vmem:[%s147] sm:$0xff]
    %v149 = vmul.f32 %v148, %v112
    %150 = vadd.xlane.f32.xlu0 %v149
    %v151 = vpop.xlane.xlu0 %150
    %v152 = vsub.f32 %v146, %v151
    %v153 = vmul.f32 %v152, %v119
    %v154 = vsel %vm110, %v153, 0.0
    %v155 = vadd.f32 %v148, %v154
    %s156 = scalar_lea.vmem [#allocation1], 16
    %157 = vst [vmem:[%s156] sm:$0xff] %v155
    %s158 = scalar_lea.vmem [#allocation0], 24
    %v159 = vld [vmem:[%s158] sm:$0xff]
    %s160 = scalar_lea.vmem [#allocation1], 24
    %v161 = vld [vmem:[%s160] sm:$0xff]
    %v162 = vmul.f32 %v161, %v112
    %163 = vadd.xlane.f32.xlu0 %v162
    %v164 = vpop.xlane.xlu0 %163
    %v165 = vsub.f32 %v159, %v164
    %v166 = vmul.f32 %v165, %v119
    %v167 = vsel %vm110, %v166, 0.0
    %v168 = vadd.f32 %v161, %v167
    %s169 = scalar_lea.vmem [#allocation1], 24
    %170 = vst [vmem:[%s169] sm:$0xff] %v168
    %vm171 = vcmask 23568
    %s172 = scalar_lea.vmem [#allocation1], 2
    %v173 = vld [vmem:[%s172] ss:$0 sm:$0xff]
    %s174 = scalar_lea.vmem [#allocation0], 2
    %v175 = vld [vmem:[%s174] ss:$0 sm:$0xff]
    %v176 = vmul.f32 %v173, %v173
    %177 = vadd.xlane.f32.xlu0 %v176
    %v178 = vpop.xlane.xlu0 %177
    %v179 = vsub.f32 %v175, %v178
    %v180 = vrsqrt.pop %v179
    %v181 = vld [vmem:[#allocation0] sm:$0xff]
    %v182 = vld [vmem:[#allocation1] sm:$0xff]
    %v183 = vmul.f32 %v182, %v173
    %184 = vadd.xlane.f32.xlu0 %v183
    %v185 = vpop.xlane.xlu0 %184
    %v186 = vsub.f32 %v181, %v185
    %v187 = vmul.f32 %v186, %v180
    %vm188 = vcmask 1047554
    %vm189 = vmand %vm171, %vm188
    %v190 = vsel %vm189, %v187, 0.0
    %v191 = vadd.f32 %v182, %v190
    %192 = vst [vmem:[#allocation1] sm:$0xff] %v191
    %s193 = scalar_lea.vmem [#allocation0], 8
    %v194 = vld [vmem:[%s193] sm:$0xff]
    %s195 = scalar_lea.vmem [#allocation1], 8
    %v196 = vld [vmem:[%s195] sm:$0xff]
    %v197 = vmul.f32 %v196, %v173
    %198 = vadd.xlane.f32.xlu0 %v197
    %v199 = vpop.xlane.xlu0 %198
    %v200 = vsub.f32 %v194, %v199
    %v201 = vmul.f32 %v200, %v180
    %v202 = vsel %vm171, %v201, 0.0
    %v203 = vadd.f32 %v196, %v202
    %s204 = scalar_lea.vmem [#allocation1], 8
    %205 = vst [vmem:[%s204] sm:$0xff] %v203
    %s206 = scalar_lea.vmem [#allocation0], 16
    %v207 = vld [vmem:[%s206] sm:$0xff]
    %s208 = scalar_lea.vmem [#allocation1], 16
    %v209 = vld [vmem:[%s208] sm:$0xff]
    %v210 = vmul.f32 %v209, %v173
    %211 = vadd.xlane.f32.xlu0 %v210
    %v212 = vpop.xlane.xlu0 %211
    %v213 = vsub.f32 %v207, %v212
    %v214 = vmul.f32 %v213, %v180
    %v215 = vsel %vm171, %v214, 0.0
    %v216 = vadd.f32 %v209, %v215
    %s217 = scalar_lea.vmem [#allocation1], 16
    %218 = vst [vmem:[%s217] sm:$0xff] %v216
    %s219 = scalar_lea.vmem [#allocation0], 24
    %v220 = vld [vmem:[%s219] sm:$0xff]
    %s221 = scalar_lea.vmem [#allocation1], 24
    %v222 = vld [vmem:[%s221] sm:$0xff]
    %v223 = vmul.f32 %v222, %v173
    %224 = vadd.xlane.f32.xlu0 %v223
    %v225 = vpop.xlane.xlu0 %224
    %v226 = vsub.f32 %v220, %v225
    %v227 = vmul.f32 %v226, %v180
    %v228 = vsel %vm171, %v227, 0.0
    %v229 = vadd.f32 %v222, %v228
    %s230 = scalar_lea.vmem [#allocation1], 24
    %231 = vst [vmem:[%s230] sm:$0xff] %v229
    %vm232 = vcmask 31768
    %s233 = scalar_lea.vmem [#allocation1], 3
    %v234 = vld [vmem:[%s233] ss:$0 sm:$0xff]
    %s235 = scalar_lea.vmem [#allocation0], 3
    %v236 = vld [vmem:[%s235] ss:$0 sm:$0xff]
    %v237 = vmul.f32 %v234, %v234
    %238 = vadd.xlane.f32.xlu0 %v237
    %v239 = vpop.xlane.xlu0 %238
    %v240 = vsub.f32 %v236, %v239
    %v241 = vrsqrt.pop %v240
    %v242 = vld [vmem:[#allocation0] sm:$0xff]
    %v243 = vld [vmem:[#allocation1] sm:$0xff]
    %v244 = vmul.f32 %v243, %v234
    %245 = vadd.xlane.f32.xlu0 %v244
    %v246 = vpop.xlane.xlu0 %245
    %v247 = vsub.f32 %v242, %v246
    %v248 = vmul.f32 %v247, %v241
    %vm249 = vcmask 1047555
    %vm250 = vmand %vm232, %vm249
    %v251 = vsel %vm250, %v248, 0.0
    %v252 = vadd.f32 %v243, %v251
    %253 = vst [vmem:[#allocation1] sm:$0xff] %v252
    %s254 = scalar_lea.vmem [#allocation0], 8
    %v255 = vld [vmem:[%s254] sm:$0xff]
    %s256 = scalar_lea.vmem [#allocation1], 8
    %v257 = vld [vmem:[%s256] sm:$0xff]
    %v258 = vmul.f32 %v257, %v234
    %259 = vadd.xlane.f32.xlu0 %v258
    %v260 = vpop.xlane.xlu0 %259
    %v261 = vsub.f32 %v255, %v260
    %v262 = vmul.f32 %v261, %v241
    %v263 = vsel %vm232, %v262, 0.0
    %v264 = vadd.f32 %v257, %v263
    %s265 = scalar_lea.vmem [#allocation1], 8
    %266 = vst [vmem:[%s265] sm:$0xff] %v264
    %s267 = scalar_lea.vmem [#allocation0], 16
    %v268 = vld [vmem:[%s267] sm:$0xff]
    %s269 = scalar_lea.vmem [#allocation1], 16
    %v270 = vld [vmem:[%s269] sm:$0xff]
    %v271 = vmul.f32 %v270, %v234
    %272 = vadd.xlane.f32.xlu0 %v271
    %v273 = vpop.xlane.xlu0 %272
    %v274 = vsub.f32 %v268, %v273
    %v275 = vmul.f32 %v274, %v241
    %v276 = vsel %vm232, %v275, 0.0
    %v277 = vadd.f32 %v270, %v276
    %s278 = scalar_lea.vmem [#allocation1], 16
    %279 = vst [vmem:[%s278] sm:$0xff] %v277
    %s280 = scalar_lea.vmem [#allocation0], 24
    %v281 = vld [vmem:[%s280] sm:$0xff]
    %s282 = scalar_lea.vmem [#allocation1], 24
    %v283 = vld [vmem:[%s282] sm:$0xff]
    %v284 = vmul.f32 %v283, %v234
    %285 = vadd.xlane.f32.xlu0 %v284
    %v286 = vpop.xlane.xlu0 %285
    %v287 = vsub.f32 %v281, %v286
    %v288 = vmul.f32 %v287, %v241
    %v289 = vsel %vm232, %v288, 0.0
    %v290 = vadd.f32 %v283, %v289
    %s291 = scalar_lea.vmem [#allocation1], 24
    %292 = vst [vmem:[%s291] sm:$0xff] %v290
    %vm293 = vcmask 39968
    %s294 = scalar_lea.vmem [#allocation1], 4
    %v295 = vld [vmem:[%s294] ss:$0 sm:$0xff]
    %s296 = scalar_lea.vmem [#allocation0], 4
    %v297 = vld [vmem:[%s296] ss:$0 sm:$0xff]
    %v298 = vmul.f32 %v295, %v295
    %299 = vadd.xlane.f32.xlu0 %v298
    %v300 = vpop.xlane.xlu0 %299
    %v301 = vsub.f32 %v297, %v300
    %v302 = vrsqrt.pop %v301
    %v303 = vld [vmem:[#allocation0] sm:$0xff]
    %v304 = vld [vmem:[#allocation1] sm:$0xff]
    %v305 = vmul.f32 %v304, %v295
    %306 = vadd.xlane.f32.xlu0 %v305
    %v307 = vpop.xlane.xlu0 %306
    %v308 = vsub.f32 %v303, %v307
    %v309 = vmul.f32 %v308, %v302
    %vm310 = vcmask 1047556
    %vm311 = vmand %vm293, %vm310
    %v312 = vsel %vm311, %v309, 0.0
    %v313 = vadd.f32 %v304, %v312
    %314 = vst [vmem:[#allocation1] sm:$0xff] %v313
    %s315 = scalar_lea.vmem [#allocation0], 8
    %v316 = vld [vmem:[%s315] sm:$0xff]
    %s317 = scalar_lea.vmem [#allocation1], 8
    %v318 = vld [vmem:[%s317] sm:$0xff]
    %v319 = vmul.f32 %v318, %v295
    %320 = vadd.xlane.f32.xlu0 %v319
    %v321 = vpop.xlane.xlu0 %320
    %v322 = vsub.f32 %v316, %v321
    %v323 = vmul.f32 %v322, %v302
    %v324 = vsel %vm293, %v323, 0.0
    %v325 = vadd.f32 %v318, %v324
    %s326 = scalar_lea.vmem [#allocation1], 8
    %327 = vst [vmem:[%s326] sm:$0xff] %v325
    %s328 = scalar_lea.vmem [#allocation0], 16
    %v329 = vld [vmem:[%s328] sm:$0xff]
    %s330 = scalar_lea.vmem [#allocation1], 16
    %v331 = vld [vmem:[%s330] sm:$0xff]
    %v332 = vmul.f32 %v331, %v295
    %333 = vadd.xlane.f32.xlu0 %v332
    %v334 = vpop.xlane.xlu0 %333
    %v335 = vsub.f32 %v329, %v334
    %v336 = vmul.f32 %v335, %v302
    %v337 = vsel %vm293, %v336, 0.0
    %v338 = vadd.f32 %v331, %v337
    %s339 = scalar_lea.vmem [#allocation1], 16
    %340 = vst [vmem:[%s339] sm:$0xff] %v338
    %s341 = scalar_lea.vmem [#allocation0], 24
    %v342 = vld [vmem:[%s341] sm:$0xff]
    %s343 = scalar_lea.vmem [#allocation1], 24
    %v344 = vld [vmem:[%s343] sm:$0xff]
    %v345 = vmul.f32 %v344, %v295
    %346 = vadd.xlane.f32.xlu0 %v345
    %v347 = vpop.xlane.xlu0 %346
    %v348 = vsub.f32 %v342, %v347
    %v349 = vmul.f32 %v348, %v302
    %v350 = vsel %vm293, %v349, 0.0
    %v351 = vadd.f32 %v344, %v350
    %s352 = scalar_lea.vmem [#allocation1], 24
    %353 = vst [vmem:[%s352] sm:$0xff] %v351
    %vm354 = vcmask 48168
    %s355 = scalar_lea.vmem [#allocation1], 5
    %v356 = vld [vmem:[%s355] ss:$0 sm:$0xff]
    %s357 = scalar_lea.vmem [#allocation0], 5
    %v358 = vld [vmem:[%s357] ss:$0 sm:$0xff]
    %v359 = vmul.f32 %v356, %v356
    %360 = vadd.xlane.f32.xlu0 %v359
    %v361 = vpop.xlane.xlu0 %360
    %v362 = vsub.f32 %v358, %v361
    %v363 = vrsqrt.pop %v362
    %v364 = vld [vmem:[#allocation0] sm:$0xff]
    %v365 = vld [vmem:[#allocation1] sm:$0xff]
    %v366 = vmul.f32 %v365, %v356
    %367 = vadd.xlane.f32.xlu0 %v366
    %v368 = vpop.xlane.xlu0 %367
    %v369 = vsub.f32 %v364, %v368
    %v370 = vmul.f32 %v369, %v363
    %vm371 = vcmask 1047557
    %vm372 = vmand %vm354, %vm371
    %v373 = vsel %vm372, %v370, 0.0
    %v374 = vadd.f32 %v365, %v373
    %375 = vst [vmem:[#allocation1] sm:$0xff] %v374
    %s376 = scalar_lea.vmem [#allocation0], 8
    %v377 = vld [vmem:[%s376] sm:$0xff]
    %s378 = scalar_lea.vmem [#allocation1], 8
    %v379 = vld [vmem:[%s378] sm:$0xff]
    %v380 = vmul.f32 %v379, %v356
    %381 = vadd.xlane.f32.xlu0 %v380
    %v382 = vpop.xlane.xlu0 %381
    %v383 = vsub.f32 %v377, %v382
    %v384 = vmul.f32 %v383, %v363
    %v385 = vsel %vm354, %v384, 0.0
    %v386 = vadd.f32 %v379, %v385
    %s387 = scalar_lea.vmem [#allocation1], 8
    %388 = vst [vmem:[%s387] sm:$0xff] %v386
    %s389 = scalar_lea.vmem [#allocation0], 16
    %v390 = vld [vmem:[%s389] sm:$0xff]
    %s391 = scalar_lea.vmem [#allocation1], 16
    %v392 = vld [vmem:[%s391] sm:$0xff]
    %v393 = vmul.f32 %v392, %v356
    %394 = vadd.xlane.f32.xlu0 %v393
    %v395 = vpop.xlane.xlu0 %394
    %v396 = vsub.f32 %v390, %v395
    %v397 = vmul.f32 %v396, %v363
    %v398 = vsel %vm354, %v397, 0.0
    %v399 = vadd.f32 %v392, %v398
    %s400 = scalar_lea.vmem [#allocation1], 16
    %401 = vst [vmem:[%s400] sm:$0xff] %v399
    %s402 = scalar_lea.vmem [#allocation0], 24
    %v403 = vld [vmem:[%s402] sm:$0xff]
    %s404 = scalar_lea.vmem [#allocation1], 24
    %v405 = vld [vmem:[%s404] sm:$0xff]
    %v406 = vmul.f32 %v405, %v356
    %407 = vadd.xlane.f32.xlu0 %v406
    %v408 = vpop.xlane.xlu0 %407
    %v409 = vsub.f32 %v403, %v408
    %v410 = vmul.f32 %v409, %v363
    %v411 = vsel %vm354, %v410, 0.0
    %v412 = vadd.f32 %v405, %v411
    %s413 = scalar_lea.vmem [#allocation1], 24
    %414 = vst [vmem:[%s413] sm:$0xff] %v412
    %vm415 = vcmask 56368
    %s416 = scalar_lea.vmem [#allocation1], 6
    %v417 = vld [vmem:[%s416] ss:$0 sm:$0xff]
    %s418 = scalar_lea.vmem [#allocation0], 6
    %v419 = vld [vmem:[%s418] ss:$0 sm:$0xff]
    %v420 = vmul.f32 %v417, %v417
    %421 = vadd.xlane.f32.xlu0 %v420
    %v422 = vpop.xlane.xlu0 %421
    %v423 = vsub.f32 %v419, %v422
    %v424 = vrsqrt.pop %v423
    %v425 = vld [vmem:[#allocation0] sm:$0xff]
    %v426 = vld [vmem:[#allocation1] sm:$0xff]
    %v427 = vmul.f32 %v426, %v417
    %428 = vadd.xlane.f32.xlu0 %v427
    %v429 = vpop.xlane.xlu0 %428
    %v430 = vsub.f32 %v425, %v429
    %v431 = vmul.f32 %v430, %v424
    %vm432 = vcmask 1047558
    %vm433 = vmand %vm415, %vm432
    %v434 = vsel %vm433, %v431, 0.0
    %v435 = vadd.f32 %v426, %v434
    %436 = vst [vmem:[#allocation1] sm:$0xff] %v435
    %s437 = scalar_lea.vmem [#allocation0], 8
    %v438 = vld [vmem:[%s437] sm:$0xff]
    %s439 = scalar_lea.vmem [#allocation1], 8
    %v440 = vld [vmem:[%s439] sm:$0xff]
    %v441 = vmul.f32 %v440, %v417
    %442 = vadd.xlane.f32.xlu0 %v441
    %v443 = vpop.xlane.xlu0 %442
    %v444 = vsub.f32 %v438, %v443
    %v445 = vmul.f32 %v444, %v424
    %v446 = vsel %vm415, %v445, 0.0
    %v447 = vadd.f32 %v440, %v446
    %s448 = scalar_lea.vmem [#allocation1], 8
    %449 = vst [vmem:[%s448] sm:$0xff] %v447
    %s450 = scalar_lea.vmem [#allocation0], 16
    %v451 = vld [vmem:[%s450] sm:$0xff]
    %s452 = scalar_lea.vmem [#allocation1], 16
    %v453 = vld [vmem:[%s452] sm:$0xff]
    %v454 = vmul.f32 %v453, %v417
    %455 = vadd.xlane.f32.xlu0 %v454
    %v456 = vpop.xlane.xlu0 %455
    %v457 = vsub.f32 %v451, %v456
    %v458 = vmul.f32 %v457, %v424
    %v459 = vsel %vm415, %v458, 0.0
    %v460 = vadd.f32 %v453, %v459
    %s461 = scalar_lea.vmem [#allocation1], 16
    %462 = vst [vmem:[%s461] sm:$0xff] %v460
    %s463 = scalar_lea.vmem [#allocation0], 24
    %v464 = vld [vmem:[%s463] sm:$0xff]
    %s465 = scalar_lea.vmem [#allocation1], 24
    %v466 = vld [vmem:[%s465] sm:$0xff]
    %v467 = vmul.f32 %v466, %v417
    %468 = vadd.xlane.f32.xlu0 %v467
    %v469 = vpop.xlane.xlu0 %468
    %v470 = vsub.f32 %v464, %v469
    %v471 = vmul.f32 %v470, %v424
    %v472 = vsel %vm415, %v471, 0.0
    %v473 = vadd.f32 %v466, %v472
    %s474 = scalar_lea.vmem [#allocation1], 24
    %475 = vst [vmem:[%s474] sm:$0xff] %v473
    %vm476 = vcmask 64568
    %s477 = scalar_lea.vmem [#allocation1], 7
    %v478 = vld [vmem:[%s477] ss:$0 sm:$0xff]
    %s479 = scalar_lea.vmem [#allocation0], 7
    %v480 = vld [vmem:[%s479] ss:$0 sm:$0xff]
    %v481 = vmul.f32 %v478, %v478
    %482 = vadd.xlane.f32.xlu0 %v481
    %v483 = vpop.xlane.xlu0 %482
    %v484 = vsub.f32 %v480, %v483
    %v485 = vrsqrt.pop %v484
    %v486 = vld [vmem:[#allocation0] sm:$0xff]
    %v487 = vld [vmem:[#allocation1] sm:$0xff]
    %v488 = vmul.f32 %v487, %v478
    %489 = vadd.xlane.f32.xlu0 %v488
    %v490 = vpop.xlane.xlu0 %489
    %v491 = vsub.f32 %v486, %v490
    %v492 = vmul.f32 %v491, %v485
    %vm493 = vcmask 1047559
    %vm494 = vmand %vm476, %vm493
    %v495 = vsel %vm494, %v492, 0.0
    %v496 = vadd.f32 %v487, %v495
    %497 = vst [vmem:[#allocation1] sm:$0xff] %v496
    %s498 = scalar_lea.vmem [#allocation0], 8
    %v499 = vld [vmem:[%s498] sm:$0xff]
    %s500 = scalar_lea.vmem [#allocation1], 8
    %v501 = vld [vmem:[%s500] sm:$0xff]
    %v502 = vmul.f32 %v501, %v478
    %503 = vadd.xlane.f32.xlu0 %v502
    %v504 = vpop.xlane.xlu0 %503
    %v505 = vsub.f32 %v499, %v504
    %v506 = vmul.f32 %v505, %v485
    %v507 = vsel %vm476, %v506, 0.0
    %v508 = vadd.f32 %v501, %v507
    %s509 = scalar_lea.vmem [#allocation1], 8
    %510 = vst [vmem:[%s509] sm:$0xff] %v508
    %s511 = scalar_lea.vmem [#allocation0], 16
    %v512 = vld [vmem:[%s511] sm:$0xff]
    %s513 = scalar_lea.vmem [#allocation1], 16
    %v514 = vld [vmem:[%s513] sm:$0xff]
    %v515 = vmul.f32 %v514, %v478
    %516 = vadd.xlane.f32.xlu0 %v515
    %v517 = vpop.xlane.xlu0 %516
    %v518 = vsub.f32 %v512, %v517
    %v519 = vmul.f32 %v518, %v485
    %v520 = vsel %vm476, %v519, 0.0
    %v521 = vadd.f32 %v514, %v520
    %s522 = scalar_lea.vmem [#allocation1], 16
    %523 = vst [vmem:[%s522] sm:$0xff] %v521
    %s524 = scalar_lea.vmem [#allocation0], 24
    %v525 = vld [vmem:[%s524] sm:$0xff]
    %s526 = scalar_lea.vmem [#allocation1], 24
    %v527 = vld [vmem:[%s526] sm:$0xff]
    %v528 = vmul.f32 %v527, %v478
    %529 = vadd.xlane.f32.xlu0 %v528
    %v530 = vpop.xlane.xlu0 %529
    %v531 = vsub.f32 %v525, %v530
    %v532 = vmul.f32 %v531, %v485
    %v533 = vsel %vm476, %v532, 0.0
    %v534 = vadd.f32 %v527, %v533
    %s535 = scalar_lea.vmem [#allocation1], 24
    %536 = vst [vmem:[%s535] sm:$0xff] %v534
    %vm537 = vcmask 72768
    %s538 = scalar_lea.vmem [#allocation1], 8
    %v539 = vld [vmem:[%s538] ss:$0 sm:$0xff]
    %s540 = scalar_lea.vmem [#allocation0], 8
    %v541 = vld [vmem:[%s540] ss:$0 sm:$0xff]
    %v542 = vmul.f32 %v539, %v539
    %543 = vadd.xlane.f32.xlu0 %v542
    %v544 = vpop.xlane.xlu0 %543
    %v545 = vsub.f32 %v541, %v544
    %v546 = vrsqrt.pop %v545
    %s547 = scalar_lea.vmem [#allocation0], 8
    %v548 = vld [vmem:[%s547] sm:$0xff]
    %s549 = scalar_lea.vmem [#allocation1], 8
    %v550 = vld [vmem:[%s549] sm:$0xff]
    %v551 = vmul.f32 %v550, %v539
    %552 = vadd.xlane.f32.xlu0 %v551
    %v553 = vpop.xlane.xlu0 %552
    %v554 = vsub.f32 %v548, %v553
    %v555 = vmul.f32 %v554, %v546
    %v556 = vsel %vm537, %v555, 0.0
    %v557 = vadd.f32 %v550, %v556
    %s558 = scalar_lea.vmem [#allocation1], 8
    %559 = vst [vmem:[%s558] sm:$0xff] %v557
    %s560 = scalar_lea.vmem [#allocation0], 16
    %v561 = vld [vmem:[%s560] sm:$0xff]
    %s562 = scalar_lea.vmem [#allocation1], 16
    %v563 = vld [vmem:[%s562] sm:$0xff]
    %v564 = vmul.f32 %v563, %v539
    %565 = vadd.xlane.f32.xlu0 %v564
    %v566 = vpop.xlane.xlu0 %565
    %v567 = vsub.f32 %v561, %v566
    %v568 = vmul.f32 %v567, %v546
    %v569 = vsel %vm537, %v568, 0.0
    %v570 = vadd.f32 %v563, %v569
    %s571 = scalar_lea.vmem [#allocation1], 16
    %572 = vst [vmem:[%s571] sm:$0xff] %v570
    %s573 = scalar_lea.vmem [#allocation0], 24
    %v574 = vld [vmem:[%s573] sm:$0xff]
    %s575 = scalar_lea.vmem [#allocation1], 24
    %v576 = vld [vmem:[%s575] sm:$0xff]
    %v577 = vmul.f32 %v576, %v539
    %578 = vadd.xlane.f32.xlu0 %v577
    %v579 = vpop.xlane.xlu0 %578
    %v580 = vsub.f32 %v574, %v579
    %v581 = vmul.f32 %v580, %v546
    %v582 = vsel %vm537, %v581, 0.0
    %v583 = vadd.f32 %v576, %v582
    %s584 = scalar_lea.vmem [#allocation1], 24
    %585 = vst [vmem:[%s584] sm:$0xff] %v583
    %vm586 = vcmask 80968
    %s587 = scalar_lea.vmem [#allocation1], 9
    %v588 = vld [vmem:[%s587] ss:$0 sm:$0xff]
    %s589 = scalar_lea.vmem [#allocation0], 9
    %v590 = vld [vmem:[%s589] ss:$0 sm:$0xff]
    %v591 = vmul.f32 %v588, %v588
    %592 = vadd.xlane.f32.xlu0 %v591
    %v593 = vpop.xlane.xlu0 %592
    %v594 = vsub.f32 %v590, %v593
    %v595 = vrsqrt.pop %v594
    %s596 = scalar_lea.vmem [#allocation0], 8
    %v597 = vld [vmem:[%s596] sm:$0xff]
    %s598 = scalar_lea.vmem [#allocation1], 8
    %v599 = vld [vmem:[%s598] sm:$0xff]
    %v600 = vmul.f32 %v599, %v588
    %601 = vadd.xlane.f32.xlu0 %v600
    %v602 = vpop.xlane.xlu0 %601
    %v603 = vsub.f32 %v597, %v602
    %v604 = vmul.f32 %v603, %v595
    %vm605 = vcmask 1047553
    %vm606 = vmand %vm586, %vm605
    %v607 = vsel %vm606, %v604, 0.0
    %v608 = vadd.f32 %v599, %v607
    %s609 = scalar_lea.vmem [#allocation1], 8
    %610 = vst [vmem:[%s609] sm:$0xff] %v608
    %s611 = scalar_lea.vmem [#allocation0], 16
    %v612 = vld [vmem:[%s611] sm:$0xff]
    %s613 = scalar_lea.vmem [#allocation1], 16
    %v614 = vld [vmem:[%s613] sm:$0xff]
    %v615 = vmul.f32 %v614, %v588
    %616 = vadd.xlane.f32.xlu0 %v615
    %v617 = vpop.xlane.xlu0 %616
    %v618 = vsub.f32 %v612, %v617
    %v619 = vmul.f32 %v618, %v595
    %v620 = vsel %vm586, %v619, 0.0
    %v621 = vadd.f32 %v614, %v620
    %s622 = scalar_lea.vmem [#allocation1], 16
    %623 = vst [vmem:[%s622] sm:$0xff] %v621
    %s624 = scalar_lea.vmem [#allocation0], 24
    %v625 = vld [vmem:[%s624] sm:$0xff]
    %s626 = scalar_lea.vmem [#allocation1], 24
    %v627 = vld [vmem:[%s626] sm:$0xff]
    %v628 = vmul.f32 %v627, %v588
    %629 = vadd.xlane.f32.xlu0 %v628
    %v630 = vpop.xlane.xlu0 %629
    %v631 = vsub.f32 %v625, %v630
    %v632 = vmul.f32 %v631, %v595
    %v633 = vsel %vm586, %v632, 0.0
    %v634 = vadd.f32 %v627, %v633
    %s635 = scalar_lea.vmem [#allocation1], 24
    %636 = vst [vmem:[%s635] sm:$0xff] %v634
    %vm637 = vcmask 89168
    %s638 = scalar_lea.vmem [#allocation1], 10
    %v639 = vld [vmem:[%s638] ss:$0 sm:$0xff]
    %s640 = scalar_lea.vmem [#allocation0], 10
    %v641 = vld [vmem:[%s640] ss:$0 sm:$0xff]
    %v642 = vmul.f32 %v639, %v639
    %643 = vadd.xlane.f32.xlu0 %v642
    %v644 = vpop.xlane.xlu0 %643
    %v645 = vsub.f32 %v641, %v644
    %v646 = vrsqrt.pop %v645
    %s647 = scalar_lea.vmem [#allocation0], 8
    %v648 = vld [vmem:[%s647] sm:$0xff]
    %s649 = scalar_lea.vmem [#allocation1], 8
    %v650 = vld [vmem:[%s649] sm:$0xff]
    %v651 = vmul.f32 %v650, %v639
    %652 = vadd.xlane.f32.xlu0 %v651
    %v653 = vpop.xlane.xlu0 %652
    %v654 = vsub.f32 %v648, %v653
    %v655 = vmul.f32 %v654, %v646
    %vm656 = vcmask 1047554
    %vm657 = vmand %vm637, %vm656
    %v658 = vsel %vm657, %v655, 0.0
    %v659 = vadd.f32 %v650, %v658
    %s660 = scalar_lea.vmem [#allocation1], 8
    %661 = vst [vmem:[%s660] sm:$0xff] %v659
    %s662 = scalar_lea.vmem [#allocation0], 16
    %v663 = vld [vmem:[%s662] sm:$0xff]
    %s664 = scalar_lea.vmem [#allocation1], 16
    %v665 = vld [vmem:[%s664] sm:$0xff]
    %v666 = vmul.f32 %v665, %v639
    %667 = vadd.xlane.f32.xlu0 %v666
    %v668 = vpop.xlane.xlu0 %667
    %v669 = vsub.f32 %v663, %v668
    %v670 = vmul.f32 %v669, %v646
    %v671 = vsel %vm637, %v670, 0.0
    %v672 = vadd.f32 %v665, %v671
    %s673 = scalar_lea.vmem [#allocation1], 16
    %674 = vst [vmem:[%s673] sm:$0xff] %v672
    %s675 = scalar_lea.vmem [#allocation0], 24
    %v676 = vld [vmem:[%s675] sm:$0xff]
    %s677 = scalar_lea.vmem [#allocation1], 24
    %v678 = vld [vmem:[%s677] sm:$0xff]
    %v679 = vmul.f32 %v678, %v639
    %680 = vadd.xlane.f32.xlu0 %v679
    %v681 = vpop.xlane.xlu0 %680
    %v682 = vsub.f32 %v676, %v681
    %v683 = vmul.f32 %v682, %v646
    %v684 = vsel %vm637, %v683, 0.0
    %v685 = vadd.f32 %v678, %v684
    %s686 = scalar_lea.vmem [#allocation1], 24
    %687 = vst [vmem:[%s686] sm:$0xff] %v685
    %vm688 = vcmask 97368
    %s689 = scalar_lea.vmem [#allocation1], 11
    %v690 = vld [vmem:[%s689] ss:$0 sm:$0xff]
    %s691 = scalar_lea.vmem [#allocation0], 11
    %v692 = vld [vmem:[%s691] ss:$0 sm:$0xff]
    %v693 = vmul.f32 %v690, %v690
    %694 = vadd.xlane.f32.xlu0 %v693
    %v695 = vpop.xlane.xlu0 %694
    %v696 = vsub.f32 %v692, %v695
    %v697 = vrsqrt.pop %v696
    %s698 = scalar_lea.vmem [#allocation0], 8
    %v699 = vld [vmem:[%s698] sm:$0xff]
    %s700 = scalar_lea.vmem [#allocation1], 8
    %v701 = vld [vmem:[%s700] sm:$0xff]
    %v702 = vmul.f32 %v701, %v690
    %703 = vadd.xlane.f32.xlu0 %v702
    %v704 = vpop.xlane.xlu0 %703
    %v705 = vsub.f32 %v699, %v704
    %v706 = vmul.f32 %v705, %v697
    %vm707 = vcmask 1047555
    %vm708 = vmand %vm688, %vm707
    %v709 = vsel %vm708, %v706, 0.0
    %v710 = vadd.f32 %v701, %v709
    %s711 = scalar_lea.vmem [#allocation1], 8
    %712 = vst [vmem:[%s711] sm:$0xff] %v710
    %s713 = scalar_lea.vmem [#allocation0], 16
    %v714 = vld [vmem:[%s713] sm:$0xff]
    %s715 = scalar_lea.vmem [#allocation1], 16
    %v716 = vld [vmem:[%s715] sm:$0xff]
    %v717 = vmul.f32 %v716, %v690
    %718 = vadd.xlane.f32.xlu0 %v717
    %v719 = vpop.xlane.xlu0 %718
    %v720 = vsub.f32 %v714, %v719
    %v721 = vmul.f32 %v720, %v697
    %v722 = vsel %vm688, %v721, 0.0
    %v723 = vadd.f32 %v716, %v722
    %s724 = scalar_lea.vmem [#allocation1], 16
    %725 = vst [vmem:[%s724] sm:$0xff] %v723
    %s726 = scalar_lea.vmem [#allocation0], 24
    %v727 = vld [vmem:[%s726] sm:$0xff]
    %s728 = scalar_lea.vmem [#allocation1], 24
    %v729 = vld [vmem:[%s728] sm:$0xff]
    %v730 = vmul.f32 %v729, %v690
    %731 = vadd.xlane.f32.xlu0 %v730
    %v732 = vpop.xlane.xlu0 %731
    %v733 = vsub.f32 %v727, %v732
    %v734 = vmul.f32 %v733, %v697
    %v735 = vsel %vm688, %v734, 0.0
    %v736 = vadd.f32 %v729, %v735
    %s737 = scalar_lea.vmem [#allocation1], 24
    %738 = vst [vmem:[%s737] sm:$0xff] %v736
    %vm739 = vcmask 105568
    %s740 = scalar_lea.vmem [#allocation1], 12
    %v741 = vld [vmem:[%s740] ss:$0 sm:$0xff]
    %s742 = scalar_lea.vmem [#allocation0], 12
    %v743 = vld [vmem:[%s742] ss:$0 sm:$0xff]
    %v744 = vmul.f32 %v741, %v741
    %745 = vadd.xlane.f32.xlu0 %v744
    %v746 = vpop.xlane.xlu0 %745
    %v747 = vsub.f32 %v743, %v746
    %v748 = vrsqrt.pop %v747
    %s749 = scalar_lea.vmem [#allocation0], 8
    %v750 = vld [vmem:[%s749] sm:$0xff]
    %s751 = scalar_lea.vmem [#allocation1], 8
    %v752 = vld [vmem:[%s751] sm:$0xff]
    %v753 = vmul.f32 %v752, %v741
    %754 = vadd.xlane.f32.xlu0 %v753
    %v755 = vpop.xlane.xlu0 %754
    %v756 = vsub.f32 %v750, %v755
    %v757 = vmul.f32 %v756, %v748
    %vm758 = vcmask 1047556
    %vm759 = vmand %vm739, %vm758
    %v760 = vsel %vm759, %v757, 0.0
    %v761 = vadd.f32 %v752, %v760
    %s762 = scalar_lea.vmem [#allocation1], 8
    %763 = vst [vmem:[%s762] sm:$0xff] %v761
    %s764 = scalar_lea.vmem [#allocation0], 16
    %v765 = vld [vmem:[%s764] sm:$0xff]
    %s766 = scalar_lea.vmem [#allocation1], 16
    %v767 = vld [vmem:[%s766] sm:$0xff]
    %v768 = vmul.f32 %v767, %v741
    %769 = vadd.xlane.f32.xlu0 %v768
    %v770 = vpop.xlane.xlu0 %769
    %v771 = vsub.f32 %v765, %v770
    %v772 = vmul.f32 %v771, %v748
    %v773 = vsel %vm739, %v772, 0.0
    %v774 = vadd.f32 %v767, %v773
    %s775 = scalar_lea.vmem [#allocation1], 16
    %776 = vst [vmem:[%s775] sm:$0xff] %v774
    %s777 = scalar_lea.vmem [#allocation0], 24
    %v778 = vld [vmem:[%s777] sm:$0xff]
    %s779 = scalar_lea.vmem [#allocation1], 24
    %v780 = vld [vmem:[%s779] sm:$0xff]
    %v781 = vmul.f32 %v780, %v741
    %782 = vadd.xlane.f32.xlu0 %v781
    %v783 = vpop.xlane.xlu0 %782
    %v784 = vsub.f32 %v778, %v783
    %v785 = vmul.f32 %v784, %v748
    %v786 = vsel %vm739, %v785, 0.0
    %v787 = vadd.f32 %v780, %v786
    %s788 = scalar_lea.vmem [#allocation1], 24
    %789 = vst [vmem:[%s788] sm:$0xff] %v787
    %vm790 = vcmask 113768
    %s791 = scalar_lea.vmem [#allocation1], 13
    %v792 = vld [vmem:[%s791] ss:$0 sm:$0xff]
    %s793 = scalar_lea.vmem [#allocation0], 13
    %v794 = vld [vmem:[%s793] ss:$0 sm:$0xff]
    %v795 = vmul.f32 %v792, %v792
    %796 = vadd.xlane.f32.xlu0 %v795
    %v797 = vpop.xlane.xlu0 %796
    %v798 = vsub.f32 %v794, %v797
    %v799 = vrsqrt.pop %v798
    %s800 = scalar_lea.vmem [#allocation0], 8
    %v801 = vld [vmem:[%s800] sm:$0xff]
    %s802 = scalar_lea.vmem [#allocation1], 8
    %v803 = vld [vmem:[%s802] sm:$0xff]
    %v804 = vmul.f32 %v803, %v792
    %805 = vadd.xlane.f32.xlu0 %v804
    %v806 = vpop.xlane.xlu0 %805
    %v807 = vsub.f32 %v801, %v806
    %v808 = vmul.f32 %v807, %v799
    %vm809 = vcmask 1047557
    %vm810 = vmand %vm790, %vm809
    %v811 = vsel %vm810, %v808, 0.0
    %v812 = vadd.f32 %v803, %v811
    %s813 = scalar_lea.vmem [#allocation1], 8
    %814 = vst [vmem:[%s813] sm:$0xff] %v812
    %s815 = scalar_lea.vmem [#allocation0], 16
    %v816 = vld [vmem:[%s815] sm:$0xff]
    %s817 = scalar_lea.vmem [#allocation1], 16
    %v818 = vld [vmem:[%s817] sm:$0xff]
    %v819 = vmul.f32 %v818, %v792
    %820 = vadd.xlane.f32.xlu0 %v819
    %v821 = vpop.xlane.xlu0 %820
    %v822 = vsub.f32 %v816, %v821
    %v823 = vmul.f32 %v822, %v799
    %v824 = vsel %vm790, %v823, 0.0
    %v825 = vadd.f32 %v818, %v824
    %s826 = scalar_lea.vmem [#allocation1], 16
    %827 = vst [vmem:[%s826] sm:$0xff] %v825
    %s828 = scalar_lea.vmem [#allocation0], 24
    %v829 = vld [vmem:[%s828] sm:$0xff]
    %s830 = scalar_lea.vmem [#allocation1], 24
    %v831 = vld [vmem:[%s830] sm:$0xff]
    %v832 = vmul.f32 %v831, %v792
    %833 = vadd.xlane.f32.xlu0 %v832
    %v834 = vpop.xlane.xlu0 %833
    %v835 = vsub.f32 %v829, %v834
    %v836 = vmul.f32 %v835, %v799
    %v837 = vsel %vm790, %v836, 0.0
    %v838 = vadd.f32 %v831, %v837
    %s839 = scalar_lea.vmem [#allocation1], 24
    %840 = vst [vmem:[%s839] sm:$0xff] %v838
    %vm841 = vcmask 121968
    %s842 = scalar_lea.vmem [#allocation1], 14
    %v843 = vld [vmem:[%s842] ss:$0 sm:$0xff]
    %s844 = scalar_lea.vmem [#allocation0], 14
    %v845 = vld [vmem:[%s844] ss:$0 sm:$0xff]
    %v846 = vmul.f32 %v843, %v843
    %847 = vadd.xlane.f32.xlu0 %v846
    %v848 = vpop.xlane.xlu0 %847
    %v849 = vsub.f32 %v845, %v848
    %v850 = vrsqrt.pop %v849
    %s851 = scalar_lea.vmem [#allocation0], 8
    %v852 = vld [vmem:[%s851] sm:$0xff]
    %s853 = scalar_lea.vmem [#allocation1], 8
    %v854 = vld [vmem:[%s853] sm:$0xff]
    %v855 = vmul.f32 %v854, %v843
    %856 = vadd.xlane.f32.xlu0 %v855
    %v857 = vpop.xlane.xlu0 %856
    %v858 = vsub.f32 %v852, %v857
    %v859 = vmul.f32 %v858, %v850
    %vm860 = vcmask 1047558
    %vm861 = vmand %vm841, %vm860
    %v862 = vsel %vm861, %v859, 0.0
    %v863 = vadd.f32 %v854, %v862
    %s864 = scalar_lea.vmem [#allocation1], 8
    %865 = vst [vmem:[%s864] sm:$0xff] %v863
    %s866 = scalar_lea.vmem [#allocation0], 16
    %v867 = vld [vmem:[%s866] sm:$0xff]
    %s868 = scalar_lea.vmem [#allocation1], 16
    %v869 = vld [vmem:[%s868] sm:$0xff]
    %v870 = vmul.f32 %v869, %v843
    %871 = vadd.xlane.f32.xlu0 %v870
    %v872 = vpop.xlane.xlu0 %871
    %v873 = vsub.f32 %v867, %v872
    %v874 = vmul.f32 %v873, %v850
    %v875 = vsel %vm841, %v874, 0.0
    %v876 = vadd.f32 %v869, %v875
    %s877 = scalar_lea.vmem [#allocation1], 16
    %878 = vst [vmem:[%s877] sm:$0xff] %v876
    %s879 = scalar_lea.vmem [#allocation0], 24
    %v880 = vld [vmem:[%s879] sm:$0xff]
    %s881 = scalar_lea.vmem [#allocation1], 24
    %v882 = vld [vmem:[%s881] sm:$0xff]
    %v883 = vmul.f32 %v882, %v843
    %884 = vadd.xlane.f32.xlu0 %v883
    %v885 = vpop.xlane.xlu0 %884
    %v886 = vsub.f32 %v880, %v885
    %v887 = vmul.f32 %v886, %v850
    %v888 = vsel %vm841, %v887, 0.0
    %v889 = vadd.f32 %v882, %v888
    %s890 = scalar_lea.vmem [#allocation1], 24
    %891 = vst [vmem:[%s890] sm:$0xff] %v889
    %vm892 = vcmask 130168
    %s893 = scalar_lea.vmem [#allocation1], 15
    %v894 = vld [vmem:[%s893] ss:$0 sm:$0xff]
    %s895 = scalar_lea.vmem [#allocation0], 15
    %v896 = vld [vmem:[%s895] ss:$0 sm:$0xff]
    %v897 = vmul.f32 %v894, %v894
    %898 = vadd.xlane.f32.xlu0 %v897
    %v899 = vpop.xlane.xlu0 %898
    %v900 = vsub.f32 %v896, %v899
    %v901 = vrsqrt.pop %v900
    %s902 = scalar_lea.vmem [#allocation0], 8
    %v903 = vld [vmem:[%s902] sm:$0xff]
    %s904 = scalar_lea.vmem [#allocation1], 8
    %v905 = vld [vmem:[%s904] sm:$0xff]
    %v906 = vmul.f32 %v905, %v894
    %907 = vadd.xlane.f32.xlu0 %v906
    %v908 = vpop.xlane.xlu0 %907
    %v909 = vsub.f32 %v903, %v908
    %v910 = vmul.f32 %v909, %v901
    %vm911 = vcmask 1047559
    %vm912 = vmand %vm892, %vm911
    %v913 = vsel %vm912, %v910, 0.0
    %v914 = vadd.f32 %v905, %v913
    %s915 = scalar_lea.vmem [#allocation1], 8
    %916 = vst [vmem:[%s915] sm:$0xff] %v914
    %s917 = scalar_lea.vmem [#allocation0], 16
    %v918 = vld [vmem:[%s917] sm:$0xff]
    %s919 = scalar_lea.vmem [#allocation1], 16
    %v920 = vld [vmem:[%s919] sm:$0xff]
    %v921 = vmul.f32 %v920, %v894
    %922 = vadd.xlane.f32.xlu0 %v921
    %v923 = vpop.xlane.xlu0 %922
    %v924 = vsub.f32 %v918, %v923
    %v925 = vmul.f32 %v924, %v901
    %v926 = vsel %vm892, %v925, 0.0
    %v927 = vadd.f32 %v920, %v926
    %s928 = scalar_lea.vmem [#allocation1], 16
    %929 = vst [vmem:[%s928] sm:$0xff] %v927
    %s930 = scalar_lea.vmem [#allocation0], 24
    %v931 = vld [vmem:[%s930] sm:$0xff]
    %s932 = scalar_lea.vmem [#allocation1], 24
    %v933 = vld [vmem:[%s932] sm:$0xff]
    %v934 = vmul.f32 %v933, %v894
    %935 = vadd.xlane.f32.xlu0 %v934
    %v936 = vpop.xlane.xlu0 %935
    %v937 = vsub.f32 %v931, %v936
    %v938 = vmul.f32 %v937, %v901
    %v939 = vsel %vm892, %v938, 0.0
    %v940 = vadd.f32 %v933, %v939
    %s941 = scalar_lea.vmem [#allocation1], 24
    %942 = vst [vmem:[%s941] sm:$0xff] %v940
    %vm943 = vcmask 138368
    %s944 = scalar_lea.vmem [#allocation1], 16
    %v945 = vld [vmem:[%s944] ss:$0 sm:$0xff]
    %s946 = scalar_lea.vmem [#allocation0], 16
    %v947 = vld [vmem:[%s946] ss:$0 sm:$0xff]
    %v948 = vmul.f32 %v945, %v945
    %949 = vadd.xlane.f32.xlu0 %v948
    %v950 = vpop.xlane.xlu0 %949
    %v951 = vsub.f32 %v947, %v950
    %v952 = vrsqrt.pop %v951
    %s953 = scalar_lea.vmem [#allocation0], 16
    %v954 = vld [vmem:[%s953] sm:$0xff]
    %s955 = scalar_lea.vmem [#allocation1], 16
    %v956 = vld [vmem:[%s955] sm:$0xff]
    %v957 = vmul.f32 %v956, %v945
    %958 = vadd.xlane.f32.xlu0 %v957
    %v959 = vpop.xlane.xlu0 %958
    %v960 = vsub.f32 %v954, %v959
    %v961 = vmul.f32 %v960, %v952
    %v962 = vsel %vm943, %v961, 0.0
    %v963 = vadd.f32 %v956, %v962
    %s964 = scalar_lea.vmem [#allocation1], 16
    %965 = vst [vmem:[%s964] sm:$0xff] %v963
    %s966 = scalar_lea.vmem [#allocation0], 24
    %v967 = vld [vmem:[%s966] sm:$0xff]
    %s968 = scalar_lea.vmem [#allocation1], 24
    %v969 = vld [vmem:[%s968] sm:$0xff]
    %v970 = vmul.f32 %v969, %v945
    %971 = vadd.xlane.f32.xlu0 %v970
    %v972 = vpop.xlane.xlu0 %971
    %v973 = vsub.f32 %v967, %v972
    %v974 = vmul.f32 %v973, %v952
    %v975 = vsel %vm943, %v974, 0.0
    %v976 = vadd.f32 %v969, %v975
    %s977 = scalar_lea.vmem [#allocation1], 24
    %978 = vst [vmem:[%s977] sm:$0xff] %v976
    %vm979 = vcmask 146568
    %s980 = scalar_lea.vmem [#allocation1], 17
    %v981 = vld [vmem:[%s980] ss:$0 sm:$0xff]
    %s982 = scalar_lea.vmem [#allocation0], 17
    %v983 = vld [vmem:[%s982] ss:$0 sm:$0xff]
    %v984 = vmul.f32 %v981, %v981
    %985 = vadd.xlane.f32.xlu0 %v984
    %v986 = vpop.xlane.xlu0 %985
    %v987 = vsub.f32 %v983, %v986
    %v988 = vrsqrt.pop %v987
    %s989 = scalar_lea.vmem [#allocation0], 16
    %v990 = vld [vmem:[%s989] sm:$0xff]
    %s991 = scalar_lea.vmem [#allocation1], 16
    %v992 = vld [vmem:[%s991] sm:$0xff]
    %v993 = vmul.f32 %v992, %v981
    %994 = vadd.xlane.f32.xlu0 %v993
    %v995 = vpop.xlane.xlu0 %994
    %v996 = vsub.f32 %v990, %v995
    %v997 = vmul.f32 %v996, %v988
    %vm998 = vcmask 1047553
    %vm999 = vmand %vm979, %vm998
    %v1000 = vsel %vm999, %v997, 0.0
    %v1001 = vadd.f32 %v992, %v1000
    %s1002 = scalar_lea.vmem [#allocation1], 16
    %1003 = vst [vmem:[%s1002] sm:$0xff] %v1001
    %s1004 = scalar_lea.vmem [#allocation0], 24
    %v1005 = vld [vmem:[%s1004] sm:$0xff]
    %s1006 = scalar_lea.vmem [#allocation1], 24
    %v1007 = vld [vmem:[%s1006] sm:$0xff]
    %v1008 = vmul.f32 %v1007, %v981
    %1009 = vadd.xlane.f32.xlu0 %v1008
    %v1010 = vpop.xlane.xlu0 %1009
    %v1011 = vsub.f32 %v1005, %v1010
    %v1012 = vmul.f32 %v1011, %v988
    %v1013 = vsel %vm979, %v1012, 0.0
    %v1014 = vadd.f32 %v1007, %v1013
    %s1015 = scalar_lea.vmem [#allocation1], 24
    %1016 = vst [vmem:[%s1015] sm:$0xff] %v1014
    %vm1017 = vcmask 154768
    %s1018 = scalar_lea.vmem [#allocation1], 18
    %v1019 = vld [vmem:[%s1018] ss:$0 sm:$0xff]
    %s1020 = scalar_lea.vmem [#allocation0], 18
    %v1021 = vld [vmem:[%s1020] ss:$0 sm:$0xff]
    %v1022 = vmul.f32 %v1019, %v1019
    %1023 = vadd.xlane.f32.xlu0 %v1022
    %v1024 = vpop.xlane.xlu0 %1023
    %v1025 = vsub.f32 %v1021, %v1024
    %v1026 = vrsqrt.pop %v1025
    %s1027 = scalar_lea.vmem [#allocation0], 16
    %v1028 = vld [vmem:[%s1027] sm:$0xff]
    %s1029 = scalar_lea.vmem [#allocation1], 16
    %v1030 = vld [vmem:[%s1029] sm:$0xff]
    %v1031 = vmul.f32 %v1030, %v1019
    %1032 = vadd.xlane.f32.xlu0 %v1031
    %v1033 = vpop.xlane.xlu0 %1032
    %v1034 = vsub.f32 %v1028, %v1033
    %v1035 = vmul.f32 %v1034, %v1026
    %vm1036 = vcmask 1047554
    %vm1037 = vmand %vm1017, %vm1036
    %v1038 = vsel %vm1037, %v1035, 0.0
    %v1039 = vadd.f32 %v1030, %v1038
    %s1040 = scalar_lea.vmem [#allocation1], 16
    %1041 = vst [vmem:[%s1040] sm:$0xff] %v1039
    %s1042 = scalar_lea.vmem [#allocation0], 24
    %v1043 = vld [vmem:[%s1042] sm:$0xff]
    %s1044 = scalar_lea.vmem [#allocation1], 24
    %v1045 = vld [vmem:[%s1044] sm:$0xff]
    %v1046 = vmul.f32 %v1045, %v1019
    %1047 = vadd.xlane.f32.xlu0 %v1046
    %v1048 = vpop.xlane.xlu0 %1047
    %v1049 = vsub.f32 %v1043, %v1048
    %v1050 = vmul.f32 %v1049, %v1026
    %v1051 = vsel %vm1017, %v1050, 0.0
    %v1052 = vadd.f32 %v1045, %v1051
    %s1053 = scalar_lea.vmem [#allocation1], 24
    %1054 = vst [vmem:[%s1053] sm:$0xff] %v1052
    %vm1055 = vcmask 162968
    %s1056 = scalar_lea.vmem [#allocation1], 19
    %v1057 = vld [vmem:[%s1056] ss:$0 sm:$0xff]
    %s1058 = scalar_lea.vmem [#allocation0], 19
    %v1059 = vld [vmem:[%s1058] ss:$0 sm:$0xff]
    %v1060 = vmul.f32 %v1057, %v1057
    %1061 = vadd.xlane.f32.xlu0 %v1060
    %v1062 = vpop.xlane.xlu0 %1061
    %v1063 = vsub.f32 %v1059, %v1062
    %v1064 = vrsqrt.pop %v1063
    %s1065 = scalar_lea.vmem [#allocation0], 16
    %v1066 = vld [vmem:[%s1065] sm:$0xff]
    %s1067 = scalar_lea.vmem [#allocation1], 16
    %v1068 = vld [vmem:[%s1067] sm:$0xff]
    %v1069 = vmul.f32 %v1068, %v1057
    %1070 = vadd.xlane.f32.xlu0 %v1069
    %v1071 = vpop.xlane.xlu0 %1070
    %v1072 = vsub.f32 %v1066, %v1071
    %v1073 = vmul.f32 %v1072, %v1064
    %vm1074 = vcmask 1047555
    %vm1075 = vmand %vm1055, %vm1074
    %v1076 = vsel %vm1075, %v1073, 0.0
    %v1077 = vadd.f32 %v1068, %v1076
    %s1078 = scalar_lea.vmem [#allocation1], 16
    %1079 = vst [vmem:[%s1078] sm:$0xff] %v1077
    %s1080 = scalar_lea.vmem [#allocation0], 24
    %v1081 = vld [vmem:[%s1080] sm:$0xff]
    %s1082 = scalar_lea.vmem [#allocation1], 24
    %v1083 = vld [vmem:[%s1082] sm:$0xff]
    %v1084 = vmul.f32 %v1083, %v1057
    %1085 = vadd.xlane.f32.xlu0 %v1084
    %v1086 = vpop.xlane.xlu0 %1085
    %v1087 = vsub.f32 %v1081, %v1086
    %v1088 = vmul.f32 %v1087, %v1064
    %v1089 = vsel %vm1055, %v1088, 0.0
    %v1090 = vadd.f32 %v1083, %v1089
    %s1091 = scalar_lea.vmem [#allocation1], 24
    %1092 = vst [vmem:[%s1091] sm:$0xff] %v1090
    %vm1093 = vcmask 171168
    %s1094 = scalar_lea.vmem [#allocation1], 20
    %v1095 = vld [vmem:[%s1094] ss:$0 sm:$0xff]
    %s1096 = scalar_lea.vmem [#allocation0], 20
    %v1097 = vld [vmem:[%s1096] ss:$0 sm:$0xff]
    %v1098 = vmul.f32 %v1095, %v1095
    %1099 = vadd.xlane.f32.xlu0 %v1098
    %v1100 = vpop.xlane.xlu0 %1099
    %v1101 = vsub.f32 %v1097, %v1100
    %v1102 = vrsqrt.pop %v1101
    %s1103 = scalar_lea.vmem [#allocation0], 16
    %v1104 = vld [vmem:[%s1103] sm:$0xff]
    %s1105 = scalar_lea.vmem [#allocation1], 16
    %v1106 = vld [vmem:[%s1105] sm:$0xff]
    %v1107 = vmul.f32 %v1106, %v1095
    %1108 = vadd.xlane.f32.xlu0 %v1107
    %v1109 = vpop.xlane.xlu0 %1108
    %v1110 = vsub.f32 %v1104, %v1109
    %v1111 = vmul.f32 %v1110, %v1102
    %vm1112 = vcmask 1047556
    %vm1113 = vmand %vm1093, %vm1112
    %v1114 = vsel %vm1113, %v1111, 0.0
    %v1115 = vadd.f32 %v1106, %v1114
    %s1116 = scalar_lea.vmem [#allocation1], 16
    %1117 = vst [vmem:[%s1116] sm:$0xff] %v1115
    %s1118 = scalar_lea.vmem [#allocation0], 24
    %v1119 = vld [vmem:[%s1118] sm:$0xff]
    %s1120 = scalar_lea.vmem [#allocation1], 24
    %v1121 = vld [vmem:[%s1120] sm:$0xff]
    %v1122 = vmul.f32 %v1121, %v1095
    %1123 = vadd.xlane.f32.xlu0 %v1122
    %v1124 = vpop.xlane.xlu0 %1123
    %v1125 = vsub.f32 %v1119, %v1124
    %v1126 = vmul.f32 %v1125, %v1102
    %v1127 = vsel %vm1093, %v1126, 0.0
    %v1128 = vadd.f32 %v1121, %v1127
    %s1129 = scalar_lea.vmem [#allocation1], 24
    %1130 = vst [vmem:[%s1129] sm:$0xff] %v1128
    %vm1131 = vcmask 179368
    %s1132 = scalar_lea.vmem [#allocation1], 21
    %v1133 = vld [vmem:[%s1132] ss:$0 sm:$0xff]
    %s1134 = scalar_lea.vmem [#allocation0], 21
    %v1135 = vld [vmem:[%s1134] ss:$0 sm:$0xff]
    %v1136 = vmul.f32 %v1133, %v1133
    %1137 = vadd.xlane.f32.xlu0 %v1136
    %v1138 = vpop.xlane.xlu0 %1137
    %v1139 = vsub.f32 %v1135, %v1138
    %v1140 = vrsqrt.pop %v1139
    %s1141 = scalar_lea.vmem [#allocation0], 16
    %v1142 = vld [vmem:[%s1141] sm:$0xff]
    %s1143 = scalar_lea.vmem [#allocation1], 16
    %v1144 = vld [vmem:[%s1143] sm:$0xff]
    %v1145 = vmul.f32 %v1144, %v1133
    %1146 = vadd.xlane.f32.xlu0 %v1145
    %v1147 = vpop.xlane.xlu0 %1146
    %v1148 = vsub.f32 %v1142, %v1147
    %v1149 = vmul.f32 %v1148, %v1140
    %vm1150 = vcmask 1047557
    %vm1151 = vmand %vm1131, %vm1150
    %v1152 = vsel %vm1151, %v1149, 0.0
    %v1153 = vadd.f32 %v1144, %v1152
    %s1154 = scalar_lea.vmem [#allocation1], 16
    %1155 = vst [vmem:[%s1154] sm:$0xff] %v1153
    %s1156 = scalar_lea.vmem [#allocation0], 24
    %v1157 = vld [vmem:[%s1156] sm:$0xff]
    %s1158 = scalar_lea.vmem [#allocation1], 24
    %v1159 = vld [vmem:[%s1158] sm:$0xff]
    %v1160 = vmul.f32 %v1159, %v1133
    %1161 = vadd.xlane.f32.xlu0 %v1160
    %v1162 = vpop.xlane.xlu0 %1161
    %v1163 = vsub.f32 %v1157, %v1162
    %v1164 = vmul.f32 %v1163, %v1140
    %v1165 = vsel %vm1131, %v1164, 0.0
    %v1166 = vadd.f32 %v1159, %v1165
    %s1167 = scalar_lea.vmem [#allocation1], 24
    %1168 = vst [vmem:[%s1167] sm:$0xff] %v1166
    %vm1169 = vcmask 187568
    %s1170 = scalar_lea.vmem [#allocation1], 22
    %v1171 = vld [vmem:[%s1170] ss:$0 sm:$0xff]
    %s1172 = scalar_lea.vmem [#allocation0], 22
    %v1173 = vld [vmem:[%s1172] ss:$0 sm:$0xff]
    %v1174 = vmul.f32 %v1171, %v1171
    %1175 = vadd.xlane.f32.xlu0 %v1174
    %v1176 = vpop.xlane.xlu0 %1175
    %v1177 = vsub.f32 %v1173, %v1176
    %v1178 = vrsqrt.pop %v1177
    %s1179 = scalar_lea.vmem [#allocation0], 16
    %v1180 = vld [vmem:[%s1179] sm:$0xff]
    %s1181 = scalar_lea.vmem [#allocation1], 16
    %v1182 = vld [vmem:[%s1181] sm:$0xff]
    %v1183 = vmul.f32 %v1182, %v1171
    %1184 = vadd.xlane.f32.xlu0 %v1183
    %v1185 = vpop.xlane.xlu0 %1184
    %v1186 = vsub.f32 %v1180, %v1185
    %v1187 = vmul.f32 %v1186, %v1178
    %vm1188 = vcmask 1047558
    %vm1189 = vmand %vm1169, %vm1188
    %v1190 = vsel %vm1189, %v1187, 0.0
    %v1191 = vadd.f32 %v1182, %v1190
    %s1192 = scalar_lea.vmem [#allocation1], 16
    %1193 = vst [vmem:[%s1192] sm:$0xff] %v1191
    %s1194 = scalar_lea.vmem [#allocation0], 24
    %v1195 = vld [vmem:[%s1194] sm:$0xff]
    %s1196 = scalar_lea.vmem [#allocation1], 24
    %v1197 = vld [vmem:[%s1196] sm:$0xff]
    %v1198 = vmul.f32 %v1197, %v1171
    %1199 = vadd.xlane.f32.xlu0 %v1198
    %v1200 = vpop.xlane.xlu0 %1199
    %v1201 = vsub.f32 %v1195, %v1200
    %v1202 = vmul.f32 %v1201, %v1178
    %v1203 = vsel %vm1169, %v1202, 0.0
    %v1204 = vadd.f32 %v1197, %v1203
    %s1205 = scalar_lea.vmem [#allocation1], 24
    %1206 = vst [vmem:[%s1205] sm:$0xff] %v1204
    %vm1207 = vcmask 195768
    %s1208 = scalar_lea.vmem [#allocation1], 23
    %v1209 = vld [vmem:[%s1208] ss:$0 sm:$0xff]
    %s1210 = scalar_lea.vmem [#allocation0], 23
    %v1211 = vld [vmem:[%s1210] ss:$0 sm:$0xff]
    %v1212 = vmul.f32 %v1209, %v1209
    %1213 = vadd.xlane.f32.xlu0 %v1212
    %v1214 = vpop.xlane.xlu0 %1213
    %v1215 = vsub.f32 %v1211, %v1214
    %v1216 = vrsqrt.pop %v1215
    %s1217 = scalar_lea.vmem [#allocation0], 16
    %v1218 = vld [vmem:[%s1217] sm:$0xff]
    %s1219 = scalar_lea.vmem [#allocation1], 16
    %v1220 = vld [vmem:[%s1219] sm:$0xff]
    %v1221 = vmul.f32 %v1220, %v1209
    %1222 = vadd.xlane.f32.xlu0 %v1221
    %v1223 = vpop.xlane.xlu0 %1222
    %v1224 = vsub.f32 %v1218, %v1223
    %v1225 = vmul.f32 %v1224, %v1216
    %vm1226 = vcmask 1047559
    %vm1227 = vmand %vm1207, %vm1226
    %v1228 = vsel %vm1227, %v1225, 0.0
    %v1229 = vadd.f32 %v1220, %v1228
    %s1230 = scalar_lea.vmem [#allocation1], 16
    %1231 = vst [vmem:[%s1230] sm:$0xff] %v1229
    %s1232 = scalar_lea.vmem [#allocation0], 24
    %v1233 = vld [vmem:[%s1232] sm:$0xff]
    %s1234 = scalar_lea.vmem [#allocation1], 24
    %v1235 = vld [vmem:[%s1234] sm:$0xff]
    %v1236 = vmul.f32 %v1235, %v1209
    %1237 = vadd.xlane.f32.xlu0 %v1236
    %v1238 = vpop.xlane.xlu0 %1237
    %v1239 = vsub.f32 %v1233, %v1238
    %v1240 = vmul.f32 %v1239, %v1216
    %v1241 = vsel %vm1207, %v1240, 0.0
    %v1242 = vadd.f32 %v1235, %v1241
    %s1243 = scalar_lea.vmem [#allocation1], 24
    %1244 = vst [vmem:[%s1243] sm:$0xff] %v1242
    %vm1245 = vcmask 203968
    %s1246 = scalar_lea.vmem [#allocation1], 24
    %v1247 = vld [vmem:[%s1246] ss:$0 sm:$0xff]
    %s1248 = scalar_lea.vmem [#allocation0], 24
    %v1249 = vld [vmem:[%s1248] ss:$0 sm:$0xff]
    %v1250 = vmul.f32 %v1247, %v1247
    %1251 = vadd.xlane.f32.xlu0 %v1250
    %v1252 = vpop.xlane.xlu0 %1251
    %v1253 = vsub.f32 %v1249, %v1252
    %v1254 = vrsqrt.pop %v1253
    %s1255 = scalar_lea.vmem [#allocation0], 24
    %v1256 = vld [vmem:[%s1255] sm:$0xff]
    %s1257 = scalar_lea.vmem [#allocation1], 24
    %v1258 = vld [vmem:[%s1257] sm:$0xff]
    %v1259 = vmul.f32 %v1258, %v1247
    %1260 = vadd.xlane.f32.xlu0 %v1259
    %v1261 = vpop.xlane.xlu0 %1260
    %v1262 = vsub.f32 %v1256, %v1261
    %v1263 = vmul.f32 %v1262, %v1254
    %v1264 = vsel %vm1245, %v1263, 0.0
    %v1265 = vadd.f32 %v1258, %v1264
    %s1266 = scalar_lea.vmem [#allocation1], 24
    %1267 = vst [vmem:[%s1266] sm:$0xff] %v1265
    %vm1268 = vcmask 212168
    %s1269 = scalar_lea.vmem [#allocation1], 25
    %v1270 = vld [vmem:[%s1269] ss:$0 sm:$0xff]
    %s1271 = scalar_lea.vmem [#allocation0], 25
    %v1272 = vld [vmem:[%s1271] ss:$0 sm:$0xff]
    %v1273 = vmul.f32 %v1270, %v1270
    %1274 = vadd.xlane.f32.xlu0 %v1273
    %v1275 = vpop.xlane.xlu0 %1274
    %v1276 = vsub.f32 %v1272, %v1275
    %v1277 = vrsqrt.pop %v1276
    %s1278 = scalar_lea.vmem [#allocation0], 24
    %v1279 = vld [vmem:[%s1278] sm:$0xff]
    %s1280 = scalar_lea.vmem [#allocation1], 24
    %v1281 = vld [vmem:[%s1280] sm:$0xff]
    %v1282 = vmul.f32 %v1281, %v1270
    %1283 = vadd.xlane.f32.xlu0 %v1282
    %v1284 = vpop.xlane.xlu0 %1283
    %v1285 = vsub.f32 %v1279, %v1284
    %v1286 = vmul.f32 %v1285, %v1277
    %vm1287 = vcmask 1047553
    %vm1288 = vmand %vm1268, %vm1287
    %v1289 = vsel %vm1288, %v1286, 0.0
    %v1290 = vadd.f32 %v1281, %v1289
    %s1291 = scalar_lea.vmem [#allocation1], 24
    %1292 = vst [vmem:[%s1291] sm:$0xff] %v1290
    %vm1293 = vcmask 220368
    %s1294 = scalar_lea.vmem [#allocation1], 26
    %v1295 = vld [vmem:[%s1294] ss:$0 sm:$0xff]
    %s1296 = scalar_lea.vmem [#allocation0], 26
    %v1297 = vld [vmem:[%s1296] ss:$0 sm:$0xff]
    %v1298 = vmul.f32 %v1295, %v1295
    %1299 = vadd.xlane.f32.xlu0 %v1298
    %v1300 = vpop.xlane.xlu0 %1299
    %v1301 = vsub.f32 %v1297, %v1300
    %v1302 = vrsqrt.pop %v1301
    %s1303 = scalar_lea.vmem [#allocation0], 24
    %v1304 = vld [vmem:[%s1303] sm:$0xff]
    %s1305 = scalar_lea.vmem [#allocation1], 24
    %v1306 = vld [vmem:[%s1305] sm:$0xff]
    %v1307 = vmul.f32 %v1306, %v1295
    %1308 = vadd.xlane.f32.xlu0 %v1307
    %v1309 = vpop.xlane.xlu0 %1308
    %v1310 = vsub.f32 %v1304, %v1309
    %v1311 = vmul.f32 %v1310, %v1302
    %vm1312 = vcmask 1047554
    %vm1313 = vmand %vm1293, %vm1312
    %v1314 = vsel %vm1313, %v1311, 0.0
    %v1315 = vadd.f32 %v1306, %v1314
    %s1316 = scalar_lea.vmem [#allocation1], 24
    %1317 = vst [vmem:[%s1316] sm:$0xff] %v1315
    %vm1318 = vcmask 228568
    %s1319 = scalar_lea.vmem [#allocation1], 27
    %v1320 = vld [vmem:[%s1319] ss:$0 sm:$0xff]
    %s1321 = scalar_lea.vmem [#allocation0], 27
    %v1322 = vld [vmem:[%s1321] ss:$0 sm:$0xff]
    %v1323 = vmul.f32 %v1320, %v1320
    %1324 = vadd.xlane.f32.xlu0 %v1323
    %v1325 = vpop.xlane.xlu0 %1324
    %v1326 = vsub.f32 %v1322, %v1325
    %v1327 = vrsqrt.pop %v1326
    %s1328 = scalar_lea.vmem [#allocation0], 24
    %v1329 = vld [vmem:[%s1328] sm:$0xff]
    %s1330 = scalar_lea.vmem [#allocation1], 24
    %v1331 = vld [vmem:[%s1330] sm:$0xff]
    %v1332 = vmul.f32 %v1331, %v1320
    %1333 = vadd.xlane.f32.xlu0 %v1332
    %v1334 = vpop.xlane.xlu0 %1333
    %v1335 = vsub.f32 %v1329, %v1334
    %v1336 = vmul.f32 %v1335, %v1327
    %vm1337 = vcmask 1047555
    %vm1338 = vmand %vm1318, %vm1337
    %v1339 = vsel %vm1338, %v1336, 0.0
    %v1340 = vadd.f32 %v1331, %v1339
    %s1341 = scalar_lea.vmem [#allocation1], 24
    %1342 = vst [vmem:[%s1341] sm:$0xff] %v1340
    %vm1343 = vcmask 236768
    %s1344 = scalar_lea.vmem [#allocation1], 28
    %v1345 = vld [vmem:[%s1344] ss:$0 sm:$0xff]
    %s1346 = scalar_lea.vmem [#allocation0], 28
    %v1347 = vld [vmem:[%s1346] ss:$0 sm:$0xff]
    %v1348 = vmul.f32 %v1345, %v1345
    %1349 = vadd.xlane.f32.xlu0 %v1348
    %v1350 = vpop.xlane.xlu0 %1349
    %v1351 = vsub.f32 %v1347, %v1350
    %v1352 = vrsqrt.pop %v1351
    %s1353 = scalar_lea.vmem [#allocation0], 24
    %v1354 = vld [vmem:[%s1353] sm:$0xff]
    %s1355 = scalar_lea.vmem [#allocation1], 24
    %v1356 = vld [vmem:[%s1355] sm:$0xff]
    %v1357 = vmul.f32 %v1356, %v1345
    %1358 = vadd.xlane.f32.xlu0 %v1357
    %v1359 = vpop.xlane.xlu0 %1358
    %v1360 = vsub.f32 %v1354, %v1359
    %v1361 = vmul.f32 %v1360, %v1352
    %vm1362 = vcmask 1047556
    %vm1363 = vmand %vm1343, %vm1362
    %v1364 = vsel %vm1363, %v1361, 0.0
    %v1365 = vadd.f32 %v1356, %v1364
    %s1366 = scalar_lea.vmem [#allocation1], 24
    %1367 = vst [vmem:[%s1366] sm:$0xff] %v1365
    %vm1368 = vcmask 244968
    %s1369 = scalar_lea.vmem [#allocation1], 29
    %v1370 = vld [vmem:[%s1369] ss:$0 sm:$0xff]
    %s1371 = scalar_lea.vmem [#allocation0], 29
    %v1372 = vld [vmem:[%s1371] ss:$0 sm:$0xff]
    %v1373 = vmul.f32 %v1370, %v1370
    %1374 = vadd.xlane.f32.xlu0 %v1373
    %v1375 = vpop.xlane.xlu0 %1374
    %v1376 = vsub.f32 %v1372, %v1375
    %v1377 = vrsqrt.pop %v1376
    %s1378 = scalar_lea.vmem [#allocation0], 24
    %v1379 = vld [vmem:[%s1378] sm:$0xff]
    %s1380 = scalar_lea.vmem [#allocation1], 24
    %v1381 = vld [vmem:[%s1380] sm:$0xff]
    %v1382 = vmul.f32 %v1381, %v1370
    %1383 = vadd.xlane.f32.xlu0 %v1382
    %v1384 = vpop.xlane.xlu0 %1383
    %v1385 = vsub.f32 %v1379, %v1384
    %v1386 = vmul.f32 %v1385, %v1377
    %vm1387 = vcmask 1047557
    %vm1388 = vmand %vm1368, %vm1387
    %v1389 = vsel %vm1388, %v1386, 0.0
    %v1390 = vadd.f32 %v1381, %v1389
    %s1391 = scalar_lea.vmem [#allocation1], 24
    %1392 = vst [vmem:[%s1391] sm:$0xff] %v1390
    %vm1393 = vcmask 253168
    %s1394 = scalar_lea.vmem [#allocation1], 30
    %v1395 = vld [vmem:[%s1394] ss:$0 sm:$0xff]
    %s1396 = scalar_lea.vmem [#allocation0], 30
    %v1397 = vld [vmem:[%s1396] ss:$0 sm:$0xff]
    %v1398 = vmul.f32 %v1395, %v1395
    %1399 = vadd.xlane.f32.xlu0 %v1398
    %v1400 = vpop.xlane.xlu0 %1399
    %v1401 = vsub.f32 %v1397, %v1400
    %v1402 = vrsqrt.pop %v1401
    %s1403 = scalar_lea.vmem [#allocation0], 24
    %v1404 = vld [vmem:[%s1403] sm:$0xff]
    %s1405 = scalar_lea.vmem [#allocation1], 24
    %v1406 = vld [vmem:[%s1405] sm:$0xff]
    %v1407 = vmul.f32 %v1406, %v1395
    %1408 = vadd.xlane.f32.xlu0 %v1407
    %v1409 = vpop.xlane.xlu0 %1408
    %v1410 = vsub.f32 %v1404, %v1409
    %v1411 = vmul.f32 %v1410, %v1402
    %vm1412 = vcmask 1047558
    %vm1413 = vmand %vm1393, %vm1412
    %v1414 = vsel %vm1413, %v1411, 0.0
    %v1415 = vadd.f32 %v1406, %v1414
    %s1416 = scalar_lea.vmem [#allocation1], 24
    %1417 = vst [vmem:[%s1416] sm:$0xff] %v1415
    %vm1418 = vcmask 261368
    %s1419 = scalar_lea.vmem [#allocation1], 31
    %v1420 = vld [vmem:[%s1419] ss:$0 sm:$0xff]
    %s1421 = scalar_lea.vmem [#allocation0], 31
    %v1422 = vld [vmem:[%s1421] ss:$0 sm:$0xff]
    %v1423 = vmul.f32 %v1420, %v1420
    %1424 = vadd.xlane.f32.xlu0 %v1423
    %v1425 = vpop.xlane.xlu0 %1424
    %v1426 = vsub.f32 %v1422, %v1425
    %v1427 = vrsqrt.pop %v1426
    %s1428 = scalar_lea.vmem [#allocation0], 24
    %v1429 = vld [vmem:[%s1428] sm:$0xff]
    %s1430 = scalar_lea.vmem [#allocation1], 24
    %v1431 = vld [vmem:[%s1430] sm:$0xff]
    %v1432 = vmul.f32 %v1431, %v1420
    %1433 = vadd.xlane.f32.xlu0 %v1432
    %v1434 = vpop.xlane.xlu0 %1433
    %v1435 = vsub.f32 %v1429, %v1434
    %v1436 = vmul.f32 %v1435, %v1427
    %vm1437 = vcmask 1047559
    %vm1438 = vmand %vm1418, %vm1437
    %v1439 = vsel %vm1438, %v1436, 0.0
    %v1440 = vadd.f32 %v1431, %v1439
    %s1441 = scalar_lea.vmem [#allocation1], 24
    %1442 = vst [vmem:[%s1441] sm:$0xff] %v1440
    // Predicated region
    $region36: #{custom-call.6} parent=1 // pred_check
      _
    $region37: #{custom-call.6} parent=1 // pred_check_branch
      %1444 = sbr.rel (0) target = $region39
    $region38: #{custom-call.6} parent=1 // pred_region
      // Predicated region
      $region40: #{custom-call.6} parent=38 // pred_check
        _
      $region41: #{custom-call.6} parent=38 // pred_check_branch
        %1446 = sbr.rel (0) target = $region43
      $region42: #{custom-call.6} parent=38 // pred_region
        // Predicated region
        $region55: #{custom-call.6} parent=42 // pred_check
          _
        $region56: #{custom-call.6} parent=42 // pred_check_branch
          %1467 = sbr.rel (0) target = $region58
        $region57: #{custom-call.6} parent=42 // pred_region
          loop: start=0, step=1, limit=1
          $region59: #{custom-call.6} parent=57 // loop_pre_header
            _
          $region60: #{custom-call.6} parent=57 // loop_header
            %s1469 = sphi 0, %s1473
            %p1470 = scmp.ge.s32.totalorder %s1469, 1
            %s1474 = sphi [#allocation1], [#allocation1]
            %s1475 = sphi %s1, %s1
          $region61: #{custom-call.6} parent=57 // loop_header_branch
            %1472 = sbr.rel (%p1470) target = $region65
          $region62: #{custom-call.6} parent=57 // loop_body
            %v1476 = vld [vmem:[%s1474] sm:$0xff]
            %1477 = vst [vmem:[%s1475] sm:$0xff] %v1476
            %v1478 = vld [vmem:[%s1474 + $0x8] sm:$0xff]
            %1479 = vst [vmem:[%s1475 + $0x8] sm:$0xff] %v1478
            %v1480 = vld [vmem:[%s1474 + $0x10] sm:$0xff]
            %1481 = vst [vmem:[%s1475 + $0x10] sm:$0xff] %v1480
            %v1482 = vld [vmem:[%s1474 + $0x18] sm:$0xff]
            %1483 = vst [vmem:[%s1475 + $0x18] sm:$0xff] %v1482
          $region63: #{custom-call.6} parent=57 // loop_footer
            %s1473 = sadd.s32 1, %s1469
          $region64: #{custom-call.6} parent=57 // loop_footer_branch
            %1468 = sbr.rel target = $region60
          $region65: #{custom-call.6} parent=57 // loop_exit
            _
        $region58: #{custom-call.6} parent=42 // pred_fallthru
          _
        // Predicated region
        $region66: #{custom-call.6} parent=42 // pred_check
          _
        $region67: #{custom-call.6} parent=42 // pred_check_branch
          %1485 = sbr.rel target = $region69
        $region68: #{custom-call.6} parent=42 // pred_region
          _
        $region69: #{custom-call.6} parent=42 // pred_fallthru
          _
      $region43: #{custom-call.6} parent=38 // pred_fallthru
        _
      // Predicated region
      $region44: #{custom-call.6} parent=38 // pred_check
        _
      $region45: #{custom-call.6} parent=38 // pred_check_branch
        %1448 = sbr.rel target = $region47
      $region46: #{custom-call.6} parent=38 // pred_region
        loop: start=0, step=1, limit=1
        $region48: #{custom-call.6} parent=46 // loop_pre_header
          _
        $region49: #{custom-call.6} parent=46 // loop_header
          %s1451 = sphi 0, %s1455
          %p1452 = scmp.ge.s32.totalorder %s1451, 1
          %s1456 = sphi [#allocation1], [#allocation1]
          %s1457 = sphi %s1, %s1
        $region50: #{custom-call.6} parent=46 // loop_header_branch
          %1454 = sbr.rel (%p1452) target = $region54
        $region51: #{custom-call.6} parent=46 // loop_body
          %v1458 = vld [vmem:[%s1456] sm:$0xff]
          %1459 = vst [vmem:[%s1457] sm:$0xff] %v1458
          %v1460 = vld [vmem:[%s1456 + $0x8] sm:$0xff]
          %1461 = vst [vmem:[%s1457 + $0x8] sm:$0xff] %v1460
          %v1462 = vld [vmem:[%s1456 + $0x10] sm:$0xff]
          %1463 = vst [vmem:[%s1457 + $0x10] sm:$0xff] %v1462
          %v1464 = vld [vmem:[%s1456 + $0x18] sm:$0xff]
          %1465 = vst [vmem:[%s1457 + $0x18] sm:$0xff] %v1464
        $region52: #{custom-call.6} parent=46 // loop_footer
          %s1455 = sadd.s32 1, %s1451
        $region53: #{custom-call.6} parent=46 // loop_footer_branch
          %1450 = sbr.rel target = $region49
        $region54: #{custom-call.6} parent=46 // loop_exit
          _
      $region47: #{custom-call.6} parent=38 // pred_fallthru
        _
    $region39: #{custom-call.6} parent=1 // pred_fallthru
      _
    %1486 = vnop

// kernel: custom-call.7
$region0: #{custom-call.7}
  %s0 = inlined_call_operand.vmem [shape: f32[1,32,32], index: 0, kind: input, shape index: {}]
  %s1 = inlined_call_operand.vmem [shape: f32[1,32,32], index: 1, kind: output, shape index: {}]
  $region1: #{custom-call.7} parent=0
    #allocation0 [shape = 'u8[16384]{0}', space=vmem, size = 0x4000, scoped, tag = 'operand span for operand 0']
    #allocation1 [shape = 'u8[16384]{0}', space=vmem, size = 0x4000, scoped, tag = 'operand span for operand 1']
    #allocation2 [shape = 'f32[32,32]{1,0}', space=vmem, size = 0x4000, scoped, tag = 'rescaled input a']
    // Predicated region
    $region2: #{custom-call.7} parent=1 // pred_check
      _
    $region3: #{custom-call.7} parent=1 // pred_check_branch
      %3 = sbr.rel (0) target = $region5
    $region4: #{custom-call.7} parent=1 // pred_region
      // Predicated region
      $region6: #{custom-call.7} parent=4 // pred_check
        _
      $region7: #{custom-call.7} parent=4 // pred_check_branch
        %5 = sbr.rel (0) target = $region9
      $region8: #{custom-call.7} parent=4 // pred_region
        // Predicated region
        $region21: #{custom-call.7} parent=8 // pred_check
          _
        $region22: #{custom-call.7} parent=8 // pred_check_branch
          %26 = sbr.rel (0) target = $region24
        $region23: #{custom-call.7} parent=8 // pred_region
          loop: start=0, step=1, limit=1
          $region25: #{custom-call.7} parent=23 // loop_pre_header
            _
          $region26: #{custom-call.7} parent=23 // loop_header
            %s28 = sphi 0, %s32
            %p29 = scmp.ge.s32.totalorder %s28, 1
            %s33 = sphi %s0, %s0
            %s34 = sphi [#allocation0], [#allocation0]
          $region27: #{custom-call.7} parent=23 // loop_header_branch
            %31 = sbr.rel (%p29) target = $region31
          $region28: #{custom-call.7} parent=23 // loop_body
            %v35 = vld [vmem:[%s33] sm:$0xff]
            %36 = vst [vmem:[%s34] sm:$0xff] %v35
            %v37 = vld [vmem:[%s33 + $0x8] sm:$0xff]
            %38 = vst [vmem:[%s34 + $0x8] sm:$0xff] %v37
            %v39 = vld [vmem:[%s33 + $0x10] sm:$0xff]
            %40 = vst [vmem:[%s34 + $0x10] sm:$0xff] %v39
            %v41 = vld [vmem:[%s33 + $0x18] sm:$0xff]
            %42 = vst [vmem:[%s34 + $0x18] sm:$0xff] %v41
          $region29: #{custom-call.7} parent=23 // loop_footer
            %s32 = sadd.s32 1, %s28
          $region30: #{custom-call.7} parent=23 // loop_footer_branch
            %27 = sbr.rel target = $region26
          $region31: #{custom-call.7} parent=23 // loop_exit
            _
        $region24: #{custom-call.7} parent=8 // pred_fallthru
          _
        // Predicated region
        $region32: #{custom-call.7} parent=8 // pred_check
          _
        $region33: #{custom-call.7} parent=8 // pred_check_branch
          %44 = sbr.rel target = $region35
        $region34: #{custom-call.7} parent=8 // pred_region
          _
        $region35: #{custom-call.7} parent=8 // pred_fallthru
          _
      $region9: #{custom-call.7} parent=4 // pred_fallthru
        _
      // Predicated region
      $region10: #{custom-call.7} parent=4 // pred_check
        _
      $region11: #{custom-call.7} parent=4 // pred_check_branch
        %7 = sbr.rel target = $region13
      $region12: #{custom-call.7} parent=4 // pred_region
        loop: start=0, step=1, limit=1
        $region14: #{custom-call.7} parent=12 // loop_pre_header
          _
        $region15: #{custom-call.7} parent=12 // loop_header
          %s10 = sphi 0, %s14
          %p11 = scmp.ge.s32.totalorder %s10, 1
          %s15 = sphi %s0, %s0
          %s16 = sphi [#allocation0], [#allocation0]
        $region16: #{custom-call.7} parent=12 // loop_header_branch
          %13 = sbr.rel (%p11) target = $region20
        $region17: #{custom-call.7} parent=12 // loop_body
          %v17 = vld [vmem:[%s15] sm:$0xff]
          %18 = vst [vmem:[%s16] sm:$0xff] %v17
          %v19 = vld [vmem:[%s15 + $0x8] sm:$0xff]
          %20 = vst [vmem:[%s16 + $0x8] sm:$0xff] %v19
          %v21 = vld [vmem:[%s15 + $0x10] sm:$0xff]
          %22 = vst [vmem:[%s16 + $0x10] sm:$0xff] %v21
          %v23 = vld [vmem:[%s15 + $0x18] sm:$0xff]
          %24 = vst [vmem:[%s16 + $0x18] sm:$0xff] %v23
        $region18: #{custom-call.7} parent=12 // loop_footer
          %s14 = sadd.s32 1, %s10
        $region19: #{custom-call.7} parent=12 // loop_footer_branch
          %9 = sbr.rel target = $region15
        $region20: #{custom-call.7} parent=12 // loop_exit
          _
      $region13: #{custom-call.7} parent=4 // pred_fallthru
        _
    $region5: #{custom-call.7} parent=1 // pred_fallthru
      _
    %45 = vnop
    %v46 = vlaneseq
    %v47 = vand.u32 %v46, 127
    %vm48 = vcmp.lt.s32.totalorder %v47, 32
    %v49 = vlaneseq
    %v50 = vshrl.u32 %v49, 7
    %vm52 = vcmp.eq.s32.totalorder %v50, %v47
    %v53 = vld [vmem:[#allocation0] sm:$0xff]
    %v54 = vsel %vm52, %v53, 0.0
    %55 = vadd.xlane.f32.xlu0 %v54
    %v56 = vpop.xlane.xlu0 %55
    %vm57 = vcmp.ge.s32.totalorder %v50, %v47
    %vm58 = vmand %vm57, %vm48
    %v59 = vsel %vm58, %v53, 0.0
    %v60 = vrcp.pop %v56
    %v61 = vmul.f32 %v59, %v60
    %62 = vst [vmem:[#allocation2] sm:$0xff] %v61
    %s63 = scalar_lea.vmem [#allocation0], 8
    %s64 = scalar_lea.vmem [#allocation2], 8
    %v65 = vlaneseq
    %v66 = vshrl.u32 %v65, 7
    %v67 = vadd.s32 %v66, 8
    %vm68 = vcmp.eq.s32.totalorder %v67, %v47
    %v69 = vld [vmem:[%s63] sm:$0xff]
    %v70 = vsel %vm68, %v69, 0.0
    %71 = vadd.xlane.f32.xlu0 %v70
    %v72 = vpop.xlane.xlu0 %71
    %vm73 = vcmp.ge.s32.totalorder %v67, %v47
    %vm74 = vmand %vm73, %vm48
    %v75 = vsel %vm74, %v69, 0.0
    %v76 = vrcp.pop %v72
    %v77 = vmul.f32 %v75, %v76
    %78 = vst [vmem:[%s64] sm:$0xff] %v77
    %s79 = scalar_lea.vmem [#allocation0], 16
    %s80 = scalar_lea.vmem [#allocation2], 16
    %v81 = vlaneseq
    %v82 = vshrl.u32 %v81, 7
    %v83 = vadd.s32 %v82, 16
    %vm84 = vcmp.eq.s32.totalorder %v83, %v47
    %v85 = vld [vmem:[%s79] sm:$0xff]
    %v86 = vsel %vm84, %v85, 0.0
    %87 = vadd.xlane.f32.xlu0 %v86
    %v88 = vpop.xlane.xlu0 %87
    %vm89 = vcmp.ge.s32.totalorder %v83, %v47
    %vm90 = vmand %vm89, %vm48
    %v91 = vsel %vm90, %v85, 0.0
    %v92 = vrcp.pop %v88
    %v93 = vmul.f32 %v91, %v92
    %94 = vst [vmem:[%s80] sm:$0xff] %v93
    %s95 = scalar_lea.vmem [#allocation0], 24
    %s96 = scalar_lea.vmem [#allocation2], 24
    %v97 = vlaneseq
    %v98 = vshrl.u32 %v97, 7
    %v99 = vadd.s32 %v98, 24
    %vm100 = vcmp.eq.s32.totalorder %v99, %v47
    %v101 = vld [vmem:[%s95] sm:$0xff]
    %v102 = vsel %vm100, %v101, 0.0
    %103 = vadd.xlane.f32.xlu0 %v102
    %v104 = vpop.xlane.xlu0 %103
    %vm105 = vcmp.ge.s32.totalorder %v99, %v47
    %vm106 = vmand %vm105, %vm48
    %v107 = vsel %vm106, %v101, 0.0
    %v108 = vrcp.pop %v104
    %v109 = vmul.f32 %v107, %v108
    %110 = vst [vmem:[%s96] sm:$0xff] %v109
    %v111 = vlaneseq
    %v112 = vand.u32 %v111, 127
    %v113 = vlaneseq
    %v114 = vshrl.u32 %v113, 7
    %vm116 = vcmp.eq.s32.totalorder %v112, %v114
    %v117 = vlaneseq
    %v118 = vand.u32 %v117, 127
    %vm119 = vcmp.eq.s32.totalorder %v118, 0
    %v120 = vsel %vm119, 1.0, -1.0
    %v121 = vsel %vm116, %v120, 0.0
    %v122 = vlaneseq
    %v123 = vand.u32 %v122, 127
    %v124 = vlaneseq
    %v125 = vshrl.u32 %v124, 7
    %v126 = vadd.s32 %v125, 8
    %vm127 = vcmp.eq.s32.totalorder %v123, %v126
    %v128 = vsel %vm127, -1.0, 0.0
    %v129 = vlaneseq
    %v130 = vand.u32 %v129, 127
    %v131 = vlaneseq
    %v132 = vshrl.u32 %v131, 7
    %v133 = vadd.s32 %v132, 16
    %vm134 = vcmp.eq.s32.totalorder %v130, %v133
    %v135 = vsel %vm134, -1.0, 0.0
    %v136 = vlaneseq
    %v137 = vand.u32 %v136, 127
    %v138 = vlaneseq
    %v139 = vshrl.u32 %v138, 7
    %v140 = vadd.s32 %v139, 24
    %vm141 = vcmp.eq.s32.totalorder %v137, %v140
    %v142 = vsel %vm141, -1.0, 0.0
    %s143 = scalar_lea.vmem [#allocation2], 1
    %v144 = vld [vmem:[%s143] ss:$0 sm:$0xff]
    %v145 = vxor.u32 %v144, 2147483648
    %v146 = vlaneseq
    %v147 = vand.u32 %v146, 127
    %vm148 = vcmp.eq.s32.totalorder %v147, 1
    %v149 = vmul.f32 %v145, %v121
    %150 = vadd.xlane.f32.xlu0 %v149
    %v151 = vpop.xlane.xlu0 %150
    %v152 = vsel %vm148, %v151, %v121
    %s153 = scalar_lea.vmem [#allocation2], 2
    %v154 = vld [vmem:[%s153] ss:$0 sm:$0xff]
    %v155 = vxor.u32 %v154, 2147483648
    %v156 = vlaneseq
    %v157 = vand.u32 %v156, 127
    %vm158 = vcmp.eq.s32.totalorder %v157, 2
    %v159 = vmul.f32 %v155, %v152
    %160 = vadd.xlane.f32.xlu0 %v159
    %v161 = vpop.xlane.xlu0 %160
    %v162 = vsel %vm158, %v161, %v152
    %s163 = scalar_lea.vmem [#allocation2], 3
    %v164 = vld [vmem:[%s163] ss:$0 sm:$0xff]
    %v165 = vxor.u32 %v164, 2147483648
    %v166 = vlaneseq
    %v167 = vand.u32 %v166, 127
    %vm168 = vcmp.eq.s32.totalorder %v167, 3
    %v169 = vmul.f32 %v165, %v162
    %170 = vadd.xlane.f32.xlu0 %v169
    %v171 = vpop.xlane.xlu0 %170
    %v172 = vsel %vm168, %v171, %v162
    %s173 = scalar_lea.vmem [#allocation2], 4
    %v174 = vld [vmem:[%s173] ss:$0 sm:$0xff]
    %v175 = vxor.u32 %v174, 2147483648
    %v176 = vlaneseq
    %v177 = vand.u32 %v176, 127
    %vm178 = vcmp.eq.s32.totalorder %v177, 4
    %v179 = vmul.f32 %v175, %v172
    %180 = vadd.xlane.f32.xlu0 %v179
    %v181 = vpop.xlane.xlu0 %180
    %v182 = vsel %vm178, %v181, %v172
    %s183 = scalar_lea.vmem [#allocation2], 5
    %v184 = vld [vmem:[%s183] ss:$0 sm:$0xff]
    %v185 = vxor.u32 %v184, 2147483648
    %v186 = vlaneseq
    %v187 = vand.u32 %v186, 127
    %vm188 = vcmp.eq.s32.totalorder %v187, 5
    %v189 = vmul.f32 %v185, %v182
    %190 = vadd.xlane.f32.xlu0 %v189
    %v191 = vpop.xlane.xlu0 %190
    %v192 = vsel %vm188, %v191, %v182
    %s193 = scalar_lea.vmem [#allocation2], 6
    %v194 = vld [vmem:[%s193] ss:$0 sm:$0xff]
    %v195 = vxor.u32 %v194, 2147483648
    %v196 = vlaneseq
    %v197 = vand.u32 %v196, 127
    %vm198 = vcmp.eq.s32.totalorder %v197, 6
    %v199 = vmul.f32 %v195, %v192
    %200 = vadd.xlane.f32.xlu0 %v199
    %v201 = vpop.xlane.xlu0 %200
    %v202 = vsel %vm198, %v201, %v192
    %s203 = scalar_lea.vmem [#allocation2], 7
    %v204 = vld [vmem:[%s203] ss:$0 sm:$0xff]
    %v205 = vxor.u32 %v204, 2147483648
    %v206 = vlaneseq
    %v207 = vand.u32 %v206, 127
    %vm208 = vcmp.eq.s32.totalorder %v207, 7
    %v209 = vmul.f32 %v205, %v202
    %210 = vadd.xlane.f32.xlu0 %v209
    %v211 = vpop.xlane.xlu0 %210
    %v212 = vsel %vm208, %v211, %v202
    %s213 = scalar_lea.vmem [#allocation2], 8
    %v214 = vld [vmem:[%s213] ss:$0 sm:$0xff]
    %v215 = vxor.u32 %v214, 2147483648
    %v216 = vlaneseq
    %v217 = vand.u32 %v216, 127
    %vm218 = vcmp.eq.s32.totalorder %v217, 8
    %v219 = vmul.f32 %v215, %v212
    %220 = vadd.xlane.f32.xlu0 %v219
    %v221 = vpop.xlane.xlu0 %220
    %v222 = vsel %vm218, %v221, %v212
    %v223 = vmul.f32 %v215, %v128
    %224 = vadd.xlane.f32.xlu0 %v223
    %v225 = vpop.xlane.xlu0 %224
    %v226 = vsel %vm218, %v225, %v128
    %s227 = scalar_lea.vmem [#allocation2], 9
    %v228 = vld [vmem:[%s227] ss:$0 sm:$0xff]
    %v229 = vxor.u32 %v228, 2147483648
    %v230 = vlaneseq
    %v231 = vand.u32 %v230, 127
    %vm232 = vcmp.eq.s32.totalorder %v231, 9
    %v233 = vmul.f32 %v229, %v222
    %234 = vadd.xlane.f32.xlu0 %v233
    %v235 = vpop.xlane.xlu0 %234
    %v236 = vsel %vm232, %v235, %v222
    %v237 = vmul.f32 %v229, %v226
    %238 = vadd.xlane.f32.xlu0 %v237
    %v239 = vpop.xlane.xlu0 %238
    %v240 = vsel %vm232, %v239, %v226
    %s241 = scalar_lea.vmem [#allocation2], 10
    %v242 = vld [vmem:[%s241] ss:$0 sm:$0xff]
    %v243 = vxor.u32 %v242, 2147483648
    %v244 = vlaneseq
    %v245 = vand.u32 %v244, 127
    %vm246 = vcmp.eq.s32.totalorder %v245, 10
    %v247 = vmul.f32 %v243, %v236
    %248 = vadd.xlane.f32.xlu0 %v247
    %v249 = vpop.xlane.xlu0 %248
    %v250 = vsel %vm246, %v249, %v236
    %v251 = vmul.f32 %v243, %v240
    %252 = vadd.xlane.f32.xlu0 %v251
    %v253 = vpop.xlane.xlu0 %252
    %v254 = vsel %vm246, %v253, %v240
    %s255 = scalar_lea.vmem [#allocation2], 11
    %v256 = vld [vmem:[%s255] ss:$0 sm:$0xff]
    %v257 = vxor.u32 %v256, 2147483648
    %v258 = vlaneseq
    %v259 = vand.u32 %v258, 127
    %vm260 = vcmp.eq.s32.totalorder %v259, 11
    %v261 = vmul.f32 %v257, %v250
    %262 = vadd.xlane.f32.xlu0 %v261
    %v263 = vpop.xlane.xlu0 %262
    %v264 = vsel %vm260, %v263, %v250
    %v265 = vmul.f32 %v257, %v254
    %266 = vadd.xlane.f32.xlu0 %v265
    %v267 = vpop.xlane.xlu0 %266
    %v268 = vsel %vm260, %v267, %v254
    %s269 = scalar_lea.vmem [#allocation2], 12
    %v270 = vld [vmem:[%s269] ss:$0 sm:$0xff]
    %v271 = vxor.u32 %v270, 2147483648
    %v272 = vlaneseq
    %v273 = vand.u32 %v272, 127
    %vm274 = vcmp.eq.s32.totalorder %v273, 12
    %v275 = vmul.f32 %v271, %v264
    %276 = vadd.xlane.f32.xlu0 %v275
    %v277 = vpop.xlane.xlu0 %276
    %v278 = vsel %vm274, %v277, %v264
    %v279 = vmul.f32 %v271, %v268
    %280 = vadd.xlane.f32.xlu0 %v279
    %v281 = vpop.xlane.xlu0 %280
    %v282 = vsel %vm274, %v281, %v268
    %s283 = scalar_lea.vmem [#allocation2], 13
    %v284 = vld [vmem:[%s283] ss:$0 sm:$0xff]
    %v285 = vxor.u32 %v284, 2147483648
    %v286 = vlaneseq
    %v287 = vand.u32 %v286, 127
    %vm288 = vcmp.eq.s32.totalorder %v287, 13
    %v289 = vmul.f32 %v285, %v278
    %290 = vadd.xlane.f32.xlu0 %v289
    %v291 = vpop.xlane.xlu0 %290
    %v292 = vsel %vm288, %v291, %v278
    %v293 = vmul.f32 %v285, %v282
    %294 = vadd.xlane.f32.xlu0 %v293
    %v295 = vpop.xlane.xlu0 %294
    %v296 = vsel %vm288, %v295, %v282
    %s297 = scalar_lea.vmem [#allocation2], 14
    %v298 = vld [vmem:[%s297] ss:$0 sm:$0xff]
    %v299 = vxor.u32 %v298, 2147483648
    %v300 = vlaneseq
    %v301 = vand.u32 %v300, 127
    %vm302 = vcmp.eq.s32.totalorder %v301, 14
    %v303 = vmul.f32 %v299, %v292
    %304 = vadd.xlane.f32.xlu0 %v303
    %v305 = vpop.xlane.xlu0 %304
    %v306 = vsel %vm302, %v305, %v292
    %v307 = vmul.f32 %v299, %v296
    %308 = vadd.xlane.f32.xlu0 %v307
    %v309 = vpop.xlane.xlu0 %308
    %v310 = vsel %vm302, %v309, %v296
    %s311 = scalar_lea.vmem [#allocation2], 15
    %v312 = vld [vmem:[%s311] ss:$0 sm:$0xff]
    %v313 = vxor.u32 %v312, 2147483648
    %v314 = vlaneseq
    %v315 = vand.u32 %v314, 127
    %vm316 = vcmp.eq.s32.totalorder %v315, 15
    %v317 = vmul.f32 %v313, %v306
    %318 = vadd.xlane.f32.xlu0 %v317
    %v319 = vpop.xlane.xlu0 %318
    %v320 = vsel %vm316, %v319, %v306
    %v321 = vmul.f32 %v313, %v310
    %322 = vadd.xlane.f32.xlu0 %v321
    %v323 = vpop.xlane.xlu0 %322
    %v324 = vsel %vm316, %v323, %v310
    %s325 = scalar_lea.vmem [#allocation2], 16
    %v326 = vld [vmem:[%s325] ss:$0 sm:$0xff]
    %v327 = vxor.u32 %v326, 2147483648
    %v328 = vlaneseq
    %v329 = vand.u32 %v328, 127
    %vm330 = vcmp.eq.s32.totalorder %v329, 16
    %v331 = vmul.f32 %v327, %v320
    %332 = vadd.xlane.f32.xlu0 %v331
    %v333 = vpop.xlane.xlu0 %332
    %v334 = vsel %vm330, %v333, %v320
    %v335 = vmul.f32 %v327, %v324
    %336 = vadd.xlane.f32.xlu0 %v335
    %v337 = vpop.xlane.xlu0 %336
    %v338 = vsel %vm330, %v337, %v324
    %v339 = vmul.f32 %v327, %v135
    %340 = vadd.xlane.f32.xlu0 %v339
    %v341 = vpop.xlane.xlu0 %340
    %v342 = vsel %vm330, %v341, %v135
    %s343 = scalar_lea.vmem [#allocation2], 17
    %v344 = vld [vmem:[%s343] ss:$0 sm:$0xff]
    %v345 = vxor.u32 %v344, 2147483648
    %v346 = vlaneseq
    %v347 = vand.u32 %v346, 127
    %vm348 = vcmp.eq.s32.totalorder %v347, 17
    %v349 = vmul.f32 %v345, %v334
    %350 = vadd.xlane.f32.xlu0 %v349
    %v351 = vpop.xlane.xlu0 %350
    %v352 = vsel %vm348, %v351, %v334
    %v353 = vmul.f32 %v345, %v338
    %354 = vadd.xlane.f32.xlu0 %v353
    %v355 = vpop.xlane.xlu0 %354
    %v356 = vsel %vm348, %v355, %v338
    %v357 = vmul.f32 %v345, %v342
    %358 = vadd.xlane.f32.xlu0 %v357
    %v359 = vpop.xlane.xlu0 %358
    %v360 = vsel %vm348, %v359, %v342
    %s361 = scalar_lea.vmem [#allocation2], 18
    %v362 = vld [vmem:[%s361] ss:$0 sm:$0xff]
    %v363 = vxor.u32 %v362, 2147483648
    %v364 = vlaneseq
    %v365 = vand.u32 %v364, 127
    %vm366 = vcmp.eq.s32.totalorder %v365, 18
    %v367 = vmul.f32 %v363, %v352
    %368 = vadd.xlane.f32.xlu0 %v367
    %v369 = vpop.xlane.xlu0 %368
    %v370 = vsel %vm366, %v369, %v352
    %v371 = vmul.f32 %v363, %v356
    %372 = vadd.xlane.f32.xlu0 %v371
    %v373 = vpop.xlane.xlu0 %372
    %v374 = vsel %vm366, %v373, %v356
    %v375 = vmul.f32 %v363, %v360
    %376 = vadd.xlane.f32.xlu0 %v375
    %v377 = vpop.xlane.xlu0 %376
    %v378 = vsel %vm366, %v377, %v360
    %s379 = scalar_lea.vmem [#allocation2], 19
    %v380 = vld [vmem:[%s379] ss:$0 sm:$0xff]
    %v381 = vxor.u32 %v380, 2147483648
    %v382 = vlaneseq
    %v383 = vand.u32 %v382, 127
    %vm384 = vcmp.eq.s32.totalorder %v383, 19
    %v385 = vmul.f32 %v381, %v370
    %386 = vadd.xlane.f32.xlu0 %v385
    %v387 = vpop.xlane.xlu0 %386
    %v388 = vsel %vm384, %v387, %v370
    %v389 = vmul.f32 %v381, %v374
    %390 = vadd.xlane.f32.xlu0 %v389
    %v391 = vpop.xlane.xlu0 %390
    %v392 = vsel %vm384, %v391, %v374
    %v393 = vmul.f32 %v381, %v378
    %394 = vadd.xlane.f32.xlu0 %v393
    %v395 = vpop.xlane.xlu0 %394
    %v396 = vsel %vm384, %v395, %v378
    %s397 = scalar_lea.vmem [#allocation2], 20
    %v398 = vld [vmem:[%s397] ss:$0 sm:$0xff]
    %v399 = vxor.u32 %v398, 2147483648
    %v400 = vlaneseq
    %v401 = vand.u32 %v400, 127
    %vm402 = vcmp.eq.s32.totalorder %v401, 20
    %v403 = vmul.f32 %v399, %v388
    %404 = vadd.xlane.f32.xlu0 %v403
    %v405 = vpop.xlane.xlu0 %404
    %v406 = vsel %vm402, %v405, %v388
    %v407 = vmul.f32 %v399, %v392
    %408 = vadd.xlane.f32.xlu0 %v407
    %v409 = vpop.xlane.xlu0 %408
    %v410 = vsel %vm402, %v409, %v392
    %v411 = vmul.f32 %v399, %v396
    %412 = vadd.xlane.f32.xlu0 %v411
    %v413 = vpop.xlane.xlu0 %412
    %v414 = vsel %vm402, %v413, %v396
    %s415 = scalar_lea.vmem [#allocation2], 21
    %v416 = vld [vmem:[%s415] ss:$0 sm:$0xff]
    %v417 = vxor.u32 %v416, 2147483648
    %v418 = vlaneseq
    %v419 = vand.u32 %v418, 127
    %vm420 = vcmp.eq.s32.totalorder %v419, 21
    %v421 = vmul.f32 %v417, %v406
    %422 = vadd.xlane.f32.xlu0 %v421
    %v423 = vpop.xlane.xlu0 %422
    %v424 = vsel %vm420, %v423, %v406
    %v425 = vmul.f32 %v417, %v410
    %426 = vadd.xlane.f32.xlu0 %v425
    %v427 = vpop.xlane.xlu0 %426
    %v428 = vsel %vm420, %v427, %v410
    %v429 = vmul.f32 %v417, %v414
    %430 = vadd.xlane.f32.xlu0 %v429
    %v431 = vpop.xlane.xlu0 %430
    %v432 = vsel %vm420, %v431, %v414
    %s433 = scalar_lea.vmem [#allocation2], 22
    %v434 = vld [vmem:[%s433] ss:$0 sm:$0xff]
    %v435 = vxor.u32 %v434, 2147483648
    %v436 = vlaneseq
    %v437 = vand.u32 %v436, 127
    %vm438 = vcmp.eq.s32.totalorder %v437, 22
    %v439 = vmul.f32 %v435, %v424
    %440 = vadd.xlane.f32.xlu0 %v439
    %v441 = vpop.xlane.xlu0 %440
    %v442 = vsel %vm438, %v441, %v424
    %v443 = vmul.f32 %v435, %v428
    %444 = vadd.xlane.f32.xlu0 %v443
    %v445 = vpop.xlane.xlu0 %444
    %v446 = vsel %vm438, %v445, %v428
    %v447 = vmul.f32 %v435, %v432
    %448 = vadd.xlane.f32.xlu0 %v447
    %v449 = vpop.xlane.xlu0 %448
    %v450 = vsel %vm438, %v449, %v432
    %s451 = scalar_lea.vmem [#allocation2], 23
    %v452 = vld [vmem:[%s451] ss:$0 sm:$0xff]
    %v453 = vxor.u32 %v452, 2147483648
    %v454 = vlaneseq
    %v455 = vand.u32 %v454, 127
    %vm456 = vcmp.eq.s32.totalorder %v455, 23
    %v457 = vmul.f32 %v453, %v442
    %458 = vadd.xlane.f32.xlu0 %v457
    %v459 = vpop.xlane.xlu0 %458
    %v460 = vsel %vm456, %v459, %v442
    %v461 = vmul.f32 %v453, %v446
    %462 = vadd.xlane.f32.xlu0 %v461
    %v463 = vpop.xlane.xlu0 %462
    %v464 = vsel %vm456, %v463, %v446
    %v465 = vmul.f32 %v453, %v450
    %466 = vadd.xlane.f32.xlu0 %v465
    %v467 = vpop.xlane.xlu0 %466
    %v468 = vsel %vm456, %v467, %v450
    %s469 = scalar_lea.vmem [#allocation2], 24
    %v470 = vld [vmem:[%s469] ss:$0 sm:$0xff]
    %v471 = vxor.u32 %v470, 2147483648
    %v472 = vlaneseq
    %v473 = vand.u32 %v472, 127
    %vm474 = vcmp.eq.s32.totalorder %v473, 24
    %v475 = vmul.f32 %v471, %v460
    %476 = vadd.xlane.f32.xlu0 %v475
    %v477 = vpop.xlane.xlu0 %476
    %v478 = vsel %vm474, %v477, %v460
    %v479 = vmul.f32 %v471, %v464
    %480 = vadd.xlane.f32.xlu0 %v479
    %v481 = vpop.xlane.xlu0 %480
    %v482 = vsel %vm474, %v481, %v464
    %v483 = vmul.f32 %v471, %v468
    %484 = vadd.xlane.f32.xlu0 %v483
    %v485 = vpop.xlane.xlu0 %484
    %v486 = vsel %vm474, %v485, %v468
    %v487 = vmul.f32 %v471, %v142
    %488 = vadd.xlane.f32.xlu0 %v487
    %v489 = vpop.xlane.xlu0 %488
    %v490 = vsel %vm474, %v489, %v142
    %s491 = scalar_lea.vmem [#allocation2], 25
    %v492 = vld [vmem:[%s491] ss:$0 sm:$0xff]
    %v493 = vxor.u32 %v492, 2147483648
    %v494 = vlaneseq
    %v495 = vand.u32 %v494, 127
    %vm496 = vcmp.eq.s32.totalorder %v495, 25
    %v497 = vmul.f32 %v493, %v478
    %498 = vadd.xlane.f32.xlu0 %v497
    %v499 = vpop.xlane.xlu0 %498
    %v500 = vsel %vm496, %v499, %v478
    %v501 = vmul.f32 %v493, %v482
    %502 = vadd.xlane.f32.xlu0 %v501
    %v503 = vpop.xlane.xlu0 %502
    %v504 = vsel %vm496, %v503, %v482
    %v505 = vmul.f32 %v493, %v486
    %506 = vadd.xlane.f32.xlu0 %v505
    %v507 = vpop.xlane.xlu0 %506
    %v508 = vsel %vm496, %v507, %v486
    %v509 = vmul.f32 %v493, %v490
    %510 = vadd.xlane.f32.xlu0 %v509
    %v511 = vpop.xlane.xlu0 %510
    %v512 = vsel %vm496, %v511, %v490
    %s513 = scalar_lea.vmem [#allocation2], 26
    %v514 = vld [vmem:[%s513] ss:$0 sm:$0xff]
    %v515 = vxor.u32 %v514, 2147483648
    %v516 = vlaneseq
    %v517 = vand.u32 %v516, 127
    %vm518 = vcmp.eq.s32.totalorder %v517, 26
    %v519 = vmul.f32 %v515, %v500
    %520 = vadd.xlane.f32.xlu0 %v519
    %v521 = vpop.xlane.xlu0 %520
    %v522 = vsel %vm518, %v521, %v500
    %v523 = vmul.f32 %v515, %v504
    %524 = vadd.xlane.f32.xlu0 %v523
    %v525 = vpop.xlane.xlu0 %524
    %v526 = vsel %vm518, %v525, %v504
    %v527 = vmul.f32 %v515, %v508
    %528 = vadd.xlane.f32.xlu0 %v527
    %v529 = vpop.xlane.xlu0 %528
    %v530 = vsel %vm518, %v529, %v508
    %v531 = vmul.f32 %v515, %v512
    %532 = vadd.xlane.f32.xlu0 %v531
    %v533 = vpop.xlane.xlu0 %532
    %v534 = vsel %vm518, %v533, %v512
    %s535 = scalar_lea.vmem [#allocation2], 27
    %v536 = vld [vmem:[%s535] ss:$0 sm:$0xff]
    %v537 = vxor.u32 %v536, 2147483648
    %v538 = vlaneseq
    %v539 = vand.u32 %v538, 127
    %vm540 = vcmp.eq.s32.totalorder %v539, 27
    %v541 = vmul.f32 %v537, %v522
    %542 = vadd.xlane.f32.xlu0 %v541
    %v543 = vpop.xlane.xlu0 %542
    %v544 = vsel %vm540, %v543, %v522
    %v545 = vmul.f32 %v537, %v526
    %546 = vadd.xlane.f32.xlu0 %v545
    %v547 = vpop.xlane.xlu0 %546
    %v548 = vsel %vm540, %v547, %v526
    %v549 = vmul.f32 %v537, %v530
    %550 = vadd.xlane.f32.xlu0 %v549
    %v551 = vpop.xlane.xlu0 %550
    %v552 = vsel %vm540, %v551, %v530
    %v553 = vmul.f32 %v537, %v534
    %554 = vadd.xlane.f32.xlu0 %v553
    %v555 = vpop.xlane.xlu0 %554
    %v556 = vsel %vm540, %v555, %v534
    %s557 = scalar_lea.vmem [#allocation2], 28
    %v558 = vld [vmem:[%s557] ss:$0 sm:$0xff]
    %v559 = vxor.u32 %v558, 2147483648
    %v560 = vlaneseq
    %v561 = vand.u32 %v560, 127
    %vm562 = vcmp.eq.s32.totalorder %v561, 28
    %v563 = vmul.f32 %v559, %v544
    %564 = vadd.xlane.f32.xlu0 %v563
    %v565 = vpop.xlane.xlu0 %564
    %v566 = vsel %vm562, %v565, %v544
    %v567 = vmul.f32 %v559, %v548
    %568 = vadd.xlane.f32.xlu0 %v567
    %v569 = vpop.xlane.xlu0 %568
    %v570 = vsel %vm562, %v569, %v548
    %v571 = vmul.f32 %v559, %v552
    %572 = vadd.xlane.f32.xlu0 %v571
    %v573 = vpop.xlane.xlu0 %572
    %v574 = vsel %vm562, %v573, %v552
    %v575 = vmul.f32 %v559, %v556
    %576 = vadd.xlane.f32.xlu0 %v575
    %v577 = vpop.xlane.xlu0 %576
    %v578 = vsel %vm562, %v577, %v556
    %s579 = scalar_lea.vmem [#allocation2], 29
    %v580 = vld [vmem:[%s579] ss:$0 sm:$0xff]
    %v581 = vxor.u32 %v580, 2147483648
    %v582 = vlaneseq
    %v583 = vand.u32 %v582, 127
    %vm584 = vcmp.eq.s32.totalorder %v583, 29
    %v585 = vmul.f32 %v581, %v566
    %586 = vadd.xlane.f32.xlu0 %v585
    %v587 = vpop.xlane.xlu0 %586
    %v588 = vsel %vm584, %v587, %v566
    %v589 = vmul.f32 %v581, %v570
    %590 = vadd.xlane.f32.xlu0 %v589
    %v591 = vpop.xlane.xlu0 %590
    %v592 = vsel %vm584, %v591, %v570
    %v593 = vmul.f32 %v581, %v574
    %594 = vadd.xlane.f32.xlu0 %v593
    %v595 = vpop.xlane.xlu0 %594
    %v596 = vsel %vm584, %v595, %v574
    %v597 = vmul.f32 %v581, %v578
    %598 = vadd.xlane.f32.xlu0 %v597
    %v599 = vpop.xlane.xlu0 %598
    %v600 = vsel %vm584, %v599, %v578
    %s601 = scalar_lea.vmem [#allocation2], 30
    %v602 = vld [vmem:[%s601] ss:$0 sm:$0xff]
    %v603 = vxor.u32 %v602, 2147483648
    %v604 = vlaneseq
    %v605 = vand.u32 %v604, 127
    %vm606 = vcmp.eq.s32.totalorder %v605, 30
    %v607 = vmul.f32 %v603, %v588
    %608 = vadd.xlane.f32.xlu0 %v607
    %v609 = vpop.xlane.xlu0 %608
    %v610 = vsel %vm606, %v609, %v588
    %v611 = vmul.f32 %v603, %v592
    %612 = vadd.xlane.f32.xlu0 %v611
    %v613 = vpop.xlane.xlu0 %612
    %v614 = vsel %vm606, %v613, %v592
    %v615 = vmul.f32 %v603, %v596
    %616 = vadd.xlane.f32.xlu0 %v615
    %v617 = vpop.xlane.xlu0 %616
    %v618 = vsel %vm606, %v617, %v596
    %v619 = vmul.f32 %v603, %v600
    %620 = vadd.xlane.f32.xlu0 %v619
    %v621 = vpop.xlane.xlu0 %620
    %v622 = vsel %vm606, %v621, %v600
    %s623 = scalar_lea.vmem [#allocation2], 31
    %v624 = vld [vmem:[%s623] ss:$0 sm:$0xff]
    %v625 = vxor.u32 %v624, 2147483648
    %v626 = vlaneseq
    %v627 = vand.u32 %v626, 127
    %vm628 = vcmp.eq.s32.totalorder %v627, 31
    %v629 = vmul.f32 %v625, %v610
    %630 = vadd.xlane.f32.xlu0 %v629
    %v631 = vpop.xlane.xlu0 %630
    %v632 = vsel %vm628, %v631, %v610
    %v633 = vmul.f32 %v625, %v614
    %634 = vadd.xlane.f32.xlu0 %v633
    %v635 = vpop.xlane.xlu0 %634
    %v636 = vsel %vm628, %v635, %v614
    %v637 = vmul.f32 %v625, %v618
    %638 = vadd.xlane.f32.xlu0 %v637
    %v639 = vpop.xlane.xlu0 %638
    %v640 = vsel %vm628, %v639, %v618
    %v641 = vmul.f32 %v625, %v622
    %642 = vadd.xlane.f32.xlu0 %v641
    %v643 = vpop.xlane.xlu0 %642
    %v644 = vsel %vm628, %v643, %v622
    %v645 = vrcp.pop %v56
    %v646 = vmul.f32 %v632, %v645
    %vm647 = vweird.f32 %v56
    %v648 = vsel %vm647, %v632, %v646
    %649 = vst [vmem:[#allocation1] sm:$0xff] %v648
    %v650 = vrcp.pop %v72
    %v651 = vmul.f32 %v636, %v650
    %vm652 = vweird.f32 %v72
    %v653 = vsel %vm652, %v636, %v651
    %s654 = scalar_lea.vmem [#allocation1], 8
    %655 = vst [vmem:[%s654] sm:$0xff] %v653
    %v656 = vrcp.pop %v88
    %v657 = vmul.f32 %v640, %v656
    %vm658 = vweird.f32 %v88
    %v659 = vsel %vm658, %v640, %v657
    %s660 = scalar_lea.vmem [#allocation1], 16
    %661 = vst [vmem:[%s660] sm:$0xff] %v659
    %v662 = vrcp.pop %v104
    %v663 = vmul.f32 %v644, %v662
    %vm664 = vweird.f32 %v104
    %v665 = vsel %vm664, %v644, %v663
    %s666 = scalar_lea.vmem [#allocation1], 24
    %667 = vst [vmem:[%s666] sm:$0xff] %v665
    // Predicated region
    $region36: #{custom-call.7} parent=1 // pred_check
      _
    $region37: #{custom-call.7} parent=1 // pred_check_branch
      %669 = sbr.rel (0) target = $region39
    $region38: #{custom-call.7} parent=1 // pred_region
      // Predicated region
      $region40: #{custom-call.7} parent=38 // pred_check
        _
      $region41: #{custom-call.7} parent=38 // pred_check_branch
        %671 = sbr.rel (0) target = $region43
      $region42: #{custom-call.7} parent=38 // pred_region
        // Predicated region
        $region55: #{custom-call.7} parent=42 // pred_check
          _
        $region56: #{custom-call.7} parent=42 // pred_check_branch
          %692 = sbr.rel (0) target = $region58
        $region57: #{custom-call.7} parent=42 // pred_region
          loop: start=0, step=1, limit=1
          $region59: #{custom-call.7} parent=57 // loop_pre_header
            _
          $region60: #{custom-call.7} parent=57 // loop_header
            %s694 = sphi 0, %s698
            %p695 = scmp.ge.s32.totalorder %s694, 1
            %s699 = sphi [#allocation1], [#allocation1]
            %s700 = sphi %s1, %s1
          $region61: #{custom-call.7} parent=57 // loop_header_branch
            %697 = sbr.rel (%p695) target = $region65
          $region62: #{custom-call.7} parent=57 // loop_body
            %v701 = vld [vmem:[%s699] sm:$0xff]
            %702 = vst [vmem:[%s700] sm:$0xff] %v701
            %v703 = vld [vmem:[%s699 + $0x8] sm:$0xff]
            %704 = vst [vmem:[%s700 + $0x8] sm:$0xff] %v703
            %v705 = vld [vmem:[%s699 + $0x10] sm:$0xff]
            %706 = vst [vmem:[%s700 + $0x10] sm:$0xff] %v705
            %v707 = vld [vmem:[%s699 + $0x18] sm:$0xff]
            %708 = vst [vmem:[%s700 + $0x18] sm:$0xff] %v707
          $region63: #{custom-call.7} parent=57 // loop_footer
            %s698 = sadd.s32 1, %s694
          $region64: #{custom-call.7} parent=57 // loop_footer_branch
            %693 = sbr.rel target = $region60
          $region65: #{custom-call.7} parent=57 // loop_exit
            _
        $region58: #{custom-call.7} parent=42 // pred_fallthru
          _
        // Predicated region
        $region66: #{custom-call.7} parent=42 // pred_check
          _
        $region67: #{custom-call.7} parent=42 // pred_check_branch
          %710 = sbr.rel target = $region69
        $region68: #{custom-call.7} parent=42 // pred_region
          _
        $region69: #{custom-call.7} parent=42 // pred_fallthru
          _
      $region43: #{custom-call.7} parent=38 // pred_fallthru
        _
      // Predicated region
      $region44: #{custom-call.7} parent=38 // pred_check
        _
      $region45: #{custom-call.7} parent=38 // pred_check_branch
        %673 = sbr.rel target = $region47
      $region46: #{custom-call.7} parent=38 // pred_region
        loop: start=0, step=1, limit=1
        $region48: #{custom-call.7} parent=46 // loop_pre_header
          _
        $region49: #{custom-call.7} parent=46 // loop_header
          %s676 = sphi 0, %s680
          %p677 = scmp.ge.s32.totalorder %s676, 1
          %s681 = sphi [#allocation1], [#allocation1]
          %s682 = sphi %s1, %s1
        $region50: #{custom-call.7} parent=46 // loop_header_branch
          %679 = sbr.rel (%p677) target = $region54
        $region51: #{custom-call.7} parent=46 // loop_body
          %v683 = vld [vmem:[%s681] sm:$0xff]
          %684 = vst [vmem:[%s682] sm:$0xff] %v683
          %v685 = vld [vmem:[%s681 + $0x8] sm:$0xff]
          %686 = vst [vmem:[%s682 + $0x8] sm:$0xff] %v685
          %v687 = vld [vmem:[%s681 + $0x10] sm:$0xff]
          %688 = vst [vmem:[%s682 + $0x10] sm:$0xff] %v687
          %v689 = vld [vmem:[%s681 + $0x18] sm:$0xff]
          %690 = vst [vmem:[%s682 + $0x18] sm:$0xff] %v689
        $region52: #{custom-call.7} parent=46 // loop_footer
          %s680 = sadd.s32 1, %s676
        $region53: #{custom-call.7} parent=46 // loop_footer_branch
          %675 = sbr.rel target = $region49
        $region54: #{custom-call.7} parent=46 // loop_exit
          _
      $region47: #{custom-call.7} parent=38 // pred_fallthru
        _
    $region39: #{custom-call.7} parent=1 // pred_fallthru
      _
    %711 = vnop

// kernel: deeptime_forward.3
$region0: #{deeptime_forward.3}
  #allocation0 [shape = 'u32[]', space=smem, size = 0x4, offset = 0x4, fixed_abs, tag = 'smem constant byte address 0x4 - core index']
  #allocation1 [shape = 'u32[144,128]{1,0:T(1,128)}', space=vmem, size = 0x12000, scoped, tag = 'internal scratch']
  %s0 = inlined_call_operand.vmem [shape: f32[32,128], index: 0, kind: input, shape index: {}]
  %s1 = inlined_call_operand.vmem [shape: f32[128,128], index: 1, kind: input, shape index: {}]
  %s2 = inlined_call_operand.vmem [shape: f32[32,128], index: 2, kind: output, shape index: {}]
  %s3 = sld [smem:[#allocation0]]
  $region18: #{deeptime_forward.3} parent=0
    _
  %s5 = ssub.s32 1, %s3
  %s6 = scalar_select 0, %s5, %s3
  // Predicated region
  $region2: #{deeptime_forward.3} parent=0 // pred_check
    _
  $region3: #{deeptime_forward.3} parent=0 // pred_check_branch
    %8 = sbr.rel (0) target = $region5
  $region4: #{deeptime_forward.3} parent=0 // pred_region
    _
  $region5: #{deeptime_forward.3} parent=0 // pred_fallthru
    _
  // Predicated region
  $region6: #{deeptime_forward.3} parent=0 // pred_check
    _
  $region7: #{deeptime_forward.3} parent=0 // pred_check_branch
    %10 = sbr.rel (0) target = $region9
  $region8: #{deeptime_forward.3} parent=0 // pred_region
    _
  $region9: #{deeptime_forward.3} parent=0 // pred_fallthru
    _
  %v11 = vld [vmem:[%s0] sm:$0xff]
  %v12 = vld [vmem:[%s0 + $0x8] sm:$0xff]
  %v13 = vld [vmem:[%s0 + $0x10] sm:$0xff]
  %v14 = vld [vmem:[%s0 + $0x18] sm:$0xff]
  %v15 = vld [vmem:[%s1] sm:$0xff]
  %v16 = vld [vmem:[%s1 + $0x8] sm:$0xff]
  %v17 = vld [vmem:[%s1 + $0x10] sm:$0xff]
  %v18 = vld [vmem:[%s1 + $0x18] sm:$0xff]
  %v19 = vld [vmem:[%s1 + $0x20] sm:$0xff]
  %v20 = vld [vmem:[%s1 + $0x28] sm:$0xff]
  %v21 = vld [vmem:[%s1 + $0x30] sm:$0xff]
  %v22 = vld [vmem:[%s1 + $0x38] sm:$0xff]
  %v23 = vld [vmem:[%s1 + $0x40] sm:$0xff]
  %v24 = vld [vmem:[%s1 + $0x48] sm:$0xff]
  %v25 = vld [vmem:[%s1 + $0x50] sm:$0xff]
  %v26 = vld [vmem:[%s1 + $0x58] sm:$0xff]
  %v27 = vld [vmem:[%s1 + $0x60] sm:$0xff]
  %v28 = vld [vmem:[%s1 + $0x68] sm:$0xff]
  %v29 = vld [vmem:[%s1 + $0x70] sm:$0xff]
  %v30 = vld [vmem:[%s1 + $0x78] sm:$0xff]
  %31 = vmatprep.subr.mxu0 0.0
  %32 = vmatpush1.msra.mxu0 %v15
  %33 = vmatprep.subr.mxu0 0.0
  %34 = vmatpush1.msra.mxu0 %v16
  %35 = vmatprep.subr.mxu0 0.0
  %36 = vmatpush1.msra.mxu0 %v17
  %37 = vmatprep.subr.mxu0 0.0
  %38 = vmatpush1.msra.mxu0 %v18
  %39 = vmatprep.subr.mxu0 0.0
  %40 = vmatpush1.msra.mxu0 %v19
  %41 = vmatprep.subr.mxu0 0.0
  %42 = vmatpush1.msra.mxu0 %v20
  %43 = vmatprep.subr.mxu0 0.0
  %44 = vmatpush1.msra.mxu0 %v21
  %45 = vmatprep.subr.mxu0 0.0
  %46 = vmatpush1.msra.mxu0 %v22
  %47 = vmatprep.subr.mxu0 0.0
  %48 = vmatpush1.msra.mxu0 %v23
  %49 = vmatprep.subr.mxu0 0.0
  %50 = vmatpush1.msra.mxu0 %v24
  %51 = vmatprep.subr.mxu0 0.0
  %52 = vmatpush1.msra.mxu0 %v25
  %53 = vmatprep.subr.mxu0 0.0
  %54 = vmatpush1.msra.mxu0 %v26
  %55 = vmatprep.subr.mxu0 0.0
  %56 = vmatpush1.msra.mxu0 %v27
  %57 = vmatprep.subr.mxu0 0.0
  %58 = vmatpush1.msra.mxu0 %v28
  %59 = vmatprep.subr.mxu0 0.0
  %60 = vmatpush1.msra.mxu0 %v29
  %61 = vmatprep.subr.mxu0 0.0
  %62 = vmatpush1.msra.mxu0 %v30
  %63 = vmatprep.subr.mxu0 0.0
  %64 = vmatpush1.msra.mxu0 0.0
  %65 = vmatprep.subr.mxu0 0.0
  %66 = vmatpush1.msra.mxu0 0.0
  %67 = vmatprep.subr.mxu0 0.0
  %68 = vmatpush1.msra.mxu0 0.0
  %69 = vmatprep.subr.mxu0 0.0
  %70 = vmatpush1.msra.mxu0 0.0
  %71 = vmatprep.subr.mxu0 0.0
  %72 = vmatpush1.msra.mxu0 0.0
  %73 = vmatprep.subr.mxu0 0.0
  %74 = vmatpush1.msra.mxu0 0.0
  %75 = vmatprep.subr.mxu0 0.0
  %76 = vmatpush1.msra.mxu0 0.0
  %77 = vmatprep.subr.mxu0 0.0
  %78 = vmatpush1.msra.mxu0 0.0
  %79 = vmatprep.subr.mxu0 0.0
  %80 = vmatpush1.msra.mxu0 0.0
  %81 = vmatprep.subr.mxu0 0.0
  %82 = vmatpush1.msra.mxu0 0.0
  %83 = vmatprep.subr.mxu0 0.0
  %84 = vmatpush1.msra.mxu0 0.0
  %85 = vmatprep.subr.mxu0 0.0
  %86 = vmatpush1.msra.mxu0 0.0
  %87 = vmatprep.subr.mxu0 0.0
  %88 = vmatpush1.msra.mxu0 0.0
  %89 = vmatprep.subr.mxu0 0.0
  %90 = vmatpush1.msra.mxu0 0.0
  %91 = vmatprep.subr.mxu0 0.0
  %92 = vmatpush1.msra.mxu0 0.0
  %93 = vmatprep.subr.mxu0 0.0
  %94 = vmatpush1.msra.mxu0 0.0
  %95 = vmatprep.mubr.f32.mxu0 0.0
  %96 = vmatmul.mubr.f32.gmra.mrb[0].mxu0 %v11
  %v97 = vpop.f32.mrb[0].mxu0
  %v98 = vadd.f32 0.0, %v97
  %v99 = vpop.f32.mrb[0].mxu0
  %100 = vmatprep.mubr.f32.mxu0 0.0
  %101 = vmatmul.mubr.f32.gmra.mrb[0].mxu0 %v12
  %v102 = vpop.f32.mrb[0].mxu0
  %v103 = vadd.f32 0.0, %v102
  %v104 = vpop.f32.mrb[0].mxu0
  %105 = vmatprep.mubr.f32.mxu0 0.0
  %106 = vmatmul.mubr.f32.gmra.mrb[0].mxu0 %v13
  %v107 = vpop.f32.mrb[0].mxu0
  %v108 = vadd.f32 0.0, %v107
  %v109 = vpop.f32.mrb[0].mxu0
  %110 = vmatprep.mubr.f32.mxu0 0.0
  %111 = vmatmul.mubr.f32.gmra.mrb[0].mxu0 %v14
  %v112 = vpop.f32.mrb[0].mxu0
  %v113 = vadd.f32 0.0, %v112
  %v114 = vpop.f32.mrb[0].mxu0
  %115 = vdwg.mxu0
  %116 = vst [vmem:[%s2] sm:$0xff] %v98
  %117 = vst [vmem:[%s2 + $0x8] sm:$0xff] %v103
  %118 = vst [vmem:[%s2 + $0x10] sm:$0xff] %v108
  %119 = vst [vmem:[%s2 + $0x18] sm:$0xff] %v113
  // Predicated region
  $region10: #{deeptime_forward.3} parent=0 // pred_check
    _
  $region11: #{deeptime_forward.3} parent=0 // pred_check_branch
    %121 = sbr.rel (0) target = $region13
  $region12: #{deeptime_forward.3} parent=0 // pred_region
    _
  $region13: #{deeptime_forward.3} parent=0 // pred_fallthru
    _
  // Predicated region
  $region14: #{deeptime_forward.3} parent=0 // pred_check
    _
  $region15: #{deeptime_forward.3} parent=0 // pred_check_branch
    %123 = sbr.rel (0) target = $region17
  $region16: #{deeptime_forward.3} parent=0 // pred_region
    _
  $region17: #{deeptime_forward.3} parent=0 // pred_fallthru
    _

// kernel: deeptime_forward.2
$region0: #{deeptime_forward.2}
  #allocation0 [shape = 'u32[]', space=smem, size = 0x4, offset = 0x4, fixed_abs, tag = 'smem constant byte address 0x4 - core index']
  #allocation1 [shape = 'u32[144,128]{1,0:T(1,128)}', space=vmem, size = 0x12000, scoped, tag = 'internal scratch']
  #allocation2 [shape = 'f32[1]{0:T(128)S(6)}', space=smem, size = 0x200, scoped, tag = 'scoped memory for deeptime_forward.2']
  %s0 = inlined_call_operand.<no memory space> [shape: f32[1], index: 0, kind: input, shape index: {}]
  %s1 = inlined_call_operand.vmem [shape: f32[96,4], index: 1, kind: input, shape index: {}]
  %s2 = inlined_call_operand.vmem [shape: f32[4,128], index: 2, kind: input, shape index: {}]
  %s3 = inlined_call_operand.vmem [shape: f32[1,128], index: 3, kind: input, shape index: {}]
  %s4 = inlined_call_operand.vmem [shape: f32[128,128], index: 4, kind: input, shape index: {}]
  %s5 = inlined_call_operand.vmem [shape: f32[1,128], index: 5, kind: input, shape index: {}]
  %s6 = inlined_call_operand.vmem [shape: f32[128,128], index: 6, kind: input, shape index: {}]
  %s7 = inlined_call_operand.vmem [shape: f32[1,128], index: 7, kind: input, shape index: {}]
  %s8 = inlined_call_operand.vmem [shape: f32[64,128], index: 8, kind: input, shape index: {}]
  %s9 = inlined_call_operand.vmem [shape: s32[64,1], index: 9, kind: input, shape index: {}]
  %s10 = inlined_call_operand.vmem [shape: f32[128,128], index: 10, kind: output, shape index: {0}]
  %s11 = inlined_call_operand.vmem [shape: f32[128,128], index: 11, kind: output, shape index: {1}]
  %s12 = inlined_call_operand.vmem [shape: f32[32,128], index: 12, kind: output, shape index: {2}]
  %13 = xla_tuple %s10, %s11, %s12
  %s14 = sld [smem:[#allocation0]]
  $region66: #{deeptime_forward.2} parent=0
    _
  %s16 = ssub.s32 1, %s14
  %s17 = scalar_select 0, %s16, %s14
  %18 = sst [smem:[#allocation2]] %s0
  // Predicated region
  $region2: #{deeptime_forward.2} parent=0 // pred_check
    _
  $region3: #{deeptime_forward.2} parent=0 // pred_check_branch
    %20 = sbr.rel (0) target = $region5
  $region4: #{deeptime_forward.2} parent=0 // pred_region
    _
  $region5: #{deeptime_forward.2} parent=0 // pred_fallthru
    _
  // Predicated region
  $region6: #{deeptime_forward.2} parent=0 // pred_check
    _
  $region7: #{deeptime_forward.2} parent=0 // pred_check_branch
    %22 = sbr.rel (0) target = $region9
  $region8: #{deeptime_forward.2} parent=0 // pred_region
    _
  $region9: #{deeptime_forward.2} parent=0 // pred_fallthru
    _
  // Predicated region
  $region10: #{deeptime_forward.2} parent=0 // pred_check
    _
  $region11: #{deeptime_forward.2} parent=0 // pred_check_branch
    %24 = sbr.rel (0) target = $region13
  $region12: #{deeptime_forward.2} parent=0 // pred_region
    _
  $region13: #{deeptime_forward.2} parent=0 // pred_fallthru
    _
  // Predicated region
  $region14: #{deeptime_forward.2} parent=0 // pred_check
    _
  $region15: #{deeptime_forward.2} parent=0 // pred_check_branch
    %26 = sbr.rel (0) target = $region17
  $region16: #{deeptime_forward.2} parent=0 // pred_region
    _
  $region17: #{deeptime_forward.2} parent=0 // pred_fallthru
    _
  // Predicated region
  $region18: #{deeptime_forward.2} parent=0 // pred_check
    _
  $region19: #{deeptime_forward.2} parent=0 // pred_check_branch
    %28 = sbr.rel (0) target = $region21
  $region20: #{deeptime_forward.2} parent=0 // pred_region
    _
  $region21: #{deeptime_forward.2} parent=0 // pred_fallthru
    _
  // Predicated region
  $region22: #{deeptime_forward.2} parent=0 // pred_check
    _
  $region23: #{deeptime_forward.2} parent=0 // pred_check_branch
    %30 = sbr.rel (0) target = $region25
  $region24: #{deeptime_forward.2} parent=0 // pred_region
    _
  $region25: #{deeptime_forward.2} parent=0 // pred_fallthru
    _
  // Predicated region
  $region26: #{deeptime_forward.2} parent=0 // pred_check
    _
  $region27: #{deeptime_forward.2} parent=0 // pred_check_branch
    %32 = sbr.rel (0) target = $region29
  $region28: #{deeptime_forward.2} parent=0 // pred_region
    _
  $region29: #{deeptime_forward.2} parent=0 // pred_fallthru
    _
  // Predicated region
  $region30: #{deeptime_forward.2} parent=0 // pred_check
    _
  $region31: #{deeptime_forward.2} parent=0 // pred_check_branch
    %34 = sbr.rel (0) target = $region33
  $region32: #{deeptime_forward.2} parent=0 // pred_region
    _
  $region33: #{deeptime_forward.2} parent=0 // pred_fallthru
    _
  // Predicated region
  $region34: #{deeptime_forward.2} parent=0 // pred_check
    _
  $region35: #{deeptime_forward.2} parent=0 // pred_check_branch
    %36 = sbr.rel (0) target = $region37
  $region36: #{deeptime_forward.2} parent=0 // pred_region
    _
  $region37: #{deeptime_forward.2} parent=0 // pred_fallthru
    _
  // Predicated region
  $region38: #{deeptime_forward.2} parent=0 // pred_check
    _
  $region39: #{deeptime_forward.2} parent=0 // pred_check_branch
    %38 = sbr.rel (0) target = $region41
  $region40: #{deeptime_forward.2} parent=0 // pred_region
    _
  $region41: #{deeptime_forward.2} parent=0 // pred_fallthru
    _
  %v39 = vld [vmem:[%s1] sm:$0xff]
  %v40 = vld [vmem:[%s1 + $0x8] sm:$0xff]
  %v41 = vld [vmem:[%s1 + $0x10] sm:$0xff]
  %v42 = vld [vmem:[%s1 + $0x18] sm:$0xff]
  %v43 = vld [vmem:[%s1 + $0x20] sm:$0xff]
  %v44 = vld [vmem:[%s1 + $0x28] sm:$0xff]
  %v45 = vld [vmem:[%s1 + $0x30] sm:$0xff]
  %v46 = vld [vmem:[%s1 + $0x38] sm:$0xff]
  %v47 = vld [vmem:[%s1 + $0x40] sm:$0xff]
  %v48 = vld [vmem:[%s1 + $0x48] sm:$0xff]
  %v49 = vld [vmem:[%s1 + $0x50] sm:$0xff]
  %v50 = vld [vmem:[%s1 + $0x58] sm:$0xff]
  %v51 = vld [vmem:[%s2] sm:$0xf]
  %v52 = vld [vmem:[%s3] sm:$0x1]
  %v53 = vld [vmem:[%s4] sm:$0xff]
  %v54 = vld [vmem:[%s4 + $0x8] sm:$0xff]
  %v55 = vld [vmem:[%s4 + $0x10] sm:$0xff]
  %v56 = vld [vmem:[%s4 + $0x18] sm:$0xff]
  %v57 = vld [vmem:[%s4 + $0x20] sm:$0xff]
  %v58 = vld [vmem:[%s4 + $0x28] sm:$0xff]
  %v59 = vld [vmem:[%s4 + $0x30] sm:$0xff]
  %v60 = vld [vmem:[%s4 + $0x38] sm:$0xff]
  %v61 = vld [vmem:[%s4 + $0x40] sm:$0xff]
  %v62 = vld [vmem:[%s4 + $0x48] sm:$0xff]
  %v63 = vld [vmem:[%s4 + $0x50] sm:$0xff]
  %v64 = vld [vmem:[%s4 + $0x58] sm:$0xff]
  %v65 = vld [vmem:[%s4 + $0x60] sm:$0xff]
  %v66 = vld [vmem:[%s4 + $0x68] sm:$0xff]
  %v67 = vld [vmem:[%s4 + $0x70] sm:$0xff]
  %v68 = vld [vmem:[%s4 + $0x78] sm:$0xff]
  %v69 = vld [vmem:[%s5] sm:$0x1]
  %v70 = vld [vmem:[%s6] sm:$0xff]
  %v71 = vld [vmem:[%s6 + $0x8] sm:$0xff]
  %v72 = vld [vmem:[%s6 + $0x10] sm:$0xff]
  %v73 = vld [vmem:[%s6 + $0x18] sm:$0xff]
  %v74 = vld [vmem:[%s6 + $0x20] sm:$0xff]
  %v75 = vld [vmem:[%s6 + $0x28] sm:$0xff]
  %v76 = vld [vmem:[%s6 + $0x30] sm:$0xff]
  %v77 = vld [vmem:[%s6 + $0x38] sm:$0xff]
  %v78 = vld [vmem:[%s6 + $0x40] sm:$0xff]
  %v79 = vld [vmem:[%s6 + $0x48] sm:$0xff]
  %v80 = vld [vmem:[%s6 + $0x50] sm:$0xff]
  %v81 = vld [vmem:[%s6 + $0x58] sm:$0xff]
  %v82 = vld [vmem:[%s6 + $0x60] sm:$0xff]
  %v83 = vld [vmem:[%s6 + $0x68] sm:$0xff]
  %v84 = vld [vmem:[%s6 + $0x70] sm:$0xff]
  %v85 = vld [vmem:[%s6 + $0x78] sm:$0xff]
  %v86 = vld [vmem:[%s7] sm:$0x1]
  %v88 = vlaneseq
  %v89 = vshrl.u32 %v88, 7
  %v90 = vsub.s32 0, %v89
  %v91 = vrot.slane %v52, %v90
  %vm93 = vcmask 31744
  %v95 = vsel %vm93, %v39, 0
  %v98 = vsel %vm93, %v40, 0
  %v101 = vsel %vm93, %v41, 0
  %v104 = vsel %vm93, %v42, 0
  %v107 = vsel %vm93, %v43, 0
  %v110 = vsel %vm93, %v44, 0
  %v113 = vsel %vm93, %v45, 0
  %v116 = vsel %vm93, %v46, 0
  %v119 = vsel %vm93, %v47, 0
  %v122 = vsel %vm93, %v48, 0
  %v125 = vsel %vm93, %v49, 0
  %v128 = vsel %vm93, %v50, 0
  %vm130 = vcmask 1043456
  %v132 = vsel %vm130, %v51, 0
  %134 = vmatprep.subr.mxu0 0.0
  %135 = vmatpush1.msra.mxu0 %v132
  %136 = vmatprep.subr.mxu0 0.0
  %137 = vmatpush1.msra.mxu0 0.0
  %138 = vmatprep.subr.mxu0 0.0
  %139 = vmatpush1.msra.mxu0 0.0
  %140 = vmatprep.subr.mxu0 0.0
  %141 = vmatpush1.msra.mxu0 0.0
  %142 = vmatprep.subr.mxu0 0.0
  %143 = vmatpush1.msra.mxu0 0.0
  %144 = vmatprep.subr.mxu0 0.0
  %145 = vmatpush1.msra.mxu0 0.0
  %146 = vmatprep.subr.mxu0 0.0
  %147 = vmatpush1.msra.mxu0 0.0
  %148 = vmatprep.subr.mxu0 0.0
  %149 = vmatpush1.msra.mxu0 0.0
  %150 = vmatprep.subr.mxu0 0.0
  %151 = vmatpush1.msra.mxu0 0.0
  %152 = vmatprep.subr.mxu0 0.0
  %153 = vmatpush1.msra.mxu0 0.0
  %154 = vmatprep.subr.mxu0 0.0
  %155 = vmatpush1.msra.mxu0 0.0
  %156 = vmatprep.subr.mxu0 0.0
  %157 = vmatpush1.msra.mxu0 0.0
  %158 = vmatprep.subr.mxu0 0.0
  %159 = vmatpush1.msra.mxu0 0.0
  %160 = vmatprep.subr.mxu0 0.0
  %161 = vmatpush1.msra.mxu0 0.0
  %162 = vmatprep.subr.mxu0 0.0
  %163 = vmatpush1.msra.mxu0 0.0
  %164 = vmatprep.subr.mxu0 0.0
  %165 = vmatpush1.msra.mxu0 0.0
  %166 = vmatprep.subr.mxu0 0.0
  %167 = vmatpush1.msra.mxu0 0.0
  %168 = vmatprep.subr.mxu0 0.0
  %169 = vmatpush1.msra.mxu0 0.0
  %170 = vmatprep.subr.mxu0 0.0
  %171 = vmatpush1.msra.mxu0 0.0
  %172 = vmatprep.subr.mxu0 0.0
  %173 = vmatpush1.msra.mxu0 0.0
  %174 = vmatprep.subr.mxu0 0.0
  %175 = vmatpush1.msra.mxu0 0.0
  %176 = vmatprep.subr.mxu0 0.0
  %177 = vmatpush1.msra.mxu0 0.0
  %178 = vmatprep.subr.mxu0 0.0
  %179 = vmatpush1.msra.mxu0 0.0
  %180 = vmatprep.subr.mxu0 0.0
  %181 = vmatpush1.msra.mxu0 0.0
  %182 = vmatprep.subr.mxu0 0.0
  %183 = vmatpush1.msra.mxu0 0.0
  %184 = vmatprep.subr.mxu0 0.0
  %185 = vmatpush1.msra.mxu0 0.0
  %186 = vmatprep.subr.mxu0 0.0
  %187 = vmatpush1.msra.mxu0 0.0
  %188 = vmatprep.subr.mxu0 0.0
  %189 = vmatpush1.msra.mxu0 0.0
  %190 = vmatprep.subr.mxu0 0.0
  %191 = vmatpush1.msra.mxu0 0.0
  %192 = vmatprep.subr.mxu0 0.0
  %193 = vmatpush1.msra.mxu0 0.0
  %194 = vmatprep.subr.mxu0 0.0
  %195 = vmatpush1.msra.mxu0 0.0
  %196 = vmatprep.subr.mxu0 0.0
  %197 = vmatpush1.msra.mxu0 0.0
  %198 = vmatprep.mubr.f32.mxu0 0.0
  %199 = vmatmul.mubr.f32.gmra.mrb[0].mxu0 %v95
  %v200 = vpop.f32.mrb[0].mxu0
  %v201 = vadd.f32 %v91, %v200
  %v202 = vpop.f32.mrb[0].mxu0
  %203 = vmatprep.mubr.f32.mxu0 0.0
  %204 = vmatmul.mubr.f32.gmra.mrb[0].mxu0 %v98
  %v205 = vpop.f32.mrb[0].mxu0
  %v206 = vadd.f32 %v91, %v205
  %v207 = vpop.f32.mrb[0].mxu0
  %208 = vmatprep.mubr.f32.mxu0 0.0
  %209 = vmatmul.mubr.f32.gmra.mrb[0].mxu0 %v101
  %v210 = vpop.f32.mrb[0].mxu0
  %v211 = vadd.f32 %v91, %v210
  %v212 = vpop.f32.mrb[0].mxu0
  %213 = vmatprep.mubr.f32.mxu0 0.0
  %214 = vmatmul.mubr.f32.gmra.mrb[0].mxu0 %v104
  %v215 = vpop.f32.mrb[0].mxu0
  %v216 = vadd.f32 %v91, %v215
  %v217 = vpop.f32.mrb[0].mxu0
  %218 = vmatprep.mubr.f32.mxu0 0.0
  %219 = vmatmul.mubr.f32.gmra.mrb[0].mxu0 %v107
  %v220 = vpop.f32.mrb[0].mxu0
  %v221 = vadd.f32 %v91, %v220
  %v222 = vpop.f32.mrb[0].mxu0
  %223 = vmatprep.mubr.f32.mxu0 0.0
  %224 = vmatmul.mubr.f32.gmra.mrb[0].mxu0 %v110
  %v225 = vpop.f32.mrb[0].mxu0
  %v226 = vadd.f32 %v91, %v225
  %v227 = vpop.f32.mrb[0].mxu0
  %228 = vmatprep.mubr.f32.mxu0 0.0
  %229 = vmatmul.mubr.f32.gmra.mrb[0].mxu0 %v113
  %v230 = vpop.f32.mrb[0].mxu0
  %v231 = vadd.f32 %v91, %v230
  %v232 = vpop.f32.mrb[0].mxu0
  %233 = vmatprep.mubr.f32.mxu0 0.0
  %234 = vmatmul.mubr.f32.gmra.mrb[0].mxu0 %v116
  %v235 = vpop.f32.mrb[0].mxu0
  %v236 = vadd.f32 %v91, %v235
  %v237 = vpop.f32.mrb[0].mxu0
  %238 = vmatprep.mubr.f32.mxu0 0.0
  %239 = vmatmul.mubr.f32.gmra.mrb[0].mxu0 %v119
  %v240 = vpop.f32.mrb[0].mxu0
  %v241 = vadd.f32 %v91, %v240
  %v242 = vpop.f32.mrb[0].mxu0
  %243 = vmatprep.mubr.f32.mxu0 0.0
  %244 = vmatmul.mubr.f32.gmra.mrb[0].mxu0 %v122
  %v245 = vpop.f32.mrb[0].mxu0
  %v246 = vadd.f32 %v91, %v245
  %v247 = vpop.f32.mrb[0].mxu0
  %248 = vmatprep.mubr.f32.mxu0 0.0
  %249 = vmatmul.mubr.f32.gmra.mrb[0].mxu0 %v125
  %v250 = vpop.f32.mrb[0].mxu0
  %v251 = vadd.f32 %v91, %v250
  %v252 = vpop.f32.mrb[0].mxu0
  %253 = vmatprep.mubr.f32.mxu0 0.0
  %254 = vmatmul.mubr.f32.gmra.mrb[0].mxu0 %v128
  %v255 = vpop.f32.mrb[0].mxu0
  %v256 = vadd.f32 %v91, %v255
  %v257 = vpop.f32.mrb[0].mxu0
  %258 = vdwg.mxu0
  %v259 = vmul.f32 %v201, 30.0
  %v260 = vmul.f32 %v206, 30.0
  %v261 = vmul.f32 %v211, 30.0
  %v262 = vmul.f32 %v216, 30.0
  %v263 = vmul.f32 %v221, 30.0
  %v264 = vmul.f32 %v226, 30.0
  %v265 = vmul.f32 %v231, 30.0
  %v266 = vmul.f32 %v236, 30.0
  %v267 = vmul.f32 %v241, 30.0
  %v268 = vmul.f32 %v246, 30.0
  %v269 = vmul.f32 %v251, 30.0
  %v270 = vmul.f32 %v256, 30.0
  %v271 = vand.u32 2147483647, %v259
  %vm272 = vcmp.le.f32.partialorder %v271, 0.7853982
  %vm273 = vcmp.lt.s32.totalorder %v259, 0
  %v274 = vand.u32 %v259, 2139095040
  %v275 = vshrl.u32 %v274, 23
  %v276 = vsub.s32 %v275, 127
  %v277 = vand.u32 2147483647, %v259
  %v278 = vand.u32 %v277, 8388607
  %v279 = vor.u32 %v278, 8388608
  %v280 = vsub.s32 0, %v279
  %v281 = vadd.s32 %v276, 1
  %vm282 = vcmp.gt.s32.totalorder %v281, 0
  %v283 = vsel %vm282, %v281, 0
  %v284 = vshrl.u32 %v283, 5
  %v285 = vand.u32 %v283, 31
  %v286 = vsub.s32 32, %v285
  %v287 = vshrl.u32 683565275, %v286
  %v288 = vshll.u32 683565275, %v285
  %v289 = vshrl.u32 2475754826, %v286
  %v290 = vor.u32 %v288, %v289
  %v291 = vshll.u32 2475754826, %v285
  %v292 = vshrl.u32 2131351028, %v286
  %v293 = vor.u32 %v291, %v292
  %v294 = vshll.u32 2131351028, %v285
  %v295 = vshrl.u32 2102212464, %v286
  %v296 = vor.u32 %v294, %v295
  %v297 = vshll.u32 2102212464, %v285
  %v298 = vshrl.u32 920167782, %v286
  %v299 = vor.u32 %v297, %v298
  %v300 = vshll.u32 920167782, %v285
  %v301 = vshrl.u32 1326507024, %v286
  %v302 = vor.u32 %v300, %v301
  %vm303 = vcmp.lt.s32.totalorder %v284, 1
  %vm304 = vcmp.lt.s32.totalorder %v284, 2
  %vm305 = vcmp.lt.s32.totalorder %v284, 3
  %vm306 = vcmp.lt.s32.totalorder %v284, 4
  %v307 = vsel %vm303, %v287, %v290
  %v308 = vsel %vm306, %v296, 2102212464
  %v309 = vsel %vm305, %v293, %v308
  %v310 = vsel %vm304, %v307, %v309
  %v311 = vsel %vm303, %v290, %v293
  %v312 = vsel %vm306, %v299, 920167782
  %v313 = vsel %vm305, %v296, %v312
  %v314 = vsel %vm304, %v311, %v313
  %v315 = vsel %vm303, %v293, %v296
  %v316 = vsel %vm306, %v302, 1326507024
  %v317 = vsel %vm305, %v299, %v316
  %v318 = vsel %vm304, %v315, %v317
  %v319 = vshll.u32 %v279, 8
  %v320 = vmul.u32.u64.compose %v319, %v318
  %v321 = vextract.low.u32 %v320
  %v322 = vextract.high.u32 %v320
  %v323 = vmul.u32.u64.compose %v319, %v314
  %v324 = vextract.low.u32 %v323
  %v325 = vextract.high.u32 %v323
  %v326 = vmul.u32 %v319, %v310
  %v327 = vadd.s32 %v322, %v324
  %vm328 = vc.u32 %v322, %v324
  %v329 = vadd.s32 %v325, 1
  %v330 = vsel %vm328, %v329, %v325
  %v331 = vadd.s32 %v326, %v330
  %v332 = vadd.s32 %v331, 536870912
  %v333 = vshrl.u32 %v332, 30
  %v334 = vshll.u32 %v333, 30
  %v335 = vsub.s32 %v331, %v334
  %vm336 = vcmp.lt.s32.totalorder %v335, 0
  %v337 = vsub.s32 0, %v335
  %v338 = vsel %vm336, %v337, %v335
  %v339 = vclz %v338
  %v340 = vsub.s32 %v339, 2
  %vm341 = vcmp.gt.s32.totalorder 0, %v340
  %v342 = vsel %vm341, 0, %v340
  %v343 = vsub.s32 32, %v342
  %v344 = vshll.u32 %v335, %v342
  %v345 = vshrl.u32 %v327, %v343
  %v346 = vor.u32 %v344, %v345
  %v347 = vsub.s32 4294967266, %v342
  %v348 = vadd.s32 %v347, 127
  %v349 = vshll.u32 %v348, 23
  %v350 = vor.u32 4788187, %v349
  %v351 = vand.u32 2147483647, %v350
  %v353 = vcvt.s32.f32 %v346
  %v354 = vmul.f32 %v353, %v351
  %v355 = vxor.u32 %v354, 2147483648
  %v356 = vsel %vm273, %v355, %v354
  %v357 = vsub.s32 4, %v333
  %v358 = vsel %vm273, %v357, %v333
  %v359 = vsel %vm272, %v259, %v356
  %v360 = vsel %vm272, 0, %v358
  %v361 = vcosq.f32.pop %v359
  %v362 = vsinq.f32.pop %v359
  %vm363 = vweird.f32 %v259
  %v364 = vadd.s32 %v360, 3
  %v365 = vand.u32 %v364, 3
  %vm366 = vcmp.lt.s32.totalorder %v365, 2
  %vm367 = vcmp.eq.s32.totalorder %v365, 0
  %v368 = vxor.u32 %v362, 2147483648
  %v369 = vsel %vm367, %v361, %v368
  %vm370 = vcmp.eq.s32.totalorder %v365, 2
  %v371 = vxor.u32 %v361, 2147483648
  %v372 = vsel %vm370, %v371, %v362
  %v373 = vsel %vm366, %v369, %v372
  %v374 = vsel %vm363, nan, %v373
  %v375 = vand.u32 2147483647, %v260
  %vm376 = vcmp.le.f32.partialorder %v375, 0.7853982
  %vm377 = vcmp.lt.s32.totalorder %v260, 0
  %v378 = vand.u32 %v260, 2139095040
  %v379 = vshrl.u32 %v378, 23
  %v380 = vsub.s32 %v379, 127
  %v381 = vand.u32 2147483647, %v260
  %v382 = vand.u32 %v381, 8388607
  %v383 = vor.u32 %v382, 8388608
  %v384 = vsub.s32 0, %v383
  %v385 = vadd.s32 %v380, 1
  %vm386 = vcmp.gt.s32.totalorder %v385, 0
  %v387 = vsel %vm386, %v385, 0
  %v388 = vshrl.u32 %v387, 5
  %v389 = vand.u32 %v387, 31
  %v390 = vsub.s32 32, %v389
  %v391 = vshrl.u32 683565275, %v390
  %v392 = vshll.u32 683565275, %v389
  %v393 = vshrl.u32 2475754826, %v390
  %v394 = vor.u32 %v392, %v393
  %v395 = vshll.u32 2475754826, %v389
  %v396 = vshrl.u32 2131351028, %v390
  %v397 = vor.u32 %v395, %v396
  %v398 = vshll.u32 2131351028, %v389
  %v399 = vshrl.u32 2102212464, %v390
  %v400 = vor.u32 %v398, %v399
  %v401 = vshll.u32 2102212464, %v389
  %v402 = vshrl.u32 920167782, %v390
  %v403 = vor.u32 %v401, %v402
  %v404 = vshll.u32 920167782, %v389
  %v405 = vshrl.u32 1326507024, %v390
  %v406 = vor.u32 %v404, %v405
  %vm407 = vcmp.lt.s32.totalorder %v388, 1
  %vm408 = vcmp.lt.s32.totalorder %v388, 2
  %vm409 = vcmp.lt.s32.totalorder %v388, 3
  %vm410 = vcmp.lt.s32.totalorder %v388, 4
  %v411 = vsel %vm407, %v391, %v394
  %v412 = vsel %vm410, %v400, 2102212464
  %v413 = vsel %vm409, %v397, %v412
  %v414 = vsel %vm408, %v411, %v413
  %v415 = vsel %vm407, %v394, %v397
  %v416 = vsel %vm410, %v403, 920167782
  %v417 = vsel %vm409, %v400, %v416
  %v418 = vsel %vm408, %v415, %v417
  %v419 = vsel %vm407, %v397, %v400
  %v420 = vsel %vm410, %v406, 1326507024
  %v421 = vsel %vm409, %v403, %v420
  %v422 = vsel %vm408, %v419, %v421
  %v423 = vshll.u32 %v383, 8
  %v424 = vmul.u32.u64.compose %v423, %v422
  %v425 = vextract.low.u32 %v424
  %v426 = vextract.high.u32 %v424
  %v427 = vmul.u32.u64.compose %v423, %v418
  %v428 = vextract.low.u32 %v427
  %v429 = vextract.high.u32 %v427
  %v430 = vmul.u32 %v423, %v414
  %v431 = vadd.s32 %v426, %v428
  %vm432 = vc.u32 %v426, %v428
  %v433 = vadd.s32 %v429, 1
  %v434 = vsel %vm432, %v433, %v429
  %v435 = vadd.s32 %v430, %v434
  %v436 = vadd.s32 %v435, 536870912
  %v437 = vshrl.u32 %v436, 30
  %v438 = vshll.u32 %v437, 30
  %v439 = vsub.s32 %v435, %v438
  %vm440 = vcmp.lt.s32.totalorder %v439, 0
  %v441 = vsub.s32 0, %v439
  %v442 = vsel %vm440, %v441, %v439
  %v443 = vclz %v442
  %v444 = vsub.s32 %v443, 2
  %vm445 = vcmp.gt.s32.totalorder 0, %v444
  %v446 = vsel %vm445, 0, %v444
  %v447 = vsub.s32 32, %v446
  %v448 = vshll.u32 %v439, %v446
  %v449 = vshrl.u32 %v431, %v447
  %v450 = vor.u32 %v448, %v449
  %v451 = vsub.s32 4294967266, %v446
  %v452 = vadd.s32 %v451, 127
  %v453 = vshll.u32 %v452, 23
  %v454 = vor.u32 4788187, %v453
  %v455 = vand.u32 2147483647, %v454
  %v457 = vcvt.s32.f32 %v450
  %v458 = vmul.f32 %v457, %v455
  %v459 = vxor.u32 %v458, 2147483648
  %v460 = vsel %vm377, %v459, %v458
  %v461 = vsub.s32 4, %v437
  %v462 = vsel %vm377, %v461, %v437
  %v463 = vsel %vm376, %v260, %v460
  %v464 = vsel %vm376, 0, %v462
  %v465 = vcosq.f32.pop %v463
  %v466 = vsinq.f32.pop %v463
  %vm467 = vweird.f32 %v260
  %v468 = vadd.s32 %v464, 3
  %v469 = vand.u32 %v468, 3
  %vm470 = vcmp.lt.s32.totalorder %v469, 2
  %vm471 = vcmp.eq.s32.totalorder %v469, 0
  %v472 = vxor.u32 %v466, 2147483648
  %v473 = vsel %vm471, %v465, %v472
  %vm474 = vcmp.eq.s32.totalorder %v469, 2
  %v475 = vxor.u32 %v465, 2147483648
  %v476 = vsel %vm474, %v475, %v466
  %v477 = vsel %vm470, %v473, %v476
  %v478 = vsel %vm467, nan, %v477
  %v479 = vand.u32 2147483647, %v261
  %vm480 = vcmp.le.f32.partialorder %v479, 0.7853982
  %vm481 = vcmp.lt.s32.totalorder %v261, 0
  %v482 = vand.u32 %v261, 2139095040
  %v483 = vshrl.u32 %v482, 23
  %v484 = vsub.s32 %v483, 127
  %v485 = vand.u32 2147483647, %v261
  %v486 = vand.u32 %v485, 8388607
  %v487 = vor.u32 %v486, 8388608
  %v488 = vsub.s32 0, %v487
  %v489 = vadd.s32 %v484, 1
  %vm490 = vcmp.gt.s32.totalorder %v489, 0
  %v491 = vsel %vm490, %v489, 0
  %v492 = vshrl.u32 %v491, 5
  %v493 = vand.u32 %v491, 31
  %v494 = vsub.s32 32, %v493
  %v495 = vshrl.u32 683565275, %v494
  %v496 = vshll.u32 683565275, %v493
  %v497 = vshrl.u32 2475754826, %v494
  %v498 = vor.u32 %v496, %v497
  %v499 = vshll.u32 2475754826, %v493
  %v500 = vshrl.u32 2131351028, %v494
  %v501 = vor.u32 %v499, %v500
  %v502 = vshll.u32 2131351028, %v493
  %v503 = vshrl.u32 2102212464, %v494
  %v504 = vor.u32 %v502, %v503
  %v505 = vshll.u32 2102212464, %v493
  %v506 = vshrl.u32 920167782, %v494
  %v507 = vor.u32 %v505, %v506
  %v508 = vshll.u32 920167782, %v493
  %v509 = vshrl.u32 1326507024, %v494
  %v510 = vor.u32 %v508, %v509
  %vm511 = vcmp.lt.s32.totalorder %v492, 1
  %vm512 = vcmp.lt.s32.totalorder %v492, 2
  %vm513 = vcmp.lt.s32.totalorder %v492, 3
  %vm514 = vcmp.lt.s32.totalorder %v492, 4
  %v515 = vsel %vm511, %v495, %v498
  %v516 = vsel %vm514, %v504, 2102212464
  %v517 = vsel %vm513, %v501, %v516
  %v518 = vsel %vm512, %v515, %v517
  %v519 = vsel %vm511, %v498, %v501
  %v520 = vsel %vm514, %v507, 920167782
  %v521 = vsel %vm513, %v504, %v520
  %v522 = vsel %vm512, %v519, %v521
  %v523 = vsel %vm511, %v501, %v504
  %v524 = vsel %vm514, %v510, 1326507024
  %v525 = vsel %vm513, %v507, %v524
  %v526 = vsel %vm512, %v523, %v525
  %v527 = vshll.u32 %v487, 8
  %v528 = vmul.u32.u64.compose %v527, %v526
  %v529 = vextract.low.u32 %v528
  %v530 = vextract.high.u32 %v528
  %v531 = vmul.u32.u64.compose %v527, %v522
  %v532 = vextract.low.u32 %v531
  %v533 = vextract.high.u32 %v531
  %v534 = vmul.u32 %v527, %v518
  %v535 = vadd.s32 %v530, %v532
  %vm536 = vc.u32 %v530, %v532
  %v537 = vadd.s32 %v533, 1
  %v538 = vsel %vm536, %v537, %v533
  %v539 = vadd.s32 %v534, %v538
  %v540 = vadd.s32 %v539, 536870912
  %v541 = vshrl.u32 %v540, 30
  %v542 = vshll.u32 %v541, 30
  %v543 = vsub.s32 %v539, %v542
  %vm544 = vcmp.lt.s32.totalorder %v543, 0
  %v545 = vsub.s32 0, %v543
  %v546 = vsel %vm544, %v545, %v543
  %v547 = vclz %v546
  %v548 = vsub.s32 %v547, 2
  %vm549 = vcmp.gt.s32.totalorder 0, %v548
  %v550 = vsel %vm549, 0, %v548
  %v551 = vsub.s32 32, %v550
  %v552 = vshll.u32 %v543, %v550
  %v553 = vshrl.u32 %v535, %v551
  %v554 = vor.u32 %v552, %v553
  %v555 = vsub.s32 4294967266, %v550
  %v556 = vadd.s32 %v555, 127
  %v557 = vshll.u32 %v556, 23
  %v558 = vor.u32 4788187, %v557
  %v559 = vand.u32 2147483647, %v558
  %v561 = vcvt.s32.f32 %v554
  %v562 = vmul.f32 %v561, %v559
  %v563 = vxor.u32 %v562, 2147483648
  %v564 = vsel %vm481, %v563, %v562
  %v565 = vsub.s32 4, %v541
  %v566 = vsel %vm481, %v565, %v541
  %v567 = vsel %vm480, %v261, %v564
  %v568 = vsel %vm480, 0, %v566
  %v569 = vcosq.f32.pop %v567
  %v570 = vsinq.f32.pop %v567
  %vm571 = vweird.f32 %v261
  %v572 = vadd.s32 %v568, 3
  %v573 = vand.u32 %v572, 3
  %vm574 = vcmp.lt.s32.totalorder %v573, 2
  %vm575 = vcmp.eq.s32.totalorder %v573, 0
  %v576 = vxor.u32 %v570, 2147483648
  %v577 = vsel %vm575, %v569, %v576
  %vm578 = vcmp.eq.s32.totalorder %v573, 2
  %v579 = vxor.u32 %v569, 2147483648
  %v580 = vsel %vm578, %v579, %v570
  %v581 = vsel %vm574, %v577, %v580
  %v582 = vsel %vm571, nan, %v581
  %v583 = vand.u32 2147483647, %v262
  %vm584 = vcmp.le.f32.partialorder %v583, 0.7853982
  %vm585 = vcmp.lt.s32.totalorder %v262, 0
  %v586 = vand.u32 %v262, 2139095040
  %v587 = vshrl.u32 %v586, 23
  %v588 = vsub.s32 %v587, 127
  %v589 = vand.u32 2147483647, %v262
  %v590 = vand.u32 %v589, 8388607
  %v591 = vor.u32 %v590, 8388608
  %v592 = vsub.s32 0, %v591
  %v593 = vadd.s32 %v588, 1
  %vm594 = vcmp.gt.s32.totalorder %v593, 0
  %v595 = vsel %vm594, %v593, 0
  %v596 = vshrl.u32 %v595, 5
  %v597 = vand.u32 %v595, 31
  %v598 = vsub.s32 32, %v597
  %v599 = vshrl.u32 683565275, %v598
  %v600 = vshll.u32 683565275, %v597
  %v601 = vshrl.u32 2475754826, %v598
  %v602 = vor.u32 %v600, %v601
  %v603 = vshll.u32 2475754826, %v597
  %v604 = vshrl.u32 2131351028, %v598
  %v605 = vor.u32 %v603, %v604
  %v606 = vshll.u32 2131351028, %v597
  %v607 = vshrl.u32 2102212464, %v598
  %v608 = vor.u32 %v606, %v607
  %v609 = vshll.u32 2102212464, %v597
  %v610 = vshrl.u32 920167782, %v598
  %v611 = vor.u32 %v609, %v610
  %v612 = vshll.u32 920167782, %v597
  %v613 = vshrl.u32 1326507024, %v598
  %v614 = vor.u32 %v612, %v613
  %vm615 = vcmp.lt.s32.totalorder %v596, 1
  %vm616 = vcmp.lt.s32.totalorder %v596, 2
  %vm617 = vcmp.lt.s32.totalorder %v596, 3
  %vm618 = vcmp.lt.s32.totalorder %v596, 4
  %v619 = vsel %vm615, %v599, %v602
  %v620 = vsel %vm618, %v608, 2102212464
  %v621 = vsel %vm617, %v605, %v620
  %v622 = vsel %vm616, %v619, %v621
  %v623 = vsel %vm615, %v602, %v605
  %v624 = vsel %vm618, %v611, 920167782
  %v625 = vsel %vm617, %v608, %v624
  %v626 = vsel %vm616, %v623, %v625
  %v627 = vsel %vm615, %v605, %v608
  %v628 = vsel %vm618, %v614, 1326507024
  %v629 = vsel %vm617, %v611, %v628
  %v630 = vsel %vm616, %v627, %v629
  %v631 = vshll.u32 %v591, 8
  %v632 = vmul.u32.u64.compose %v631, %v630
  %v633 = vextract.low.u32 %v632
  %v634 = vextract.high.u32 %v632
  %v635 = vmul.u32.u64.compose %v631, %v626
  %v636 = vextract.low.u32 %v635
  %v637 = vextract.high.u32 %v635
  %v638 = vmul.u32 %v631, %v622
  %v639 = vadd.s32 %v634, %v636
  %vm640 = vc.u32 %v634, %v636
  %v641 = vadd.s32 %v637, 1
  %v642 = vsel %vm640, %v641, %v637
  %v643 = vadd.s32 %v638, %v642
  %v644 = vadd.s32 %v643, 536870912
  %v645 = vshrl.u32 %v644, 30
  %v646 = vshll.u32 %v645, 30
  %v647 = vsub.s32 %v643, %v646
  %vm648 = vcmp.lt.s32.totalorder %v647, 0
  %v649 = vsub.s32 0, %v647
  %v650 = vsel %vm648, %v649, %v647
  %v651 = vclz %v650
  %v652 = vsub.s32 %v651, 2
  %vm653 = vcmp.gt.s32.totalorder 0, %v652
  %v654 = vsel %vm653, 0, %v652
  %v655 = vsub.s32 32, %v654
  %v656 = vshll.u32 %v647, %v654
  %v657 = vshrl.u32 %v639, %v655
  %v658 = vor.u32 %v656, %v657
  %v659 = vsub.s32 4294967266, %v654
  %v660 = vadd.s32 %v659, 127
  %v661 = vshll.u32 %v660, 23
  %v662 = vor.u32 4788187, %v661
  %v663 = vand.u32 2147483647, %v662
  %v665 = vcvt.s32.f32 %v658
  %v666 = vmul.f32 %v665, %v663
  %v667 = vxor.u32 %v666, 2147483648
  %v668 = vsel %vm585, %v667, %v666
  %v669 = vsub.s32 4, %v645
  %v670 = vsel %vm585, %v669, %v645
  %v671 = vsel %vm584, %v262, %v668
  %v672 = vsel %vm584, 0, %v670
  %v673 = vcosq.f32.pop %v671
  %v674 = vsinq.f32.pop %v671
  %vm675 = vweird.f32 %v262
  %v676 = vadd.s32 %v672, 3
  %v677 = vand.u32 %v676, 3
  %vm678 = vcmp.lt.s32.totalorder %v677, 2
  %vm679 = vcmp.eq.s32.totalorder %v677, 0
  %v680 = vxor.u32 %v674, 2147483648
  %v681 = vsel %vm679, %v673, %v680
  %vm682 = vcmp.eq.s32.totalorder %v677, 2
  %v683 = vxor.u32 %v673, 2147483648
  %v684 = vsel %vm682, %v683, %v674
  %v685 = vsel %vm678, %v681, %v684
  %v686 = vsel %vm675, nan, %v685
  %v687 = vand.u32 2147483647, %v263
  %vm688 = vcmp.le.f32.partialorder %v687, 0.7853982
  %vm689 = vcmp.lt.s32.totalorder %v263, 0
  %v690 = vand.u32 %v263, 2139095040
  %v691 = vshrl.u32 %v690, 23
  %v692 = vsub.s32 %v691, 127
  %v693 = vand.u32 2147483647, %v263
  %v694 = vand.u32 %v693, 8388607
  %v695 = vor.u32 %v694, 8388608
  %v696 = vsub.s32 0, %v695
  %v697 = vadd.s32 %v692, 1
  %vm698 = vcmp.gt.s32.totalorder %v697, 0
  %v699 = vsel %vm698, %v697, 0
  %v700 = vshrl.u32 %v699, 5
  %v701 = vand.u32 %v699, 31
  %v702 = vsub.s32 32, %v701
  %v703 = vshrl.u32 683565275, %v702
  %v704 = vshll.u32 683565275, %v701
  %v705 = vshrl.u32 2475754826, %v702
  %v706 = vor.u32 %v704, %v705
  %v707 = vshll.u32 2475754826, %v701
  %v708 = vshrl.u32 2131351028, %v702
  %v709 = vor.u32 %v707, %v708
  %v710 = vshll.u32 2131351028, %v701
  %v711 = vshrl.u32 2102212464, %v702
  %v712 = vor.u32 %v710, %v711
  %v713 = vshll.u32 2102212464, %v701
  %v714 = vshrl.u32 920167782, %v702
  %v715 = vor.u32 %v713, %v714
  %v716 = vshll.u32 920167782, %v701
  %v717 = vshrl.u32 1326507024, %v702
  %v718 = vor.u32 %v716, %v717
  %vm719 = vcmp.lt.s32.totalorder %v700, 1
  %vm720 = vcmp.lt.s32.totalorder %v700, 2
  %vm721 = vcmp.lt.s32.totalorder %v700, 3
  %vm722 = vcmp.lt.s32.totalorder %v700, 4
  %v723 = vsel %vm719, %v703, %v706
  %v724 = vsel %vm722, %v712, 2102212464
  %v725 = vsel %vm721, %v709, %v724
  %v726 = vsel %vm720, %v723, %v725
  %v727 = vsel %vm719, %v706, %v709
  %v728 = vsel %vm722, %v715, 920167782
  %v729 = vsel %vm721, %v712, %v728
  %v730 = vsel %vm720, %v727, %v729
  %v731 = vsel %vm719, %v709, %v712
  %v732 = vsel %vm722, %v718, 1326507024
  %v733 = vsel %vm721, %v715, %v732
  %v734 = vsel %vm720, %v731, %v733
  %v735 = vshll.u32 %v695, 8
  %v736 = vmul.u32.u64.compose %v735, %v734
  %v737 = vextract.low.u32 %v736
  %v738 = vextract.high.u32 %v736
  %v739 = vmul.u32.u64.compose %v735, %v730
  %v740 = vextract.low.u32 %v739
  %v741 = vextract.high.u32 %v739
  %v742 = vmul.u32 %v735, %v726
  %v743 = vadd.s32 %v738, %v740
  %vm744 = vc.u32 %v738, %v740
  %v745 = vadd.s32 %v741, 1
  %v746 = vsel %vm744, %v745, %v741
  %v747 = vadd.s32 %v742, %v746
  %v748 = vadd.s32 %v747, 536870912
  %v749 = vshrl.u32 %v748, 30
  %v750 = vshll.u32 %v749, 30
  %v751 = vsub.s32 %v747, %v750
  %vm752 = vcmp.lt.s32.totalorder %v751, 0
  %v753 = vsub.s32 0, %v751
  %v754 = vsel %vm752, %v753, %v751
  %v755 = vclz %v754
  %v756 = vsub.s32 %v755, 2
  %vm757 = vcmp.gt.s32.totalorder 0, %v756
  %v758 = vsel %vm757, 0, %v756
  %v759 = vsub.s32 32, %v758
  %v760 = vshll.u32 %v751, %v758
  %v761 = vshrl.u32 %v743, %v759
  %v762 = vor.u32 %v760, %v761
  %v763 = vsub.s32 4294967266, %v758
  %v764 = vadd.s32 %v763, 127
  %v765 = vshll.u32 %v764, 23
  %v766 = vor.u32 4788187, %v765
  %v767 = vand.u32 2147483647, %v766
  %v769 = vcvt.s32.f32 %v762
  %v770 = vmul.f32 %v769, %v767
  %v771 = vxor.u32 %v770, 2147483648
  %v772 = vsel %vm689, %v771, %v770
  %v773 = vsub.s32 4, %v749
  %v774 = vsel %vm689, %v773, %v749
  %v775 = vsel %vm688, %v263, %v772
  %v776 = vsel %vm688, 0, %v774
  %v777 = vcosq.f32.pop %v775
  %v778 = vsinq.f32.pop %v775
  %vm779 = vweird.f32 %v263
  %v780 = vadd.s32 %v776, 3
  %v781 = vand.u32 %v780, 3
  %vm782 = vcmp.lt.s32.totalorder %v781, 2
  %vm783 = vcmp.eq.s32.totalorder %v781, 0
  %v784 = vxor.u32 %v778, 2147483648
  %v785 = vsel %vm783, %v777, %v784
  %vm786 = vcmp.eq.s32.totalorder %v781, 2
  %v787 = vxor.u32 %v777, 2147483648
  %v788 = vsel %vm786, %v787, %v778
  %v789 = vsel %vm782, %v785, %v788
  %v790 = vsel %vm779, nan, %v789
  %v791 = vand.u32 2147483647, %v264
  %vm792 = vcmp.le.f32.partialorder %v791, 0.7853982
  %vm793 = vcmp.lt.s32.totalorder %v264, 0
  %v794 = vand.u32 %v264, 2139095040
  %v795 = vshrl.u32 %v794, 23
  %v796 = vsub.s32 %v795, 127
  %v797 = vand.u32 2147483647, %v264
  %v798 = vand.u32 %v797, 8388607
  %v799 = vor.u32 %v798, 8388608
  %v800 = vsub.s32 0, %v799
  %v801 = vadd.s32 %v796, 1
  %vm802 = vcmp.gt.s32.totalorder %v801, 0
  %v803 = vsel %vm802, %v801, 0
  %v804 = vshrl.u32 %v803, 5
  %v805 = vand.u32 %v803, 31
  %v806 = vsub.s32 32, %v805
  %v807 = vshrl.u32 683565275, %v806
  %v808 = vshll.u32 683565275, %v805
  %v809 = vshrl.u32 2475754826, %v806
  %v810 = vor.u32 %v808, %v809
  %v811 = vshll.u32 2475754826, %v805
  %v812 = vshrl.u32 2131351028, %v806
  %v813 = vor.u32 %v811, %v812
  %v814 = vshll.u32 2131351028, %v805
  %v815 = vshrl.u32 2102212464, %v806
  %v816 = vor.u32 %v814, %v815
  %v817 = vshll.u32 2102212464, %v805
  %v818 = vshrl.u32 920167782, %v806
  %v819 = vor.u32 %v817, %v818
  %v820 = vshll.u32 920167782, %v805
  %v821 = vshrl.u32 1326507024, %v806
  %v822 = vor.u32 %v820, %v821
  %vm823 = vcmp.lt.s32.totalorder %v804, 1
  %vm824 = vcmp.lt.s32.totalorder %v804, 2
  %vm825 = vcmp.lt.s32.totalorder %v804, 3
  %vm826 = vcmp.lt.s32.totalorder %v804, 4
  %v827 = vsel %vm823, %v807, %v810
  %v828 = vsel %vm826, %v816, 2102212464
  %v829 = vsel %vm825, %v813, %v828
  %v830 = vsel %vm824, %v827, %v829
  %v831 = vsel %vm823, %v810, %v813
  %v832 = vsel %vm826, %v819, 920167782
  %v833 = vsel %vm825, %v816, %v832
  %v834 = vsel %vm824, %v831, %v833
  %v835 = vsel %vm823, %v813, %v816
  %v836 = vsel %vm826, %v822, 1326507024
  %v837 = vsel %vm825, %v819, %v836
  %v838 = vsel %vm824, %v835, %v837
  %v839 = vshll.u32 %v799, 8
  %v840 = vmul.u32.u64.compose %v839, %v838
  %v841 = vextract.low.u32 %v840
  %v842 = vextract.high.u32 %v840
  %v843 = vmul.u32.u64.compose %v839, %v834
  %v844 = vextract.low.u32 %v843
  %v845 = vextract.high.u32 %v843
  %v846 = vmul.u32 %v839, %v830
  %v847 = vadd.s32 %v842, %v844
  %vm848 = vc.u32 %v842, %v844
  %v849 = vadd.s32 %v845, 1
  %v850 = vsel %vm848, %v849, %v845
  %v851 = vadd.s32 %v846, %v850
  %v852 = vadd.s32 %v851, 536870912
  %v853 = vshrl.u32 %v852, 30
  %v854 = vshll.u32 %v853, 30
  %v855 = vsub.s32 %v851, %v854
  %vm856 = vcmp.lt.s32.totalorder %v855, 0
  %v857 = vsub.s32 0, %v855
  %v858 = vsel %vm856, %v857, %v855
  %v859 = vclz %v858
  %v860 = vsub.s32 %v859, 2
  %vm861 = vcmp.gt.s32.totalorder 0, %v860
  %v862 = vsel %vm861, 0, %v860
  %v863 = vsub.s32 32, %v862
  %v864 = vshll.u32 %v855, %v862
  %v865 = vshrl.u32 %v847, %v863
  %v866 = vor.u32 %v864, %v865
  %v867 = vsub.s32 4294967266, %v862
  %v868 = vadd.s32 %v867, 127
  %v869 = vshll.u32 %v868, 23
  %v870 = vor.u32 4788187, %v869
  %v871 = vand.u32 2147483647, %v870
  %v873 = vcvt.s32.f32 %v866
  %v874 = vmul.f32 %v873, %v871
  %v875 = vxor.u32 %v874, 2147483648
  %v876 = vsel %vm793, %v875, %v874
  %v877 = vsub.s32 4, %v853
  %v878 = vsel %vm793, %v877, %v853
  %v879 = vsel %vm792, %v264, %v876
  %v880 = vsel %vm792, 0, %v878
  %v881 = vcosq.f32.pop %v879
  %v882 = vsinq.f32.pop %v879
  %vm883 = vweird.f32 %v264
  %v884 = vadd.s32 %v880, 3
  %v885 = vand.u32 %v884, 3
  %vm886 = vcmp.lt.s32.totalorder %v885, 2
  %vm887 = vcmp.eq.s32.totalorder %v885, 0
  %v888 = vxor.u32 %v882, 2147483648
  %v889 = vsel %vm887, %v881, %v888
  %vm890 = vcmp.eq.s32.totalorder %v885, 2
  %v891 = vxor.u32 %v881, 2147483648
  %v892 = vsel %vm890, %v891, %v882
  %v893 = vsel %vm886, %v889, %v892
  %v894 = vsel %vm883, nan, %v893
  %v895 = vand.u32 2147483647, %v265
  %vm896 = vcmp.le.f32.partialorder %v895, 0.7853982
  %vm897 = vcmp.lt.s32.totalorder %v265, 0
  %v898 = vand.u32 %v265, 2139095040
  %v899 = vshrl.u32 %v898, 23
  %v900 = vsub.s32 %v899, 127
  %v901 = vand.u32 2147483647, %v265
  %v902 = vand.u32 %v901, 8388607
  %v903 = vor.u32 %v902, 8388608
  %v904 = vsub.s32 0, %v903
  %v905 = vadd.s32 %v900, 1
  %vm906 = vcmp.gt.s32.totalorder %v905, 0
  %v907 = vsel %vm906, %v905, 0
  %v908 = vshrl.u32 %v907, 5
  %v909 = vand.u32 %v907, 31
  %v910 = vsub.s32 32, %v909
  %v911 = vshrl.u32 683565275, %v910
  %v912 = vshll.u32 683565275, %v909
  %v913 = vshrl.u32 2475754826, %v910
  %v914 = vor.u32 %v912, %v913
  %v915 = vshll.u32 2475754826, %v909
  %v916 = vshrl.u32 2131351028, %v910
  %v917 = vor.u32 %v915, %v916
  %v918 = vshll.u32 2131351028, %v909
  %v919 = vshrl.u32 2102212464, %v910
  %v920 = vor.u32 %v918, %v919
  %v921 = vshll.u32 2102212464, %v909
  %v922 = vshrl.u32 920167782, %v910
  %v923 = vor.u32 %v921, %v922
  %v924 = vshll.u32 920167782, %v909
  %v925 = vshrl.u32 1326507024, %v910
  %v926 = vor.u32 %v924, %v925
  %vm927 = vcmp.lt.s32.totalorder %v908, 1
  %vm928 = vcmp.lt.s32.totalorder %v908, 2
  %vm929 = vcmp.lt.s32.totalorder %v908, 3
  %vm930 = vcmp.lt.s32.totalorder %v908, 4
  %v931 = vsel %vm927, %v911, %v914
  %v932 = vsel %vm930, %v920, 2102212464
  %v933 = vsel %vm929, %v917, %v932
  %v934 = vsel %vm928, %v931, %v933
  %v935 = vsel %vm927, %v914, %v917
  %v936 = vsel %vm930, %v923, 920167782
  %v937 = vsel %vm929, %v920, %v936
  %v938 = vsel %vm928, %v935, %v937
  %v939 = vsel %vm927, %v917, %v920
  %v940 = vsel %vm930, %v926, 1326507024
  %v941 = vsel %vm929, %v923, %v940
  %v942 = vsel %vm928, %v939, %v941
  %v943 = vshll.u32 %v903, 8
  %v944 = vmul.u32.u64.compose %v943, %v942
  %v945 = vextract.low.u32 %v944
  %v946 = vextract.high.u32 %v944
  %v947 = vmul.u32.u64.compose %v943, %v938
  %v948 = vextract.low.u32 %v947
  %v949 = vextract.high.u32 %v947
  %v950 = vmul.u32 %v943, %v934
  %v951 = vadd.s32 %v946, %v948
  %vm952 = vc.u32 %v946, %v948
  %v953 = vadd.s32 %v949, 1
  %v954 = vsel %vm952, %v953, %v949
  %v955 = vadd.s32 %v950, %v954
  %v956 = vadd.s32 %v955, 536870912
  %v957 = vshrl.u32 %v956, 30
  %v958 = vshll.u32 %v957, 30
  %v959 = vsub.s32 %v955, %v958
  %vm960 = vcmp.lt.s32.totalorder %v959, 0
  %v961 = vsub.s32 0, %v959
  %v962 = vsel %vm960, %v961, %v959
  %v963 = vclz %v962
  %v964 = vsub.s32 %v963, 2
  %vm965 = vcmp.gt.s32.totalorder 0, %v964
  %v966 = vsel %vm965, 0, %v964
  %v967 = vsub.s32 32, %v966
  %v968 = vshll.u32 %v959, %v966
  %v969 = vshrl.u32 %v951, %v967
  %v970 = vor.u32 %v968, %v969
  %v971 = vsub.s32 4294967266, %v966
  %v972 = vadd.s32 %v971, 127
  %v973 = vshll.u32 %v972, 23
  %v974 = vor.u32 4788187, %v973
  %v975 = vand.u32 2147483647, %v974
  %v977 = vcvt.s32.f32 %v970
  %v978 = vmul.f32 %v977, %v975
  %v979 = vxor.u32 %v978, 2147483648
  %v980 = vsel %vm897, %v979, %v978
  %v981 = vsub.s32 4, %v957
  %v982 = vsel %vm897, %v981, %v957
  %v983 = vsel %vm896, %v265, %v980
  %v984 = vsel %vm896, 0, %v982
  %v985 = vcosq.f32.pop %v983
  %v986 = vsinq.f32.pop %v983
  %vm987 = vweird.f32 %v265
  %v988 = vadd.s32 %v984, 3
  %v989 = vand.u32 %v988, 3
  %vm990 = vcmp.lt.s32.totalorder %v989, 2
  %vm991 = vcmp.eq.s32.totalorder %v989, 0
  %v992 = vxor.u32 %v986, 2147483648
  %v993 = vsel %vm991, %v985, %v992
  %vm994 = vcmp.eq.s32.totalorder %v989, 2
  %v995 = vxor.u32 %v985, 2147483648
  %v996 = vsel %vm994, %v995, %v986
  %v997 = vsel %vm990, %v993, %v996
  %v998 = vsel %vm987, nan, %v997
  %v999 = vand.u32 2147483647, %v266
  %vm1000 = vcmp.le.f32.partialorder %v999, 0.7853982
  %vm1001 = vcmp.lt.s32.totalorder %v266, 0
  %v1002 = vand.u32 %v266, 2139095040
  %v1003 = vshrl.u32 %v1002, 23
  %v1004 = vsub.s32 %v1003, 127
  %v1005 = vand.u32 2147483647, %v266
  %v1006 = vand.u32 %v1005, 8388607
  %v1007 = vor.u32 %v1006, 8388608
  %v1008 = vsub.s32 0, %v1007
  %v1009 = vadd.s32 %v1004, 1
  %vm1010 = vcmp.gt.s32.totalorder %v1009, 0
  %v1011 = vsel %vm1010, %v1009, 0
  %v1012 = vshrl.u32 %v1011, 5
  %v1013 = vand.u32 %v1011, 31
  %v1014 = vsub.s32 32, %v1013
  %v1015 = vshrl.u32 683565275, %v1014
  %v1016 = vshll.u32 683565275, %v1013
  %v1017 = vshrl.u32 2475754826, %v1014
  %v1018 = vor.u32 %v1016, %v1017
  %v1019 = vshll.u32 2475754826, %v1013
  %v1020 = vshrl.u32 2131351028, %v1014
  %v1021 = vor.u32 %v1019, %v1020
  %v1022 = vshll.u32 2131351028, %v1013
  %v1023 = vshrl.u32 2102212464, %v1014
  %v1024 = vor.u32 %v1022, %v1023
  %v1025 = vshll.u32 2102212464, %v1013
  %v1026 = vshrl.u32 920167782, %v1014
  %v1027 = vor.u32 %v1025, %v1026
  %v1028 = vshll.u32 920167782, %v1013
  %v1029 = vshrl.u32 1326507024, %v1014
  %v1030 = vor.u32 %v1028, %v1029
  %vm1031 = vcmp.lt.s32.totalorder %v1012, 1
  %vm1032 = vcmp.lt.s32.totalorder %v1012, 2
  %vm1033 = vcmp.lt.s32.totalorder %v1012, 3
  %vm1034 = vcmp.lt.s32.totalorder %v1012, 4
  %v1035 = vsel %vm1031, %v1015, %v1018
  %v1036 = vsel %vm1034, %v1024, 2102212464
  %v1037 = vsel %vm1033, %v1021, %v1036
  %v1038 = vsel %vm1032, %v1035, %v1037
  %v1039 = vsel %vm1031, %v1018, %v1021
  %v1040 = vsel %vm1034, %v1027, 920167782
  %v1041 = vsel %vm1033, %v1024, %v1040
  %v1042 = vsel %vm1032, %v1039, %v1041
  %v1043 = vsel %vm1031, %v1021, %v1024
  %v1044 = vsel %vm1034, %v1030, 1326507024
  %v1045 = vsel %vm1033, %v1027, %v1044
  %v1046 = vsel %vm1032, %v1043, %v1045
  %v1047 = vshll.u32 %v1007, 8
  %v1048 = vmul.u32.u64.compose %v1047, %v1046
  %v1049 = vextract.low.u32 %v1048
  %v1050 = vextract.high.u32 %v1048
  %v1051 = vmul.u32.u64.compose %v1047, %v1042
  %v1052 = vextract.low.u32 %v1051
  %v1053 = vextract.high.u32 %v1051
  %v1054 = vmul.u32 %v1047, %v1038
  %v1055 = vadd.s32 %v1050, %v1052
  %vm1056 = vc.u32 %v1050, %v1052
  %v1057 = vadd.s32 %v1053, 1
  %v1058 = vsel %vm1056, %v1057, %v1053
  %v1059 = vadd.s32 %v1054, %v1058
  %v1060 = vadd.s32 %v1059, 536870912
  %v1061 = vshrl.u32 %v1060, 30
  %v1062 = vshll.u32 %v1061, 30
  %v1063 = vsub.s32 %v1059, %v1062
  %vm1064 = vcmp.lt.s32.totalorder %v1063, 0
  %v1065 = vsub.s32 0, %v1063
  %v1066 = vsel %vm1064, %v1065, %v1063
  %v1067 = vclz %v1066
  %v1068 = vsub.s32 %v1067, 2
  %vm1069 = vcmp.gt.s32.totalorder 0, %v1068
  %v1070 = vsel %vm1069, 0, %v1068
  %v1071 = vsub.s32 32, %v1070
  %v1072 = vshll.u32 %v1063, %v1070
  %v1073 = vshrl.u32 %v1055, %v1071
  %v1074 = vor.u32 %v1072, %v1073
  %v1075 = vsub.s32 4294967266, %v1070
  %v1076 = vadd.s32 %v1075, 127
  %v1077 = vshll.u32 %v1076, 23
  %v1078 = vor.u32 4788187, %v1077
  %v1079 = vand.u32 2147483647, %v1078
  %v1081 = vcvt.s32.f32 %v1074
  %v1082 = vmul.f32 %v1081, %v1079
  %v1083 = vxor.u32 %v1082, 2147483648
  %v1084 = vsel %vm1001, %v1083, %v1082
  %v1085 = vsub.s32 4, %v1061
  %v1086 = vsel %vm1001, %v1085, %v1061
  %v1087 = vsel %vm1000, %v266, %v1084
  %v1088 = vsel %vm1000, 0, %v1086
  %v1089 = vcosq.f32.pop %v1087
  %v1090 = vsinq.f32.pop %v1087
  %vm1091 = vweird.f32 %v266
  %v1092 = vadd.s32 %v1088, 3
  %v1093 = vand.u32 %v1092, 3
  %vm1094 = vcmp.lt.s32.totalorder %v1093, 2
  %vm1095 = vcmp.eq.s32.totalorder %v1093, 0
  %v1096 = vxor.u32 %v1090, 2147483648
  %v1097 = vsel %vm1095, %v1089, %v1096
  %vm1098 = vcmp.eq.s32.totalorder %v1093, 2
  %v1099 = vxor.u32 %v1089, 2147483648
  %v1100 = vsel %vm1098, %v1099, %v1090
  %v1101 = vsel %vm1094, %v1097, %v1100
  %v1102 = vsel %vm1091, nan, %v1101
  %v1103 = vand.u32 2147483647, %v267
  %vm1104 = vcmp.le.f32.partialorder %v1103, 0.7853982
  %vm1105 = vcmp.lt.s32.totalorder %v267, 0
  %v1106 = vand.u32 %v267, 2139095040
  %v1107 = vshrl.u32 %v1106, 23
  %v1108 = vsub.s32 %v1107, 127
  %v1109 = vand.u32 2147483647, %v267
  %v1110 = vand.u32 %v1109, 8388607
  %v1111 = vor.u32 %v1110, 8388608
  %v1112 = vsub.s32 0, %v1111
  %v1113 = vadd.s32 %v1108, 1
  %vm1114 = vcmp.gt.s32.totalorder %v1113, 0
  %v1115 = vsel %vm1114, %v1113, 0
  %v1116 = vshrl.u32 %v1115, 5
  %v1117 = vand.u32 %v1115, 31
  %v1118 = vsub.s32 32, %v1117
  %v1119 = vshrl.u32 683565275, %v1118
  %v1120 = vshll.u32 683565275, %v1117
  %v1121 = vshrl.u32 2475754826, %v1118
  %v1122 = vor.u32 %v1120, %v1121
  %v1123 = vshll.u32 2475754826, %v1117
  %v1124 = vshrl.u32 2131351028, %v1118
  %v1125 = vor.u32 %v1123, %v1124
  %v1126 = vshll.u32 2131351028, %v1117
  %v1127 = vshrl.u32 2102212464, %v1118
  %v1128 = vor.u32 %v1126, %v1127
  %v1129 = vshll.u32 2102212464, %v1117
  %v1130 = vshrl.u32 920167782, %v1118
  %v1131 = vor.u32 %v1129, %v1130
  %v1132 = vshll.u32 920167782, %v1117
  %v1133 = vshrl.u32 1326507024, %v1118
  %v1134 = vor.u32 %v1132, %v1133
  %vm1135 = vcmp.lt.s32.totalorder %v1116, 1
  %vm1136 = vcmp.lt.s32.totalorder %v1116, 2
  %vm1137 = vcmp.lt.s32.totalorder %v1116, 3
  %vm1138 = vcmp.lt.s32.totalorder %v1116, 4
  %v1139 = vsel %vm1135, %v1119, %v1122
  %v1140 = vsel %vm1138, %v1128, 2102212464
  %v1141 = vsel %vm1137, %v1125, %v1140
  %v1142 = vsel %vm1136, %v1139, %v1141
  %v1143 = vsel %vm1135, %v1122, %v1125
  %v1144 = vsel %vm1138, %v1131, 920167782
  %v1145 = vsel %vm1137, %v1128, %v1144
  %v1146 = vsel %vm1136, %v1143, %v1145
  %v1147 = vsel %vm1135, %v1125, %v1128
  %v1148 = vsel %vm1138, %v1134, 1326507024
  %v1149 = vsel %vm1137, %v1131, %v1148
  %v1150 = vsel %vm1136, %v1147, %v1149
  %v1151 = vshll.u32 %v1111, 8
  %v1152 = vmul.u32.u64.compose %v1151, %v1150
  %v1153 = vextract.low.u32 %v1152
  %v1154 = vextract.high.u32 %v1152
  %v1155 = vmul.u32.u64.compose %v1151, %v1146
  %v1156 = vextract.low.u32 %v1155
  %v1157 = vextract.high.u32 %v1155
  %v1158 = vmul.u32 %v1151, %v1142
  %v1159 = vadd.s32 %v1154, %v1156
  %vm1160 = vc.u32 %v1154, %v1156
  %v1161 = vadd.s32 %v1157, 1
  %v1162 = vsel %vm1160, %v1161, %v1157
  %v1163 = vadd.s32 %v1158, %v1162
  %v1164 = vadd.s32 %v1163, 536870912
  %v1165 = vshrl.u32 %v1164, 30
  %v1166 = vshll.u32 %v1165, 30
  %v1167 = vsub.s32 %v1163, %v1166
  %vm1168 = vcmp.lt.s32.totalorder %v1167, 0
  %v1169 = vsub.s32 0, %v1167
  %v1170 = vsel %vm1168, %v1169, %v1167
  %v1171 = vclz %v1170
  %v1172 = vsub.s32 %v1171, 2
  %vm1173 = vcmp.gt.s32.totalorder 0, %v1172
  %v1174 = vsel %vm1173, 0, %v1172
  %v1175 = vsub.s32 32, %v1174
  %v1176 = vshll.u32 %v1167, %v1174
  %v1177 = vshrl.u32 %v1159, %v1175
  %v1178 = vor.u32 %v1176, %v1177
  %v1179 = vsub.s32 4294967266, %v1174
  %v1180 = vadd.s32 %v1179, 127
  %v1181 = vshll.u32 %v1180, 23
  %v1182 = vor.u32 4788187, %v1181
  %v1183 = vand.u32 2147483647, %v1182
  %v1185 = vcvt.s32.f32 %v1178
  %v1186 = vmul.f32 %v1185, %v1183
  %v1187 = vxor.u32 %v1186, 2147483648
  %v1188 = vsel %vm1105, %v1187, %v1186
  %v1189 = vsub.s32 4, %v1165
  %v1190 = vsel %vm1105, %v1189, %v1165
  %v1191 = vsel %vm1104, %v267, %v1188
  %v1192 = vsel %vm1104, 0, %v1190
  %v1193 = vcosq.f32.pop %v1191
  %v1194 = vsinq.f32.pop %v1191
  %vm1195 = vweird.f32 %v267
  %v1196 = vadd.s32 %v1192, 3
  %v1197 = vand.u32 %v1196, 3
  %vm1198 = vcmp.lt.s32.totalorder %v1197, 2
  %vm1199 = vcmp.eq.s32.totalorder %v1197, 0
  %v1200 = vxor.u32 %v1194, 2147483648
  %v1201 = vsel %vm1199, %v1193, %v1200
  %vm1202 = vcmp.eq.s32.totalorder %v1197, 2
  %v1203 = vxor.u32 %v1193, 2147483648
  %v1204 = vsel %vm1202, %v1203, %v1194
  %v1205 = vsel %vm1198, %v1201, %v1204
  %v1206 = vsel %vm1195, nan, %v1205
  %v1207 = vand.u32 2147483647, %v268
  %vm1208 = vcmp.le.f32.partialorder %v1207, 0.7853982
  %vm1209 = vcmp.lt.s32.totalorder %v268, 0
  %v1210 = vand.u32 %v268, 2139095040
  %v1211 = vshrl.u32 %v1210, 23
  %v1212 = vsub.s32 %v1211, 127
  %v1213 = vand.u32 2147483647, %v268
  %v1214 = vand.u32 %v1213, 8388607
  %v1215 = vor.u32 %v1214, 8388608
  %v1216 = vsub.s32 0, %v1215
  %v1217 = vadd.s32 %v1212, 1
  %vm1218 = vcmp.gt.s32.totalorder %v1217, 0
  %v1219 = vsel %vm1218, %v1217, 0
  %v1220 = vshrl.u32 %v1219, 5
  %v1221 = vand.u32 %v1219, 31
  %v1222 = vsub.s32 32, %v1221
  %v1223 = vshrl.u32 683565275, %v1222
  %v1224 = vshll.u32 683565275, %v1221
  %v1225 = vshrl.u32 2475754826, %v1222
  %v1226 = vor.u32 %v1224, %v1225
  %v1227 = vshll.u32 2475754826, %v1221
  %v1228 = vshrl.u32 2131351028, %v1222
  %v1229 = vor.u32 %v1227, %v1228
  %v1230 = vshll.u32 2131351028, %v1221
  %v1231 = vshrl.u32 2102212464, %v1222
  %v1232 = vor.u32 %v1230, %v1231
  %v1233 = vshll.u32 2102212464, %v1221
  %v1234 = vshrl.u32 920167782, %v1222
  %v1235 = vor.u32 %v1233, %v1234
  %v1236 = vshll.u32 920167782, %v1221
  %v1237 = vshrl.u32 1326507024, %v1222
  %v1238 = vor.u32 %v1236, %v1237
  %vm1239 = vcmp.lt.s32.totalorder %v1220, 1
  %vm1240 = vcmp.lt.s32.totalorder %v1220, 2
  %vm1241 = vcmp.lt.s32.totalorder %v1220, 3
  %vm1242 = vcmp.lt.s32.totalorder %v1220, 4
  %v1243 = vsel %vm1239, %v1223, %v1226
  %v1244 = vsel %vm1242, %v1232, 2102212464
  %v1245 = vsel %vm1241, %v1229, %v1244
  %v1246 = vsel %vm1240, %v1243, %v1245
  %v1247 = vsel %vm1239, %v1226, %v1229
  %v1248 = vsel %vm1242, %v1235, 920167782
  %v1249 = vsel %vm1241, %v1232, %v1248
  %v1250 = vsel %vm1240, %v1247, %v1249
  %v1251 = vsel %vm1239, %v1229, %v1232
  %v1252 = vsel %vm1242, %v1238, 1326507024
  %v1253 = vsel %vm1241, %v1235, %v1252
  %v1254 = vsel %vm1240, %v1251, %v1253
  %v1255 = vshll.u32 %v1215, 8
  %v1256 = vmul.u32.u64.compose %v1255, %v1254
  %v1257 = vextract.low.u32 %v1256
  %v1258 = vextract.high.u32 %v1256
  %v1259 = vmul.u32.u64.compose %v1255, %v1250
  %v1260 = vextract.low.u32 %v1259
  %v1261 = vextract.high.u32 %v1259
  %v1262 = vmul.u32 %v1255, %v1246
  %v1263 = vadd.s32 %v1258, %v1260
  %vm1264 = vc.u32 %v1258, %v1260
  %v1265 = vadd.s32 %v1261, 1
  %v1266 = vsel %vm1264, %v1265, %v1261
  %v1267 = vadd.s32 %v1262, %v1266
  %v1268 = vadd.s32 %v1267, 536870912
  %v1269 = vshrl.u32 %v1268, 30
  %v1270 = vshll.u32 %v1269, 30
  %v1271 = vsub.s32 %v1267, %v1270
  %vm1272 = vcmp.lt.s32.totalorder %v1271, 0
  %v1273 = vsub.s32 0, %v1271
  %v1274 = vsel %vm1272, %v1273, %v1271
  %v1275 = vclz %v1274
  %v1276 = vsub.s32 %v1275, 2
  %vm1277 = vcmp.gt.s32.totalorder 0, %v1276
  %v1278 = vsel %vm1277, 0, %v1276
  %v1279 = vsub.s32 32, %v1278
  %v1280 = vshll.u32 %v1271, %v1278
  %v1281 = vshrl.u32 %v1263, %v1279
  %v1282 = vor.u32 %v1280, %v1281
  %v1283 = vsub.s32 4294967266, %v1278
  %v1284 = vadd.s32 %v1283, 127
  %v1285 = vshll.u32 %v1284, 23
  %v1286 = vor.u32 4788187, %v1285
  %v1287 = vand.u32 2147483647, %v1286
  %v1289 = vcvt.s32.f32 %v1282
  %v1290 = vmul.f32 %v1289, %v1287
  %v1291 = vxor.u32 %v1290, 2147483648
  %v1292 = vsel %vm1209, %v1291, %v1290
  %v1293 = vsub.s32 4, %v1269
  %v1294 = vsel %vm1209, %v1293, %v1269
  %v1295 = vsel %vm1208, %v268, %v1292
  %v1296 = vsel %vm1208, 0, %v1294
  %v1297 = vcosq.f32.pop %v1295
  %v1298 = vsinq.f32.pop %v1295
  %vm1299 = vweird.f32 %v268
  %v1300 = vadd.s32 %v1296, 3
  %v1301 = vand.u32 %v1300, 3
  %vm1302 = vcmp.lt.s32.totalorder %v1301, 2
  %vm1303 = vcmp.eq.s32.totalorder %v1301, 0
  %v1304 = vxor.u32 %v1298, 2147483648
  %v1305 = vsel %vm1303, %v1297, %v1304
  %vm1306 = vcmp.eq.s32.totalorder %v1301, 2
  %v1307 = vxor.u32 %v1297, 2147483648
  %v1308 = vsel %vm1306, %v1307, %v1298
  %v1309 = vsel %vm1302, %v1305, %v1308
  %v1310 = vsel %vm1299, nan, %v1309
  %v1311 = vand.u32 2147483647, %v269
  %vm1312 = vcmp.le.f32.partialorder %v1311, 0.7853982
  %vm1313 = vcmp.lt.s32.totalorder %v269, 0
  %v1314 = vand.u32 %v269, 2139095040
  %v1315 = vshrl.u32 %v1314, 23
  %v1316 = vsub.s32 %v1315, 127
  %v1317 = vand.u32 2147483647, %v269
  %v1318 = vand.u32 %v1317, 8388607
  %v1319 = vor.u32 %v1318, 8388608
  %v1320 = vsub.s32 0, %v1319
  %v1321 = vadd.s32 %v1316, 1
  %vm1322 = vcmp.gt.s32.totalorder %v1321, 0
  %v1323 = vsel %vm1322, %v1321, 0
  %v1324 = vshrl.u32 %v1323, 5
  %v1325 = vand.u32 %v1323, 31
  %v1326 = vsub.s32 32, %v1325
  %v1327 = vshrl.u32 683565275, %v1326
  %v1328 = vshll.u32 683565275, %v1325
  %v1329 = vshrl.u32 2475754826, %v1326
  %v1330 = vor.u32 %v1328, %v1329
  %v1331 = vshll.u32 2475754826, %v1325
  %v1332 = vshrl.u32 2131351028, %v1326
  %v1333 = vor.u32 %v1331, %v1332
  %v1334 = vshll.u32 2131351028, %v1325
  %v1335 = vshrl.u32 2102212464, %v1326
  %v1336 = vor.u32 %v1334, %v1335
  %v1337 = vshll.u32 2102212464, %v1325
  %v1338 = vshrl.u32 920167782, %v1326
  %v1339 = vor.u32 %v1337, %v1338
  %v1340 = vshll.u32 920167782, %v1325
  %v1341 = vshrl.u32 1326507024, %v1326
  %v1342 = vor.u32 %v1340, %v1341
  %vm1343 = vcmp.lt.s32.totalorder %v1324, 1
  %vm1344 = vcmp.lt.s32.totalorder %v1324, 2
  %vm1345 = vcmp.lt.s32.totalorder %v1324, 3
  %vm1346 = vcmp.lt.s32.totalorder %v1324, 4
  %v1347 = vsel %vm1343, %v1327, %v1330
  %v1348 = vsel %vm1346, %v1336, 2102212464
  %v1349 = vsel %vm1345, %v1333, %v1348
  %v1350 = vsel %vm1344, %v1347, %v1349
  %v1351 = vsel %vm1343, %v1330, %v1333
  %v1352 = vsel %vm1346, %v1339, 920167782
  %v1353 = vsel %vm1345, %v1336, %v1352
  %v1354 = vsel %vm1344, %v1351, %v1353
  %v1355 = vsel %vm1343, %v1333, %v1336
  %v1356 = vsel %vm1346, %v1342, 1326507024
  %v1357 = vsel %vm1345, %v1339, %v1356
  %v1358 = vsel %vm1344, %v1355, %v1357
  %v1359 = vshll.u32 %v1319, 8
  %v1360 = vmul.u32.u64.compose %v1359, %v1358
  %v1361 = vextract.low.u32 %v1360
  %v1362 = vextract.high.u32 %v1360
  %v1363 = vmul.u32.u64.compose %v1359, %v1354
  %v1364 = vextract.low.u32 %v1363
  %v1365 = vextract.high.u32 %v1363
  %v1366 = vmul.u32 %v1359, %v1350
  %v1367 = vadd.s32 %v1362, %v1364
  %vm1368 = vc.u32 %v1362, %v1364
  %v1369 = vadd.s32 %v1365, 1
  %v1370 = vsel %vm1368, %v1369, %v1365
  %v1371 = vadd.s32 %v1366, %v1370
  %v1372 = vadd.s32 %v1371, 536870912
  %v1373 = vshrl.u32 %v1372, 30
  %v1374 = vshll.u32 %v1373, 30
  %v1375 = vsub.s32 %v1371, %v1374
  %vm1376 = vcmp.lt.s32.totalorder %v1375, 0
  %v1377 = vsub.s32 0, %v1375
  %v1378 = vsel %vm1376, %v1377, %v1375
  %v1379 = vclz %v1378
  %v1380 = vsub.s32 %v1379, 2
  %vm1381 = vcmp.gt.s32.totalorder 0, %v1380
  %v1382 = vsel %vm1381, 0, %v1380
  %v1383 = vsub.s32 32, %v1382
  %v1384 = vshll.u32 %v1375, %v1382
  %v1385 = vshrl.u32 %v1367, %v1383
  %v1386 = vor.u32 %v1384, %v1385
  %v1387 = vsub.s32 4294967266, %v1382
  %v1388 = vadd.s32 %v1387, 127
  %v1389 = vshll.u32 %v1388, 23
  %v1390 = vor.u32 4788187, %v1389
  %v1391 = vand.u32 2147483647, %v1390
  %v1393 = vcvt.s32.f32 %v1386
  %v1394 = vmul.f32 %v1393, %v1391
  %v1395 = vxor.u32 %v1394, 2147483648
  %v1396 = vsel %vm1313, %v1395, %v1394
  %v1397 = vsub.s32 4, %v1373
  %v1398 = vsel %vm1313, %v1397, %v1373
  %v1399 = vsel %vm1312, %v269, %v1396
  %v1400 = vsel %vm1312, 0, %v1398
  %v1401 = vcosq.f32.pop %v1399
  %v1402 = vsinq.f32.pop %v1399
  %vm1403 = vweird.f32 %v269
  %v1404 = vadd.s32 %v1400, 3
  %v1405 = vand.u32 %v1404, 3
  %vm1406 = vcmp.lt.s32.totalorder %v1405, 2
  %vm1407 = vcmp.eq.s32.totalorder %v1405, 0
  %v1408 = vxor.u32 %v1402, 2147483648
  %v1409 = vsel %vm1407, %v1401, %v1408
  %vm1410 = vcmp.eq.s32.totalorder %v1405, 2
  %v1411 = vxor.u32 %v1401, 2147483648
  %v1412 = vsel %vm1410, %v1411, %v1402
  %v1413 = vsel %vm1406, %v1409, %v1412
  %v1414 = vsel %vm1403, nan, %v1413
  %v1415 = vand.u32 2147483647, %v270
  %vm1416 = vcmp.le.f32.partialorder %v1415, 0.7853982
  %vm1417 = vcmp.lt.s32.totalorder %v270, 0
  %v1418 = vand.u32 %v270, 2139095040
  %v1419 = vshrl.u32 %v1418, 23
  %v1420 = vsub.s32 %v1419, 127
  %v1421 = vand.u32 2147483647, %v270
  %v1422 = vand.u32 %v1421, 8388607
  %v1423 = vor.u32 %v1422, 8388608
  %v1424 = vsub.s32 0, %v1423
  %v1425 = vadd.s32 %v1420, 1
  %vm1426 = vcmp.gt.s32.totalorder %v1425, 0
  %v1427 = vsel %vm1426, %v1425, 0
  %v1428 = vshrl.u32 %v1427, 5
  %v1429 = vand.u32 %v1427, 31
  %v1430 = vsub.s32 32, %v1429
  %v1431 = vshrl.u32 683565275, %v1430
  %v1432 = vshll.u32 683565275, %v1429
  %v1433 = vshrl.u32 2475754826, %v1430
  %v1434 = vor.u32 %v1432, %v1433
  %v1435 = vshll.u32 2475754826, %v1429
  %v1436 = vshrl.u32 2131351028, %v1430
  %v1437 = vor.u32 %v1435, %v1436
  %v1438 = vshll.u32 2131351028, %v1429
  %v1439 = vshrl.u32 2102212464, %v1430
  %v1440 = vor.u32 %v1438, %v1439
  %v1441 = vshll.u32 2102212464, %v1429
  %v1442 = vshrl.u32 920167782, %v1430
  %v1443 = vor.u32 %v1441, %v1442
  %v1444 = vshll.u32 920167782, %v1429
  %v1445 = vshrl.u32 1326507024, %v1430
  %v1446 = vor.u32 %v1444, %v1445
  %vm1447 = vcmp.lt.s32.totalorder %v1428, 1
  %vm1448 = vcmp.lt.s32.totalorder %v1428, 2
  %vm1449 = vcmp.lt.s32.totalorder %v1428, 3
  %vm1450 = vcmp.lt.s32.totalorder %v1428, 4
  %v1451 = vsel %vm1447, %v1431, %v1434
  %v1452 = vsel %vm1450, %v1440, 2102212464
  %v1453 = vsel %vm1449, %v1437, %v1452
  %v1454 = vsel %vm1448, %v1451, %v1453
  %v1455 = vsel %vm1447, %v1434, %v1437
  %v1456 = vsel %vm1450, %v1443, 920167782
  %v1457 = vsel %vm1449, %v1440, %v1456
  %v1458 = vsel %vm1448, %v1455, %v1457
  %v1459 = vsel %vm1447, %v1437, %v1440
  %v1460 = vsel %vm1450, %v1446, 1326507024
  %v1461 = vsel %vm1449, %v1443, %v1460
  %v1462 = vsel %vm1448, %v1459, %v1461
  %v1463 = vshll.u32 %v1423, 8
  %v1464 = vmul.u32.u64.compose %v1463, %v1462
  %v1465 = vextract.low.u32 %v1464
  %v1466 = vextract.high.u32 %v1464
  %v1467 = vmul.u32.u64.compose %v1463, %v1458
  %v1468 = vextract.low.u32 %v1467
  %v1469 = vextract.high.u32 %v1467
  %v1470 = vmul.u32 %v1463, %v1454
  %v1471 = vadd.s32 %v1466, %v1468
  %vm1472 = vc.u32 %v1466, %v1468
  %v1473 = vadd.s32 %v1469, 1
  %v1474 = vsel %vm1472, %v1473, %v1469
  %v1475 = vadd.s32 %v1470, %v1474
  %v1476 = vadd.s32 %v1475, 536870912
  %v1477 = vshrl.u32 %v1476, 30
  %v1478 = vshll.u32 %v1477, 30
  %v1479 = vsub.s32 %v1475, %v1478
  %vm1480 = vcmp.lt.s32.totalorder %v1479, 0
  %v1481 = vsub.s32 0, %v1479
  %v1482 = vsel %vm1480, %v1481, %v1479
  %v1483 = vclz %v1482
  %v1484 = vsub.s32 %v1483, 2
  %vm1485 = vcmp.gt.s32.totalorder 0, %v1484
  %v1486 = vsel %vm1485, 0, %v1484
  %v1487 = vsub.s32 32, %v1486
  %v1488 = vshll.u32 %v1479, %v1486
  %v1489 = vshrl.u32 %v1471, %v1487
  %v1490 = vor.u32 %v1488, %v1489
  %v1491 = vsub.s32 4294967266, %v1486
  %v1492 = vadd.s32 %v1491, 127
  %v1493 = vshll.u32 %v1492, 23
  %v1494 = vor.u32 4788187, %v1493
  %v1495 = vand.u32 2147483647, %v1494
  %v1497 = vcvt.s32.f32 %v1490
  %v1498 = vmul.f32 %v1497, %v1495
  %v1499 = vxor.u32 %v1498, 2147483648
  %v1500 = vsel %vm1417, %v1499, %v1498
  %v1501 = vsub.s32 4, %v1477
  %v1502 = vsel %vm1417, %v1501, %v1477
  %v1503 = vsel %vm1416, %v270, %v1500
  %v1504 = vsel %vm1416, 0, %v1502
  %v1505 = vcosq.f32.pop %v1503
  %v1506 = vsinq.f32.pop %v1503
  %vm1507 = vweird.f32 %v270
  %v1508 = vadd.s32 %v1504, 3
  %v1509 = vand.u32 %v1508, 3
  %vm1510 = vcmp.lt.s32.totalorder %v1509, 2
  %vm1511 = vcmp.eq.s32.totalorder %v1509, 0
  %v1512 = vxor.u32 %v1506, 2147483648
  %v1513 = vsel %vm1511, %v1505, %v1512
  %vm1514 = vcmp.eq.s32.totalorder %v1509, 2
  %v1515 = vxor.u32 %v1505, 2147483648
  %v1516 = vsel %vm1514, %v1515, %v1506
  %v1517 = vsel %vm1510, %v1513, %v1516
  %v1518 = vsel %vm1507, nan, %v1517
  %v1520 = vlaneseq
  %v1521 = vshrl.u32 %v1520, 7
  %v1522 = vsub.s32 0, %v1521
  %v1523 = vrot.slane %v69, %v1522
  %1525 = vmatprep.subr.mxu0 0.0
  %1526 = vmatpush1.msra.mxu0 %v53
  %1527 = vmatprep.subr.mxu0 0.0
  %1528 = vmatpush1.msra.mxu0 %v54
  %1529 = vmatprep.subr.mxu0 0.0
  %1530 = vmatpush1.msra.mxu0 %v55
  %1531 = vmatprep.subr.mxu0 0.0
  %1532 = vmatpush1.msra.mxu0 %v56
  %1533 = vmatprep.subr.mxu0 0.0
  %1534 = vmatpush1.msra.mxu0 %v57
  %1535 = vmatprep.subr.mxu0 0.0
  %1536 = vmatpush1.msra.mxu0 %v58
  %1537 = vmatprep.subr.mxu0 0.0
  %1538 = vmatpush1.msra.mxu0 %v59
  %1539 = vmatprep.subr.mxu0 0.0
  %1540 = vmatpush1.msra.mxu0 %v60
  %1541 = vmatprep.subr.mxu0 0.0
  %1542 = vmatpush1.msra.mxu0 %v61
  %1543 = vmatprep.subr.mxu0 0.0
  %1544 = vmatpush1.msra.mxu0 %v62
  %1545 = vmatprep.subr.mxu0 0.0
  %1546 = vmatpush1.msra.mxu0 %v63
  %1547 = vmatprep.subr.mxu0 0.0
  %1548 = vmatpush1.msra.mxu0 %v64
  %1549 = vmatprep.subr.mxu0 0.0
  %1550 = vmatpush1.msra.mxu0 %v65
  %1551 = vmatprep.subr.mxu0 0.0
  %1552 = vmatpush1.msra.mxu0 %v66
  %1553 = vmatprep.subr.mxu0 0.0
  %1554 = vmatpush1.msra.mxu0 %v67
  %1555 = vmatprep.subr.mxu0 0.0
  %1556 = vmatpush1.msra.mxu0 %v68
  %1557 = vmatprep.subr.mxu0 0.0
  %1558 = vmatpush1.msra.mxu0 0.0
  %1559 = vmatprep.subr.mxu0 0.0
  %1560 = vmatpush1.msra.mxu0 0.0
  %1561 = vmatprep.subr.mxu0 0.0
  %1562 = vmatpush1.msra.mxu0 0.0
  %1563 = vmatprep.subr.mxu0 0.0
  %1564 = vmatpush1.msra.mxu0 0.0
  %1565 = vmatprep.subr.mxu0 0.0
  %1566 = vmatpush1.msra.mxu0 0.0
  %1567 = vmatprep.subr.mxu0 0.0
  %1568 = vmatpush1.msra.mxu0 0.0
  %1569 = vmatprep.subr.mxu0 0.0
  %1570 = vmatpush1.msra.mxu0 0.0
  %1571 = vmatprep.subr.mxu0 0.0
  %1572 = vmatpush1.msra.mxu0 0.0
  %1573 = vmatprep.subr.mxu0 0.0
  %1574 = vmatpush1.msra.mxu0 0.0
  %1575 = vmatprep.subr.mxu0 0.0
  %1576 = vmatpush1.msra.mxu0 0.0
  %1577 = vmatprep.subr.mxu0 0.0
  %1578 = vmatpush1.msra.mxu0 0.0
  %1579 = vmatprep.subr.mxu0 0.0
  %1580 = vmatpush1.msra.mxu0 0.0
  %1581 = vmatprep.subr.mxu0 0.0
  %1582 = vmatpush1.msra.mxu0 0.0
  %1583 = vmatprep.subr.mxu0 0.0
  %1584 = vmatpush1.msra.mxu0 0.0
  %1585 = vmatprep.subr.mxu0 0.0
  %1586 = vmatpush1.msra.mxu0 0.0
  %1587 = vmatprep.subr.mxu0 0.0
  %1588 = vmatpush1.msra.mxu0 0.0
  %1589 = vmatprep.mubr.f32.mxu0 0.0
  %1590 = vmatmul.mubr.f32.gmra.mrb[0].mxu0 %v374
  %v1591 = vpop.f32.mrb[0].mxu0
  %v1592 = vadd.f32 %v1523, %v1591
  %v1593 = vpop.f32.mrb[0].mxu0
  %1594 = vmatprep.mubr.f32.mxu0 0.0
  %1595 = vmatmul.mubr.f32.gmra.mrb[0].mxu0 %v478
  %v1596 = vpop.f32.mrb[0].mxu0
  %v1597 = vadd.f32 %v1523, %v1596
  %v1598 = vpop.f32.mrb[0].mxu0
  %1599 = vmatprep.mubr.f32.mxu0 0.0
  %1600 = vmatmul.mubr.f32.gmra.mrb[0].mxu0 %v582
  %v1601 = vpop.f32.mrb[0].mxu0
  %v1602 = vadd.f32 %v1523, %v1601
  %v1603 = vpop.f32.mrb[0].mxu0
  %1604 = vmatprep.mubr.f32.mxu0 0.0
  %1605 = vmatmul.mubr.f32.gmra.mrb[0].mxu0 %v686
  %v1606 = vpop.f32.mrb[0].mxu0
  %v1607 = vadd.f32 %v1523, %v1606
  %v1608 = vpop.f32.mrb[0].mxu0
  %1609 = vmatprep.mubr.f32.mxu0 0.0
  %1610 = vmatmul.mubr.f32.gmra.mrb[0].mxu0 %v790
  %v1611 = vpop.f32.mrb[0].mxu0
  %v1612 = vadd.f32 %v1523, %v1611
  %v1613 = vpop.f32.mrb[0].mxu0
  %1614 = vmatprep.mubr.f32.mxu0 0.0
  %1615 = vmatmul.mubr.f32.gmra.mrb[0].mxu0 %v894
  %v1616 = vpop.f32.mrb[0].mxu0
  %v1617 = vadd.f32 %v1523, %v1616
  %v1618 = vpop.f32.mrb[0].mxu0
  %1619 = vmatprep.mubr.f32.mxu0 0.0
  %1620 = vmatmul.mubr.f32.gmra.mrb[0].mxu0 %v998
  %v1621 = vpop.f32.mrb[0].mxu0
  %v1622 = vadd.f32 %v1523, %v1621
  %v1623 = vpop.f32.mrb[0].mxu0
  %1624 = vmatprep.mubr.f32.mxu0 0.0
  %1625 = vmatmul.mubr.f32.gmra.mrb[0].mxu0 %v1102
  %v1626 = vpop.f32.mrb[0].mxu0
  %v1627 = vadd.f32 %v1523, %v1626
  %v1628 = vpop.f32.mrb[0].mxu0
  %1629 = vmatprep.mubr.f32.mxu0 0.0
  %1630 = vmatmul.mubr.f32.gmra.mrb[0].mxu0 %v1206
  %v1631 = vpop.f32.mrb[0].mxu0
  %v1632 = vadd.f32 %v1523, %v1631
  %v1633 = vpop.f32.mrb[0].mxu0
  %1634 = vmatprep.mubr.f32.mxu0 0.0
  %1635 = vmatmul.mubr.f32.gmra.mrb[0].mxu0 %v1310
  %v1636 = vpop.f32.mrb[0].mxu0
  %v1637 = vadd.f32 %v1523, %v1636
  %v1638 = vpop.f32.mrb[0].mxu0
  %1639 = vmatprep.mubr.f32.mxu0 0.0
  %1640 = vmatmul.mubr.f32.gmra.mrb[0].mxu0 %v1414
  %v1641 = vpop.f32.mrb[0].mxu0
  %v1642 = vadd.f32 %v1523, %v1641
  %v1643 = vpop.f32.mrb[0].mxu0
  %1644 = vmatprep.mubr.f32.mxu0 0.0
  %1645 = vmatmul.mubr.f32.gmra.mrb[0].mxu0 %v1518
  %v1646 = vpop.f32.mrb[0].mxu0
  %v1647 = vadd.f32 %v1523, %v1646
  %v1648 = vpop.f32.mrb[0].mxu0
  %1649 = vdwg.mxu0
  %v1650 = vand.u32 2147483647, %v1592
  %vm1651 = vcmp.le.f32.partialorder %v1650, 0.7853982
  %vm1652 = vcmp.lt.s32.totalorder %v1592, 0
  %v1653 = vand.u32 %v1592, 2139095040
  %v1654 = vshrl.u32 %v1653, 23
  %v1655 = vsub.s32 %v1654, 127
  %v1656 = vand.u32 2147483647, %v1592
  %v1657 = vand.u32 %v1656, 8388607
  %v1658 = vor.u32 %v1657, 8388608
  %v1659 = vsub.s32 0, %v1658
  %v1660 = vadd.s32 %v1655, 1
  %vm1661 = vcmp.gt.s32.totalorder %v1660, 0
  %v1662 = vsel %vm1661, %v1660, 0
  %v1663 = vshrl.u32 %v1662, 5
  %v1664 = vand.u32 %v1662, 31
  %v1665 = vsub.s32 32, %v1664
  %v1666 = vshrl.u32 683565275, %v1665
  %v1667 = vshll.u32 683565275, %v1664
  %v1668 = vshrl.u32 2475754826, %v1665
  %v1669 = vor.u32 %v1667, %v1668
  %v1670 = vshll.u32 2475754826, %v1664
  %v1671 = vshrl.u32 2131351028, %v1665
  %v1672 = vor.u32 %v1670, %v1671
  %v1673 = vshll.u32 2131351028, %v1664
  %v1674 = vshrl.u32 2102212464, %v1665
  %v1675 = vor.u32 %v1673, %v1674
  %v1676 = vshll.u32 2102212464, %v1664
  %v1677 = vshrl.u32 920167782, %v1665
  %v1678 = vor.u32 %v1676, %v1677
  %v1679 = vshll.u32 920167782, %v1664
  %v1680 = vshrl.u32 1326507024, %v1665
  %v1681 = vor.u32 %v1679, %v1680
  %vm1682 = vcmp.lt.s32.totalorder %v1663, 1
  %vm1683 = vcmp.lt.s32.totalorder %v1663, 2
  %vm1684 = vcmp.lt.s32.totalorder %v1663, 3
  %vm1685 = vcmp.lt.s32.totalorder %v1663, 4
  %v1686 = vsel %vm1682, %v1666, %v1669
  %v1687 = vsel %vm1685, %v1675, 2102212464
  %v1688 = vsel %vm1684, %v1672, %v1687
  %v1689 = vsel %vm1683, %v1686, %v1688
  %v1690 = vsel %vm1682, %v1669, %v1672
  %v1691 = vsel %vm1685, %v1678, 920167782
  %v1692 = vsel %vm1684, %v1675, %v1691
  %v1693 = vsel %vm1683, %v1690, %v1692
  %v1694 = vsel %vm1682, %v1672, %v1675
  %v1695 = vsel %vm1685, %v1681, 1326507024
  %v1696 = vsel %vm1684, %v1678, %v1695
  %v1697 = vsel %vm1683, %v1694, %v1696
  %v1698 = vshll.u32 %v1658, 8
  %v1699 = vmul.u32.u64.compose %v1698, %v1697
  %v1700 = vextract.low.u32 %v1699
  %v1701 = vextract.high.u32 %v1699
  %v1702 = vmul.u32.u64.compose %v1698, %v1693
  %v1703 = vextract.low.u32 %v1702
  %v1704 = vextract.high.u32 %v1702
  %v1705 = vmul.u32 %v1698, %v1689
  %v1706 = vadd.s32 %v1701, %v1703
  %vm1707 = vc.u32 %v1701, %v1703
  %v1708 = vadd.s32 %v1704, 1
  %v1709 = vsel %vm1707, %v1708, %v1704
  %v1710 = vadd.s32 %v1705, %v1709
  %v1711 = vadd.s32 %v1710, 536870912
  %v1712 = vshrl.u32 %v1711, 30
  %v1713 = vshll.u32 %v1712, 30
  %v1714 = vsub.s32 %v1710, %v1713
  %vm1715 = vcmp.lt.s32.totalorder %v1714, 0
  %v1716 = vsub.s32 0, %v1714
  %v1717 = vsel %vm1715, %v1716, %v1714
  %v1718 = vclz %v1717
  %v1719 = vsub.s32 %v1718, 2
  %vm1720 = vcmp.gt.s32.totalorder 0, %v1719
  %v1721 = vsel %vm1720, 0, %v1719
  %v1722 = vsub.s32 32, %v1721
  %v1723 = vshll.u32 %v1714, %v1721
  %v1724 = vshrl.u32 %v1706, %v1722
  %v1725 = vor.u32 %v1723, %v1724
  %v1726 = vsub.s32 4294967266, %v1721
  %v1727 = vadd.s32 %v1726, 127
  %v1728 = vshll.u32 %v1727, 23
  %v1729 = vor.u32 4788187, %v1728
  %v1730 = vand.u32 2147483647, %v1729
  %v1732 = vcvt.s32.f32 %v1725
  %v1733 = vmul.f32 %v1732, %v1730
  %v1734 = vxor.u32 %v1733, 2147483648
  %v1735 = vsel %vm1652, %v1734, %v1733
  %v1736 = vsub.s32 4, %v1712
  %v1737 = vsel %vm1652, %v1736, %v1712
  %v1738 = vsel %vm1651, %v1592, %v1735
  %v1739 = vsel %vm1651, 0, %v1737
  %v1740 = vcosq.f32.pop %v1738
  %v1741 = vsinq.f32.pop %v1738
  %vm1742 = vweird.f32 %v1592
  %v1743 = vadd.s32 %v1739, 3
  %v1744 = vand.u32 %v1743, 3
  %vm1745 = vcmp.lt.s32.totalorder %v1744, 2
  %vm1746 = vcmp.eq.s32.totalorder %v1744, 0
  %v1747 = vxor.u32 %v1741, 2147483648
  %v1748 = vsel %vm1746, %v1740, %v1747
  %vm1749 = vcmp.eq.s32.totalorder %v1744, 2
  %v1750 = vxor.u32 %v1740, 2147483648
  %v1751 = vsel %vm1749, %v1750, %v1741
  %v1752 = vsel %vm1745, %v1748, %v1751
  %v1753 = vsel %vm1742, nan, %v1752
  %v1754 = vand.u32 2147483647, %v1597
  %vm1755 = vcmp.le.f32.partialorder %v1754, 0.7853982
  %vm1756 = vcmp.lt.s32.totalorder %v1597, 0
  %v1757 = vand.u32 %v1597, 2139095040
  %v1758 = vshrl.u32 %v1757, 23
  %v1759 = vsub.s32 %v1758, 127
  %v1760 = vand.u32 2147483647, %v1597
  %v1761 = vand.u32 %v1760, 8388607
  %v1762 = vor.u32 %v1761, 8388608
  %v1763 = vsub.s32 0, %v1762
  %v1764 = vadd.s32 %v1759, 1
  %vm1765 = vcmp.gt.s32.totalorder %v1764, 0
  %v1766 = vsel %vm1765, %v1764, 0
  %v1767 = vshrl.u32 %v1766, 5
  %v1768 = vand.u32 %v1766, 31
  %v1769 = vsub.s32 32, %v1768
  %v1770 = vshrl.u32 683565275, %v1769
  %v1771 = vshll.u32 683565275, %v1768
  %v1772 = vshrl.u32 2475754826, %v1769
  %v1773 = vor.u32 %v1771, %v1772
  %v1774 = vshll.u32 2475754826, %v1768
  %v1775 = vshrl.u32 2131351028, %v1769
  %v1776 = vor.u32 %v1774, %v1775
  %v1777 = vshll.u32 2131351028, %v1768
  %v1778 = vshrl.u32 2102212464, %v1769
  %v1779 = vor.u32 %v1777, %v1778
  %v1780 = vshll.u32 2102212464, %v1768
  %v1781 = vshrl.u32 920167782, %v1769
  %v1782 = vor.u32 %v1780, %v1781
  %v1783 = vshll.u32 920167782, %v1768
  %v1784 = vshrl.u32 1326507024, %v1769
  %v1785 = vor.u32 %v1783, %v1784
  %vm1786 = vcmp.lt.s32.totalorder %v1767, 1
  %vm1787 = vcmp.lt.s32.totalorder %v1767, 2
  %vm1788 = vcmp.lt.s32.totalorder %v1767, 3
  %vm1789 = vcmp.lt.s32.totalorder %v1767, 4
  %v1790 = vsel %vm1786, %v1770, %v1773
  %v1791 = vsel %vm1789, %v1779, 2102212464
  %v1792 = vsel %vm1788, %v1776, %v1791
  %v1793 = vsel %vm1787, %v1790, %v1792
  %v1794 = vsel %vm1786, %v1773, %v1776
  %v1795 = vsel %vm1789, %v1782, 920167782
  %v1796 = vsel %vm1788, %v1779, %v1795
  %v1797 = vsel %vm1787, %v1794, %v1796
  %v1798 = vsel %vm1786, %v1776, %v1779
  %v1799 = vsel %vm1789, %v1785, 1326507024
  %v1800 = vsel %vm1788, %v1782, %v1799
  %v1801 = vsel %vm1787, %v1798, %v1800
  %v1802 = vshll.u32 %v1762, 8
  %v1803 = vmul.u32.u64.compose %v1802, %v1801
  %v1804 = vextract.low.u32 %v1803
  %v1805 = vextract.high.u32 %v1803
  %v1806 = vmul.u32.u64.compose %v1802, %v1797
  %v1807 = vextract.low.u32 %v1806
  %v1808 = vextract.high.u32 %v1806
  %v1809 = vmul.u32 %v1802, %v1793
  %v1810 = vadd.s32 %v1805, %v1807
  %vm1811 = vc.u32 %v1805, %v1807
  %v1812 = vadd.s32 %v1808, 1
  %v1813 = vsel %vm1811, %v1812, %v1808
  %v1814 = vadd.s32 %v1809, %v1813
  %v1815 = vadd.s32 %v1814, 536870912
  %v1816 = vshrl.u32 %v1815, 30
  %v1817 = vshll.u32 %v1816, 30
  %v1818 = vsub.s32 %v1814, %v1817
  %vm1819 = vcmp.lt.s32.totalorder %v1818, 0
  %v1820 = vsub.s32 0, %v1818
  %v1821 = vsel %vm1819, %v1820, %v1818
  %v1822 = vclz %v1821
  %v1823 = vsub.s32 %v1822, 2
  %vm1824 = vcmp.gt.s32.totalorder 0, %v1823
  %v1825 = vsel %vm1824, 0, %v1823
  %v1826 = vsub.s32 32, %v1825
  %v1827 = vshll.u32 %v1818, %v1825
  %v1828 = vshrl.u32 %v1810, %v1826
  %v1829 = vor.u32 %v1827, %v1828
  %v1830 = vsub.s32 4294967266, %v1825
  %v1831 = vadd.s32 %v1830, 127
  %v1832 = vshll.u32 %v1831, 23
  %v1833 = vor.u32 4788187, %v1832
  %v1834 = vand.u32 2147483647, %v1833
  %v1836 = vcvt.s32.f32 %v1829
  %v1837 = vmul.f32 %v1836, %v1834
  %v1838 = vxor.u32 %v1837, 2147483648
  %v1839 = vsel %vm1756, %v1838, %v1837
  %v1840 = vsub.s32 4, %v1816
  %v1841 = vsel %vm1756, %v1840, %v1816
  %v1842 = vsel %vm1755, %v1597, %v1839
  %v1843 = vsel %vm1755, 0, %v1841
  %v1844 = vcosq.f32.pop %v1842
  %v1845 = vsinq.f32.pop %v1842
  %vm1846 = vweird.f32 %v1597
  %v1847 = vadd.s32 %v1843, 3
  %v1848 = vand.u32 %v1847, 3
  %vm1849 = vcmp.lt.s32.totalorder %v1848, 2
  %vm1850 = vcmp.eq.s32.totalorder %v1848, 0
  %v1851 = vxor.u32 %v1845, 2147483648
  %v1852 = vsel %vm1850, %v1844, %v1851
  %vm1853 = vcmp.eq.s32.totalorder %v1848, 2
  %v1854 = vxor.u32 %v1844, 2147483648
  %v1855 = vsel %vm1853, %v1854, %v1845
  %v1856 = vsel %vm1849, %v1852, %v1855
  %v1857 = vsel %vm1846, nan, %v1856
  %v1858 = vand.u32 2147483647, %v1602
  %vm1859 = vcmp.le.f32.partialorder %v1858, 0.7853982
  %vm1860 = vcmp.lt.s32.totalorder %v1602, 0
  %v1861 = vand.u32 %v1602, 2139095040
  %v1862 = vshrl.u32 %v1861, 23
  %v1863 = vsub.s32 %v1862, 127
  %v1864 = vand.u32 2147483647, %v1602
  %v1865 = vand.u32 %v1864, 8388607
  %v1866 = vor.u32 %v1865, 8388608
  %v1867 = vsub.s32 0, %v1866
  %v1868 = vadd.s32 %v1863, 1
  %vm1869 = vcmp.gt.s32.totalorder %v1868, 0
  %v1870 = vsel %vm1869, %v1868, 0
  %v1871 = vshrl.u32 %v1870, 5
  %v1872 = vand.u32 %v1870, 31
  %v1873 = vsub.s32 32, %v1872
  %v1874 = vshrl.u32 683565275, %v1873
  %v1875 = vshll.u32 683565275, %v1872
  %v1876 = vshrl.u32 2475754826, %v1873
  %v1877 = vor.u32 %v1875, %v1876
  %v1878 = vshll.u32 2475754826, %v1872
  %v1879 = vshrl.u32 2131351028, %v1873
  %v1880 = vor.u32 %v1878, %v1879
  %v1881 = vshll.u32 2131351028, %v1872
  %v1882 = vshrl.u32 2102212464, %v1873
  %v1883 = vor.u32 %v1881, %v1882
  %v1884 = vshll.u32 2102212464, %v1872
  %v1885 = vshrl.u32 920167782, %v1873
  %v1886 = vor.u32 %v1884, %v1885
  %v1887 = vshll.u32 920167782, %v1872
  %v1888 = vshrl.u32 1326507024, %v1873
  %v1889 = vor.u32 %v1887, %v1888
  %vm1890 = vcmp.lt.s32.totalorder %v1871, 1
  %vm1891 = vcmp.lt.s32.totalorder %v1871, 2
  %vm1892 = vcmp.lt.s32.totalorder %v1871, 3
  %vm1893 = vcmp.lt.s32.totalorder %v1871, 4
  %v1894 = vsel %vm1890, %v1874, %v1877
  %v1895 = vsel %vm1893, %v1883, 2102212464
  %v1896 = vsel %vm1892, %v1880, %v1895
  %v1897 = vsel %vm1891, %v1894, %v1896
  %v1898 = vsel %vm1890, %v1877, %v1880
  %v1899 = vsel %vm1893, %v1886, 920167782
  %v1900 = vsel %vm1892, %v1883, %v1899
  %v1901 = vsel %vm1891, %v1898, %v1900
  %v1902 = vsel %vm1890, %v1880, %v1883
  %v1903 = vsel %vm1893, %v1889, 1326507024
  %v1904 = vsel %vm1892, %v1886, %v1903
  %v1905 = vsel %vm1891, %v1902, %v1904
  %v1906 = vshll.u32 %v1866, 8
  %v1907 = vmul.u32.u64.compose %v1906, %v1905
  %v1908 = vextract.low.u32 %v1907
  %v1909 = vextract.high.u32 %v1907
  %v1910 = vmul.u32.u64.compose %v1906, %v1901
  %v1911 = vextract.low.u32 %v1910
  %v1912 = vextract.high.u32 %v1910
  %v1913 = vmul.u32 %v1906, %v1897
  %v1914 = vadd.s32 %v1909, %v1911
  %vm1915 = vc.u32 %v1909, %v1911
  %v1916 = vadd.s32 %v1912, 1
  %v1917 = vsel %vm1915, %v1916, %v1912
  %v1918 = vadd.s32 %v1913, %v1917
  %v1919 = vadd.s32 %v1918, 536870912
  %v1920 = vshrl.u32 %v1919, 30
  %v1921 = vshll.u32 %v1920, 30
  %v1922 = vsub.s32 %v1918, %v1921
  %vm1923 = vcmp.lt.s32.totalorder %v1922, 0
  %v1924 = vsub.s32 0, %v1922
  %v1925 = vsel %vm1923, %v1924, %v1922
  %v1926 = vclz %v1925
  %v1927 = vsub.s32 %v1926, 2
  %vm1928 = vcmp.gt.s32.totalorder 0, %v1927
  %v1929 = vsel %vm1928, 0, %v1927
  %v1930 = vsub.s32 32, %v1929
  %v1931 = vshll.u32 %v1922, %v1929
  %v1932 = vshrl.u32 %v1914, %v1930
  %v1933 = vor.u32 %v1931, %v1932
  %v1934 = vsub.s32 4294967266, %v1929
  %v1935 = vadd.s32 %v1934, 127
  %v1936 = vshll.u32 %v1935, 23
  %v1937 = vor.u32 4788187, %v1936
  %v1938 = vand.u32 2147483647, %v1937
  %v1940 = vcvt.s32.f32 %v1933
  %v1941 = vmul.f32 %v1940, %v1938
  %v1942 = vxor.u32 %v1941, 2147483648
  %v1943 = vsel %vm1860, %v1942, %v1941
  %v1944 = vsub.s32 4, %v1920
  %v1945 = vsel %vm1860, %v1944, %v1920
  %v1946 = vsel %vm1859, %v1602, %v1943
  %v1947 = vsel %vm1859, 0, %v1945
  %v1948 = vcosq.f32.pop %v1946
  %v1949 = vsinq.f32.pop %v1946
  %vm1950 = vweird.f32 %v1602
  %v1951 = vadd.s32 %v1947, 3
  %v1952 = vand.u32 %v1951, 3
  %vm1953 = vcmp.lt.s32.totalorder %v1952, 2
  %vm1954 = vcmp.eq.s32.totalorder %v1952, 0
  %v1955 = vxor.u32 %v1949, 2147483648
  %v1956 = vsel %vm1954, %v1948, %v1955
  %vm1957 = vcmp.eq.s32.totalorder %v1952, 2
  %v1958 = vxor.u32 %v1948, 2147483648
  %v1959 = vsel %vm1957, %v1958, %v1949
  %v1960 = vsel %vm1953, %v1956, %v1959
  %v1961 = vsel %vm1950, nan, %v1960
  %v1962 = vand.u32 2147483647, %v1607
  %vm1963 = vcmp.le.f32.partialorder %v1962, 0.7853982
  %vm1964 = vcmp.lt.s32.totalorder %v1607, 0
  %v1965 = vand.u32 %v1607, 2139095040
  %v1966 = vshrl.u32 %v1965, 23
  %v1967 = vsub.s32 %v1966, 127
  %v1968 = vand.u32 2147483647, %v1607
  %v1969 = vand.u32 %v1968, 8388607
  %v1970 = vor.u32 %v1969, 8388608
  %v1971 = vsub.s32 0, %v1970
  %v1972 = vadd.s32 %v1967, 1
  %vm1973 = vcmp.gt.s32.totalorder %v1972, 0
  %v1974 = vsel %vm1973, %v1972, 0
  %v1975 = vshrl.u32 %v1974, 5
  %v1976 = vand.u32 %v1974, 31
  %v1977 = vsub.s32 32, %v1976
  %v1978 = vshrl.u32 683565275, %v1977
  %v1979 = vshll.u32 683565275, %v1976
  %v1980 = vshrl.u32 2475754826, %v1977
  %v1981 = vor.u32 %v1979, %v1980
  %v1982 = vshll.u32 2475754826, %v1976
  %v1983 = vshrl.u32 2131351028, %v1977
  %v1984 = vor.u32 %v1982, %v1983
  %v1985 = vshll.u32 2131351028, %v1976
  %v1986 = vshrl.u32 2102212464, %v1977
  %v1987 = vor.u32 %v1985, %v1986
  %v1988 = vshll.u32 2102212464, %v1976
  %v1989 = vshrl.u32 920167782, %v1977
  %v1990 = vor.u32 %v1988, %v1989
  %v1991 = vshll.u32 920167782, %v1976
  %v1992 = vshrl.u32 1326507024, %v1977
  %v1993 = vor.u32 %v1991, %v1992
  %vm1994 = vcmp.lt.s32.totalorder %v1975, 1
  %vm1995 = vcmp.lt.s32.totalorder %v1975, 2
  %vm1996 = vcmp.lt.s32.totalorder %v1975, 3
  %vm1997 = vcmp.lt.s32.totalorder %v1975, 4
  %v1998 = vsel %vm1994, %v1978, %v1981
  %v1999 = vsel %vm1997, %v1987, 2102212464
  %v2000 = vsel %vm1996, %v1984, %v1999
  %v2001 = vsel %vm1995, %v1998, %v2000
  %v2002 = vsel %vm1994, %v1981, %v1984
  %v2003 = vsel %vm1997, %v1990, 920167782
  %v2004 = vsel %vm1996, %v1987, %v2003
  %v2005 = vsel %vm1995, %v2002, %v2004
  %v2006 = vsel %vm1994, %v1984, %v1987
  %v2007 = vsel %vm1997, %v1993, 1326507024
  %v2008 = vsel %vm1996, %v1990, %v2007
  %v2009 = vsel %vm1995, %v2006, %v2008
  %v2010 = vshll.u32 %v1970, 8
  %v2011 = vmul.u32.u64.compose %v2010, %v2009
  %v2012 = vextract.low.u32 %v2011
  %v2013 = vextract.high.u32 %v2011
  %v2014 = vmul.u32.u64.compose %v2010, %v2005
  %v2015 = vextract.low.u32 %v2014
  %v2016 = vextract.high.u32 %v2014
  %v2017 = vmul.u32 %v2010, %v2001
  %v2018 = vadd.s32 %v2013, %v2015
  %vm2019 = vc.u32 %v2013, %v2015
  %v2020 = vadd.s32 %v2016, 1
  %v2021 = vsel %vm2019, %v2020, %v2016
  %v2022 = vadd.s32 %v2017, %v2021
  %v2023 = vadd.s32 %v2022, 536870912
  %v2024 = vshrl.u32 %v2023, 30
  %v2025 = vshll.u32 %v2024, 30
  %v2026 = vsub.s32 %v2022, %v2025
  %vm2027 = vcmp.lt.s32.totalorder %v2026, 0
  %v2028 = vsub.s32 0, %v2026
  %v2029 = vsel %vm2027, %v2028, %v2026
  %v2030 = vclz %v2029
  %v2031 = vsub.s32 %v2030, 2
  %vm2032 = vcmp.gt.s32.totalorder 0, %v2031
  %v2033 = vsel %vm2032, 0, %v2031
  %v2034 = vsub.s32 32, %v2033
  %v2035 = vshll.u32 %v2026, %v2033
  %v2036 = vshrl.u32 %v2018, %v2034
  %v2037 = vor.u32 %v2035, %v2036
  %v2038 = vsub.s32 4294967266, %v2033
  %v2039 = vadd.s32 %v2038, 127
  %v2040 = vshll.u32 %v2039, 23
  %v2041 = vor.u32 4788187, %v2040
  %v2042 = vand.u32 2147483647, %v2041
  %v2044 = vcvt.s32.f32 %v2037
  %v2045 = vmul.f32 %v2044, %v2042
  %v2046 = vxor.u32 %v2045, 2147483648
  %v2047 = vsel %vm1964, %v2046, %v2045
  %v2048 = vsub.s32 4, %v2024
  %v2049 = vsel %vm1964, %v2048, %v2024
  %v2050 = vsel %vm1963, %v1607, %v2047
  %v2051 = vsel %vm1963, 0, %v2049
  %v2052 = vcosq.f32.pop %v2050
  %v2053 = vsinq.f32.pop %v2050
  %vm2054 = vweird.f32 %v1607
  %v2055 = vadd.s32 %v2051, 3
  %v2056 = vand.u32 %v2055, 3
  %vm2057 = vcmp.lt.s32.totalorder %v2056, 2
  %vm2058 = vcmp.eq.s32.totalorder %v2056, 0
  %v2059 = vxor.u32 %v2053, 2147483648
  %v2060 = vsel %vm2058, %v2052, %v2059
  %vm2061 = vcmp.eq.s32.totalorder %v2056, 2
  %v2062 = vxor.u32 %v2052, 2147483648
  %v2063 = vsel %vm2061, %v2062, %v2053
  %v2064 = vsel %vm2057, %v2060, %v2063
  %v2065 = vsel %vm2054, nan, %v2064
  %v2066 = vand.u32 2147483647, %v1612
  %vm2067 = vcmp.le.f32.partialorder %v2066, 0.7853982
  %vm2068 = vcmp.lt.s32.totalorder %v1612, 0
  %v2069 = vand.u32 %v1612, 2139095040
  %v2070 = vshrl.u32 %v2069, 23
  %v2071 = vsub.s32 %v2070, 127
  %v2072 = vand.u32 2147483647, %v1612
  %v2073 = vand.u32 %v2072, 8388607
  %v2074 = vor.u32 %v2073, 8388608
  %v2075 = vsub.s32 0, %v2074
  %v2076 = vadd.s32 %v2071, 1
  %vm2077 = vcmp.gt.s32.totalorder %v2076, 0
  %v2078 = vsel %vm2077, %v2076, 0
  %v2079 = vshrl.u32 %v2078, 5
  %v2080 = vand.u32 %v2078, 31
  %v2081 = vsub.s32 32, %v2080
  %v2082 = vshrl.u32 683565275, %v2081
  %v2083 = vshll.u32 683565275, %v2080
  %v2084 = vshrl.u32 2475754826, %v2081
  %v2085 = vor.u32 %v2083, %v2084
  %v2086 = vshll.u32 2475754826, %v2080
  %v2087 = vshrl.u32 2131351028, %v2081
  %v2088 = vor.u32 %v2086, %v2087
  %v2089 = vshll.u32 2131351028, %v2080
  %v2090 = vshrl.u32 2102212464, %v2081
  %v2091 = vor.u32 %v2089, %v2090
  %v2092 = vshll.u32 2102212464, %v2080
  %v2093 = vshrl.u32 920167782, %v2081
  %v2094 = vor.u32 %v2092, %v2093
  %v2095 = vshll.u32 920167782, %v2080
  %v2096 = vshrl.u32 1326507024, %v2081
  %v2097 = vor.u32 %v2095, %v2096
  %vm2098 = vcmp.lt.s32.totalorder %v2079, 1
  %vm2099 = vcmp.lt.s32.totalorder %v2079, 2
  %vm2100 = vcmp.lt.s32.totalorder %v2079, 3
  %vm2101 = vcmp.lt.s32.totalorder %v2079, 4
  %v2102 = vsel %vm2098, %v2082, %v2085
  %v2103 = vsel %vm2101, %v2091, 2102212464
  %v2104 = vsel %vm2100, %v2088, %v2103
  %v2105 = vsel %vm2099, %v2102, %v2104
  %v2106 = vsel %vm2098, %v2085, %v2088
  %v2107 = vsel %vm2101, %v2094, 920167782
  %v2108 = vsel %vm2100, %v2091, %v2107
  %v2109 = vsel %vm2099, %v2106, %v2108
  %v2110 = vsel %vm2098, %v2088, %v2091
  %v2111 = vsel %vm2101, %v2097, 1326507024
  %v2112 = vsel %vm2100, %v2094, %v2111
  %v2113 = vsel %vm2099, %v2110, %v2112
  %v2114 = vshll.u32 %v2074, 8
  %v2115 = vmul.u32.u64.compose %v2114, %v2113
  %v2116 = vextract.low.u32 %v2115
  %v2117 = vextract.high.u32 %v2115
  %v2118 = vmul.u32.u64.compose %v2114, %v2109
  %v2119 = vextract.low.u32 %v2118
  %v2120 = vextract.high.u32 %v2118
  %v2121 = vmul.u32 %v2114, %v2105
  %v2122 = vadd.s32 %v2117, %v2119
  %vm2123 = vc.u32 %v2117, %v2119
  %v2124 = vadd.s32 %v2120, 1
  %v2125 = vsel %vm2123, %v2124, %v2120
  %v2126 = vadd.s32 %v2121, %v2125
  %v2127 = vadd.s32 %v2126, 536870912
  %v2128 = vshrl.u32 %v2127, 30
  %v2129 = vshll.u32 %v2128, 30
  %v2130 = vsub.s32 %v2126, %v2129
  %vm2131 = vcmp.lt.s32.totalorder %v2130, 0
  %v2132 = vsub.s32 0, %v2130
  %v2133 = vsel %vm2131, %v2132, %v2130
  %v2134 = vclz %v2133
  %v2135 = vsub.s32 %v2134, 2
  %vm2136 = vcmp.gt.s32.totalorder 0, %v2135
  %v2137 = vsel %vm2136, 0, %v2135
  %v2138 = vsub.s32 32, %v2137
  %v2139 = vshll.u32 %v2130, %v2137
  %v2140 = vshrl.u32 %v2122, %v2138
  %v2141 = vor.u32 %v2139, %v2140
  %v2142 = vsub.s32 4294967266, %v2137
  %v2143 = vadd.s32 %v2142, 127
  %v2144 = vshll.u32 %v2143, 23
  %v2145 = vor.u32 4788187, %v2144
  %v2146 = vand.u32 2147483647, %v2145
  %v2148 = vcvt.s32.f32 %v2141
  %v2149 = vmul.f32 %v2148, %v2146
  %v2150 = vxor.u32 %v2149, 2147483648
  %v2151 = vsel %vm2068, %v2150, %v2149
  %v2152 = vsub.s32 4, %v2128
  %v2153 = vsel %vm2068, %v2152, %v2128
  %v2154 = vsel %vm2067, %v1612, %v2151
  %v2155 = vsel %vm2067, 0, %v2153
  %v2156 = vcosq.f32.pop %v2154
  %v2157 = vsinq.f32.pop %v2154
  %vm2158 = vweird.f32 %v1612
  %v2159 = vadd.s32 %v2155, 3
  %v2160 = vand.u32 %v2159, 3
  %vm2161 = vcmp.lt.s32.totalorder %v2160, 2
  %vm2162 = vcmp.eq.s32.totalorder %v2160, 0
  %v2163 = vxor.u32 %v2157, 2147483648
  %v2164 = vsel %vm2162, %v2156, %v2163
  %vm2165 = vcmp.eq.s32.totalorder %v2160, 2
  %v2166 = vxor.u32 %v2156, 2147483648
  %v2167 = vsel %vm2165, %v2166, %v2157
  %v2168 = vsel %vm2161, %v2164, %v2167
  %v2169 = vsel %vm2158, nan, %v2168
  %v2170 = vand.u32 2147483647, %v1617
  %vm2171 = vcmp.le.f32.partialorder %v2170, 0.7853982
  %vm2172 = vcmp.lt.s32.totalorder %v1617, 0
  %v2173 = vand.u32 %v1617, 2139095040
  %v2174 = vshrl.u32 %v2173, 23
  %v2175 = vsub.s32 %v2174, 127
  %v2176 = vand.u32 2147483647, %v1617
  %v2177 = vand.u32 %v2176, 8388607
  %v2178 = vor.u32 %v2177, 8388608
  %v2179 = vsub.s32 0, %v2178
  %v2180 = vadd.s32 %v2175, 1
  %vm2181 = vcmp.gt.s32.totalorder %v2180, 0
  %v2182 = vsel %vm2181, %v2180, 0
  %v2183 = vshrl.u32 %v2182, 5
  %v2184 = vand.u32 %v2182, 31
  %v2185 = vsub.s32 32, %v2184
  %v2186 = vshrl.u32 683565275, %v2185
  %v2187 = vshll.u32 683565275, %v2184
  %v2188 = vshrl.u32 2475754826, %v2185
  %v2189 = vor.u32 %v2187, %v2188
  %v2190 = vshll.u32 2475754826, %v2184
  %v2191 = vshrl.u32 2131351028, %v2185
  %v2192 = vor.u32 %v2190, %v2191
  %v2193 = vshll.u32 2131351028, %v2184
  %v2194 = vshrl.u32 2102212464, %v2185
  %v2195 = vor.u32 %v2193, %v2194
  %v2196 = vshll.u32 2102212464, %v2184
  %v2197 = vshrl.u32 920167782, %v2185
  %v2198 = vor.u32 %v2196, %v2197
  %v2199 = vshll.u32 920167782, %v2184
  %v2200 = vshrl.u32 1326507024, %v2185
  %v2201 = vor.u32 %v2199, %v2200
  %vm2202 = vcmp.lt.s32.totalorder %v2183, 1
  %vm2203 = vcmp.lt.s32.totalorder %v2183, 2
  %vm2204 = vcmp.lt.s32.totalorder %v2183, 3
  %vm2205 = vcmp.lt.s32.totalorder %v2183, 4
  %v2206 = vsel %vm2202, %v2186, %v2189
  %v2207 = vsel %vm2205, %v2195, 2102212464
  %v2208 = vsel %vm2204, %v2192, %v2207
  %v2209 = vsel %vm2203, %v2206, %v2208
  %v2210 = vsel %vm2202, %v2189, %v2192
  %v2211 = vsel %vm2205, %v2198, 920167782
  %v2212 = vsel %vm2204, %v2195, %v2211
  %v2213 = vsel %vm2203, %v2210, %v2212
  %v2214 = vsel %vm2202, %v2192, %v2195
  %v2215 = vsel %vm2205, %v2201, 1326507024
  %v2216 = vsel %vm2204, %v2198, %v2215
  %v2217 = vsel %vm2203, %v2214, %v2216
  %v2218 = vshll.u32 %v2178, 8
  %v2219 = vmul.u32.u64.compose %v2218, %v2217
  %v2220 = vextract.low.u32 %v2219
  %v2221 = vextract.high.u32 %v2219
  %v2222 = vmul.u32.u64.compose %v2218, %v2213
  %v2223 = vextract.low.u32 %v2222
  %v2224 = vextract.high.u32 %v2222
  %v2225 = vmul.u32 %v2218, %v2209
  %v2226 = vadd.s32 %v2221, %v2223
  %vm2227 = vc.u32 %v2221, %v2223
  %v2228 = vadd.s32 %v2224, 1
  %v2229 = vsel %vm2227, %v2228, %v2224
  %v2230 = vadd.s32 %v2225, %v2229
  %v2231 = vadd.s32 %v2230, 536870912
  %v2232 = vshrl.u32 %v2231, 30
  %v2233 = vshll.u32 %v2232, 30
  %v2234 = vsub.s32 %v2230, %v2233
  %vm2235 = vcmp.lt.s32.totalorder %v2234, 0
  %v2236 = vsub.s32 0, %v2234
  %v2237 = vsel %vm2235, %v2236, %v2234
  %v2238 = vclz %v2237
  %v2239 = vsub.s32 %v2238, 2
  %vm2240 = vcmp.gt.s32.totalorder 0, %v2239
  %v2241 = vsel %vm2240, 0, %v2239
  %v2242 = vsub.s32 32, %v2241
  %v2243 = vshll.u32 %v2234, %v2241
  %v2244 = vshrl.u32 %v2226, %v2242
  %v2245 = vor.u32 %v2243, %v2244
  %v2246 = vsub.s32 4294967266, %v2241
  %v2247 = vadd.s32 %v2246, 127
  %v2248 = vshll.u32 %v2247, 23
  %v2249 = vor.u32 4788187, %v2248
  %v2250 = vand.u32 2147483647, %v2249
  %v2252 = vcvt.s32.f32 %v2245
  %v2253 = vmul.f32 %v2252, %v2250
  %v2254 = vxor.u32 %v2253, 2147483648
  %v2255 = vsel %vm2172, %v2254, %v2253
  %v2256 = vsub.s32 4, %v2232
  %v2257 = vsel %vm2172, %v2256, %v2232
  %v2258 = vsel %vm2171, %v1617, %v2255
  %v2259 = vsel %vm2171, 0, %v2257
  %v2260 = vcosq.f32.pop %v2258
  %v2261 = vsinq.f32.pop %v2258
  %vm2262 = vweird.f32 %v1617
  %v2263 = vadd.s32 %v2259, 3
  %v2264 = vand.u32 %v2263, 3
  %vm2265 = vcmp.lt.s32.totalorder %v2264, 2
  %vm2266 = vcmp.eq.s32.totalorder %v2264, 0
  %v2267 = vxor.u32 %v2261, 2147483648
  %v2268 = vsel %vm2266, %v2260, %v2267
  %vm2269 = vcmp.eq.s32.totalorder %v2264, 2
  %v2270 = vxor.u32 %v2260, 2147483648
  %v2271 = vsel %vm2269, %v2270, %v2261
  %v2272 = vsel %vm2265, %v2268, %v2271
  %v2273 = vsel %vm2262, nan, %v2272
  %v2274 = vand.u32 2147483647, %v1622
  %vm2275 = vcmp.le.f32.partialorder %v2274, 0.7853982
  %vm2276 = vcmp.lt.s32.totalorder %v1622, 0
  %v2277 = vand.u32 %v1622, 2139095040
  %v2278 = vshrl.u32 %v2277, 23
  %v2279 = vsub.s32 %v2278, 127
  %v2280 = vand.u32 2147483647, %v1622
  %v2281 = vand.u32 %v2280, 8388607
  %v2282 = vor.u32 %v2281, 8388608
  %v2283 = vsub.s32 0, %v2282
  %v2284 = vadd.s32 %v2279, 1
  %vm2285 = vcmp.gt.s32.totalorder %v2284, 0
  %v2286 = vsel %vm2285, %v2284, 0
  %v2287 = vshrl.u32 %v2286, 5
  %v2288 = vand.u32 %v2286, 31
  %v2289 = vsub.s32 32, %v2288
  %v2290 = vshrl.u32 683565275, %v2289
  %v2291 = vshll.u32 683565275, %v2288
  %v2292 = vshrl.u32 2475754826, %v2289
  %v2293 = vor.u32 %v2291, %v2292
  %v2294 = vshll.u32 2475754826, %v2288
  %v2295 = vshrl.u32 2131351028, %v2289
  %v2296 = vor.u32 %v2294, %v2295
  %v2297 = vshll.u32 2131351028, %v2288
  %v2298 = vshrl.u32 2102212464, %v2289
  %v2299 = vor.u32 %v2297, %v2298
  %v2300 = vshll.u32 2102212464, %v2288
  %v2301 = vshrl.u32 920167782, %v2289
  %v2302 = vor.u32 %v2300, %v2301
  %v2303 = vshll.u32 920167782, %v2288
  %v2304 = vshrl.u32 1326507024, %v2289
  %v2305 = vor.u32 %v2303, %v2304
  %vm2306 = vcmp.lt.s32.totalorder %v2287, 1
  %vm2307 = vcmp.lt.s32.totalorder %v2287, 2
  %vm2308 = vcmp.lt.s32.totalorder %v2287, 3
  %vm2309 = vcmp.lt.s32.totalorder %v2287, 4
  %v2310 = vsel %vm2306, %v2290, %v2293
  %v2311 = vsel %vm2309, %v2299, 2102212464
  %v2312 = vsel %vm2308, %v2296, %v2311
  %v2313 = vsel %vm2307, %v2310, %v2312
  %v2314 = vsel %vm2306, %v2293, %v2296
  %v2315 = vsel %vm2309, %v2302, 920167782
  %v2316 = vsel %vm2308, %v2299, %v2315
  %v2317 = vsel %vm2307, %v2314, %v2316
  %v2318 = vsel %vm2306, %v2296, %v2299
  %v2319 = vsel %vm2309, %v2305, 1326507024
  %v2320 = vsel %vm2308, %v2302, %v2319
  %v2321 = vsel %vm2307, %v2318, %v2320
  %v2322 = vshll.u32 %v2282, 8
  %v2323 = vmul.u32.u64.compose %v2322, %v2321
  %v2324 = vextract.low.u32 %v2323
  %v2325 = vextract.high.u32 %v2323
  %v2326 = vmul.u32.u64.compose %v2322, %v2317
  %v2327 = vextract.low.u32 %v2326
  %v2328 = vextract.high.u32 %v2326
  %v2329 = vmul.u32 %v2322, %v2313
  %v2330 = vadd.s32 %v2325, %v2327
  %vm2331 = vc.u32 %v2325, %v2327
  %v2332 = vadd.s32 %v2328, 1
  %v2333 = vsel %vm2331, %v2332, %v2328
  %v2334 = vadd.s32 %v2329, %v2333
  %v2335 = vadd.s32 %v2334, 536870912
  %v2336 = vshrl.u32 %v2335, 30
  %v2337 = vshll.u32 %v2336, 30
  %v2338 = vsub.s32 %v2334, %v2337
  %vm2339 = vcmp.lt.s32.totalorder %v2338, 0
  %v2340 = vsub.s32 0, %v2338
  %v2341 = vsel %vm2339, %v2340, %v2338
  %v2342 = vclz %v2341
  %v2343 = vsub.s32 %v2342, 2
  %vm2344 = vcmp.gt.s32.totalorder 0, %v2343
  %v2345 = vsel %vm2344, 0, %v2343
  %v2346 = vsub.s32 32, %v2345
  %v2347 = vshll.u32 %v2338, %v2345
  %v2348 = vshrl.u32 %v2330, %v2346
  %v2349 = vor.u32 %v2347, %v2348
  %v2350 = vsub.s32 4294967266, %v2345
  %v2351 = vadd.s32 %v2350, 127
  %v2352 = vshll.u32 %v2351, 23
  %v2353 = vor.u32 4788187, %v2352
  %v2354 = vand.u32 2147483647, %v2353
  %v2356 = vcvt.s32.f32 %v2349
  %v2357 = vmul.f32 %v2356, %v2354
  %v2358 = vxor.u32 %v2357, 2147483648
  %v2359 = vsel %vm2276, %v2358, %v2357
  %v2360 = vsub.s32 4, %v2336
  %v2361 = vsel %vm2276, %v2360, %v2336
  %v2362 = vsel %vm2275, %v1622, %v2359
  %v2363 = vsel %vm2275, 0, %v2361
  %v2364 = vcosq.f32.pop %v2362
  %v2365 = vsinq.f32.pop %v2362
  %vm2366 = vweird.f32 %v1622
  %v2367 = vadd.s32 %v2363, 3
  %v2368 = vand.u32 %v2367, 3
  %vm2369 = vcmp.lt.s32.totalorder %v2368, 2
  %vm2370 = vcmp.eq.s32.totalorder %v2368, 0
  %v2371 = vxor.u32 %v2365, 2147483648
  %v2372 = vsel %vm2370, %v2364, %v2371
  %vm2373 = vcmp.eq.s32.totalorder %v2368, 2
  %v2374 = vxor.u32 %v2364, 2147483648
  %v2375 = vsel %vm2373, %v2374, %v2365
  %v2376 = vsel %vm2369, %v2372, %v2375
  %v2377 = vsel %vm2366, nan, %v2376
  %v2378 = vand.u32 2147483647, %v1627
  %vm2379 = vcmp.le.f32.partialorder %v2378, 0.7853982
  %vm2380 = vcmp.lt.s32.totalorder %v1627, 0
  %v2381 = vand.u32 %v1627, 2139095040
  %v2382 = vshrl.u32 %v2381, 23
  %v2383 = vsub.s32 %v2382, 127
  %v2384 = vand.u32 2147483647, %v1627
  %v2385 = vand.u32 %v2384, 8388607
  %v2386 = vor.u32 %v2385, 8388608
  %v2387 = vsub.s32 0, %v2386
  %v2388 = vadd.s32 %v2383, 1
  %vm2389 = vcmp.gt.s32.totalorder %v2388, 0
  %v2390 = vsel %vm2389, %v2388, 0
  %v2391 = vshrl.u32 %v2390, 5
  %v2392 = vand.u32 %v2390, 31
  %v2393 = vsub.s32 32, %v2392
  %v2394 = vshrl.u32 683565275, %v2393
  %v2395 = vshll.u32 683565275, %v2392
  %v2396 = vshrl.u32 2475754826, %v2393
  %v2397 = vor.u32 %v2395, %v2396
  %v2398 = vshll.u32 2475754826, %v2392
  %v2399 = vshrl.u32 2131351028, %v2393
  %v2400 = vor.u32 %v2398, %v2399
  %v2401 = vshll.u32 2131351028, %v2392
  %v2402 = vshrl.u32 2102212464, %v2393
  %v2403 = vor.u32 %v2401, %v2402
  %v2404 = vshll.u32 2102212464, %v2392
  %v2405 = vshrl.u32 920167782, %v2393
  %v2406 = vor.u32 %v2404, %v2405
  %v2407 = vshll.u32 920167782, %v2392
  %v2408 = vshrl.u32 1326507024, %v2393
  %v2409 = vor.u32 %v2407, %v2408
  %vm2410 = vcmp.lt.s32.totalorder %v2391, 1
  %vm2411 = vcmp.lt.s32.totalorder %v2391, 2
  %vm2412 = vcmp.lt.s32.totalorder %v2391, 3
  %vm2413 = vcmp.lt.s32.totalorder %v2391, 4
  %v2414 = vsel %vm2410, %v2394, %v2397
  %v2415 = vsel %vm2413, %v2403, 2102212464
  %v2416 = vsel %vm2412, %v2400, %v2415
  %v2417 = vsel %vm2411, %v2414, %v2416
  %v2418 = vsel %vm2410, %v2397, %v2400
  %v2419 = vsel %vm2413, %v2406, 920167782
  %v2420 = vsel %vm2412, %v2403, %v2419
  %v2421 = vsel %vm2411, %v2418, %v2420
  %v2422 = vsel %vm2410, %v2400, %v2403
  %v2423 = vsel %vm2413, %v2409, 1326507024
  %v2424 = vsel %vm2412, %v2406, %v2423
  %v2425 = vsel %vm2411, %v2422, %v2424
  %v2426 = vshll.u32 %v2386, 8
  %v2427 = vmul.u32.u64.compose %v2426, %v2425
  %v2428 = vextract.low.u32 %v2427
  %v2429 = vextract.high.u32 %v2427
  %v2430 = vmul.u32.u64.compose %v2426, %v2421
  %v2431 = vextract.low.u32 %v2430
  %v2432 = vextract.high.u32 %v2430
  %v2433 = vmul.u32 %v2426, %v2417
  %v2434 = vadd.s32 %v2429, %v2431
  %vm2435 = vc.u32 %v2429, %v2431
  %v2436 = vadd.s32 %v2432, 1
  %v2437 = vsel %vm2435, %v2436, %v2432
  %v2438 = vadd.s32 %v2433, %v2437
  %v2439 = vadd.s32 %v2438, 536870912
  %v2440 = vshrl.u32 %v2439, 30
  %v2441 = vshll.u32 %v2440, 30
  %v2442 = vsub.s32 %v2438, %v2441
  %vm2443 = vcmp.lt.s32.totalorder %v2442, 0
  %v2444 = vsub.s32 0, %v2442
  %v2445 = vsel %vm2443, %v2444, %v2442
  %v2446 = vclz %v2445
  %v2447 = vsub.s32 %v2446, 2
  %vm2448 = vcmp.gt.s32.totalorder 0, %v2447
  %v2449 = vsel %vm2448, 0, %v2447
  %v2450 = vsub.s32 32, %v2449
  %v2451 = vshll.u32 %v2442, %v2449
  %v2452 = vshrl.u32 %v2434, %v2450
  %v2453 = vor.u32 %v2451, %v2452
  %v2454 = vsub.s32 4294967266, %v2449
  %v2455 = vadd.s32 %v2454, 127
  %v2456 = vshll.u32 %v2455, 23
  %v2457 = vor.u32 4788187, %v2456
  %v2458 = vand.u32 2147483647, %v2457
  %v2460 = vcvt.s32.f32 %v2453
  %v2461 = vmul.f32 %v2460, %v2458
  %v2462 = vxor.u32 %v2461, 2147483648
  %v2463 = vsel %vm2380, %v2462, %v2461
  %v2464 = vsub.s32 4, %v2440
  %v2465 = vsel %vm2380, %v2464, %v2440
  %v2466 = vsel %vm2379, %v1627, %v2463
  %v2467 = vsel %vm2379, 0, %v2465
  %v2468 = vcosq.f32.pop %v2466
  %v2469 = vsinq.f32.pop %v2466
  %vm2470 = vweird.f32 %v1627
  %v2471 = vadd.s32 %v2467, 3
  %v2472 = vand.u32 %v2471, 3
  %vm2473 = vcmp.lt.s32.totalorder %v2472, 2
  %vm2474 = vcmp.eq.s32.totalorder %v2472, 0
  %v2475 = vxor.u32 %v2469, 2147483648
  %v2476 = vsel %vm2474, %v2468, %v2475
  %vm2477 = vcmp.eq.s32.totalorder %v2472, 2
  %v2478 = vxor.u32 %v2468, 2147483648
  %v2479 = vsel %vm2477, %v2478, %v2469
  %v2480 = vsel %vm2473, %v2476, %v2479
  %v2481 = vsel %vm2470, nan, %v2480
  %v2482 = vand.u32 2147483647, %v1632
  %vm2483 = vcmp.le.f32.partialorder %v2482, 0.7853982
  %vm2484 = vcmp.lt.s32.totalorder %v1632, 0
  %v2485 = vand.u32 %v1632, 2139095040
  %v2486 = vshrl.u32 %v2485, 23
  %v2487 = vsub.s32 %v2486, 127
  %v2488 = vand.u32 2147483647, %v1632
  %v2489 = vand.u32 %v2488, 8388607
  %v2490 = vor.u32 %v2489, 8388608
  %v2491 = vsub.s32 0, %v2490
  %v2492 = vadd.s32 %v2487, 1
  %vm2493 = vcmp.gt.s32.totalorder %v2492, 0
  %v2494 = vsel %vm2493, %v2492, 0
  %v2495 = vshrl.u32 %v2494, 5
  %v2496 = vand.u32 %v2494, 31
  %v2497 = vsub.s32 32, %v2496
  %v2498 = vshrl.u32 683565275, %v2497
  %v2499 = vshll.u32 683565275, %v2496
  %v2500 = vshrl.u32 2475754826, %v2497
  %v2501 = vor.u32 %v2499, %v2500
  %v2502 = vshll.u32 2475754826, %v2496
  %v2503 = vshrl.u32 2131351028, %v2497
  %v2504 = vor.u32 %v2502, %v2503
  %v2505 = vshll.u32 2131351028, %v2496
  %v2506 = vshrl.u32 2102212464, %v2497
  %v2507 = vor.u32 %v2505, %v2506
  %v2508 = vshll.u32 2102212464, %v2496
  %v2509 = vshrl.u32 920167782, %v2497
  %v2510 = vor.u32 %v2508, %v2509
  %v2511 = vshll.u32 920167782, %v2496
  %v2512 = vshrl.u32 1326507024, %v2497
  %v2513 = vor.u32 %v2511, %v2512
  %vm2514 = vcmp.lt.s32.totalorder %v2495, 1
  %vm2515 = vcmp.lt.s32.totalorder %v2495, 2
  %vm2516 = vcmp.lt.s32.totalorder %v2495, 3
  %vm2517 = vcmp.lt.s32.totalorder %v2495, 4
  %v2518 = vsel %vm2514, %v2498, %v2501
  %v2519 = vsel %vm2517, %v2507, 2102212464
  %v2520 = vsel %vm2516, %v2504, %v2519
  %v2521 = vsel %vm2515, %v2518, %v2520
  %v2522 = vsel %vm2514, %v2501, %v2504
  %v2523 = vsel %vm2517, %v2510, 920167782
  %v2524 = vsel %vm2516, %v2507, %v2523
  %v2525 = vsel %vm2515, %v2522, %v2524
  %v2526 = vsel %vm2514, %v2504, %v2507
  %v2527 = vsel %vm2517, %v2513, 1326507024
  %v2528 = vsel %vm2516, %v2510, %v2527
  %v2529 = vsel %vm2515, %v2526, %v2528
  %v2530 = vshll.u32 %v2490, 8
  %v2531 = vmul.u32.u64.compose %v2530, %v2529
  %v2532 = vextract.low.u32 %v2531
  %v2533 = vextract.high.u32 %v2531
  %v2534 = vmul.u32.u64.compose %v2530, %v2525
  %v2535 = vextract.low.u32 %v2534
  %v2536 = vextract.high.u32 %v2534
  %v2537 = vmul.u32 %v2530, %v2521
  %v2538 = vadd.s32 %v2533, %v2535
  %vm2539 = vc.u32 %v2533, %v2535
  %v2540 = vadd.s32 %v2536, 1
  %v2541 = vsel %vm2539, %v2540, %v2536
  %v2542 = vadd.s32 %v2537, %v2541
  %v2543 = vadd.s32 %v2542, 536870912
  %v2544 = vshrl.u32 %v2543, 30
  %v2545 = vshll.u32 %v2544, 30
  %v2546 = vsub.s32 %v2542, %v2545
  %vm2547 = vcmp.lt.s32.totalorder %v2546, 0
  %v2548 = vsub.s32 0, %v2546
  %v2549 = vsel %vm2547, %v2548, %v2546
  %v2550 = vclz %v2549
  %v2551 = vsub.s32 %v2550, 2
  %vm2552 = vcmp.gt.s32.totalorder 0, %v2551
  %v2553 = vsel %vm2552, 0, %v2551
  %v2554 = vsub.s32 32, %v2553
  %v2555 = vshll.u32 %v2546, %v2553
  %v2556 = vshrl.u32 %v2538, %v2554
  %v2557 = vor.u32 %v2555, %v2556
  %v2558 = vsub.s32 4294967266, %v2553
  %v2559 = vadd.s32 %v2558, 127
  %v2560 = vshll.u32 %v2559, 23
  %v2561 = vor.u32 4788187, %v2560
  %v2562 = vand.u32 2147483647, %v2561
  %v2564 = vcvt.s32.f32 %v2557
  %v2565 = vmul.f32 %v2564, %v2562
  %v2566 = vxor.u32 %v2565, 2147483648
  %v2567 = vsel %vm2484, %v2566, %v2565
  %v2568 = vsub.s32 4, %v2544
  %v2569 = vsel %vm2484, %v2568, %v2544
  %v2570 = vsel %vm2483, %v1632, %v2567
  %v2571 = vsel %vm2483, 0, %v2569
  %v2572 = vcosq.f32.pop %v2570
  %v2573 = vsinq.f32.pop %v2570
  %vm2574 = vweird.f32 %v1632
  %v2575 = vadd.s32 %v2571, 3
  %v2576 = vand.u32 %v2575, 3
  %vm2577 = vcmp.lt.s32.totalorder %v2576, 2
  %vm2578 = vcmp.eq.s32.totalorder %v2576, 0
  %v2579 = vxor.u32 %v2573, 2147483648
  %v2580 = vsel %vm2578, %v2572, %v2579
  %vm2581 = vcmp.eq.s32.totalorder %v2576, 2
  %v2582 = vxor.u32 %v2572, 2147483648
  %v2583 = vsel %vm2581, %v2582, %v2573
  %v2584 = vsel %vm2577, %v2580, %v2583
  %v2585 = vsel %vm2574, nan, %v2584
  %v2586 = vand.u32 2147483647, %v1637
  %vm2587 = vcmp.le.f32.partialorder %v2586, 0.7853982
  %vm2588 = vcmp.lt.s32.totalorder %v1637, 0
  %v2589 = vand.u32 %v1637, 2139095040
  %v2590 = vshrl.u32 %v2589, 23
  %v2591 = vsub.s32 %v2590, 127
  %v2592 = vand.u32 2147483647, %v1637
  %v2593 = vand.u32 %v2592, 8388607
  %v2594 = vor.u32 %v2593, 8388608
  %v2595 = vsub.s32 0, %v2594
  %v2596 = vadd.s32 %v2591, 1
  %vm2597 = vcmp.gt.s32.totalorder %v2596, 0
  %v2598 = vsel %vm2597, %v2596, 0
  %v2599 = vshrl.u32 %v2598, 5
  %v2600 = vand.u32 %v2598, 31
  %v2601 = vsub.s32 32, %v2600
  %v2602 = vshrl.u32 683565275, %v2601
  %v2603 = vshll.u32 683565275, %v2600
  %v2604 = vshrl.u32 2475754826, %v2601
  %v2605 = vor.u32 %v2603, %v2604
  %v2606 = vshll.u32 2475754826, %v2600
  %v2607 = vshrl.u32 2131351028, %v2601
  %v2608 = vor.u32 %v2606, %v2607
  %v2609 = vshll.u32 2131351028, %v2600
  %v2610 = vshrl.u32 2102212464, %v2601
  %v2611 = vor.u32 %v2609, %v2610
  %v2612 = vshll.u32 2102212464, %v2600
  %v2613 = vshrl.u32 920167782, %v2601
  %v2614 = vor.u32 %v2612, %v2613
  %v2615 = vshll.u32 920167782, %v2600
  %v2616 = vshrl.u32 1326507024, %v2601
  %v2617 = vor.u32 %v2615, %v2616
  %vm2618 = vcmp.lt.s32.totalorder %v2599, 1
  %vm2619 = vcmp.lt.s32.totalorder %v2599, 2
  %vm2620 = vcmp.lt.s32.totalorder %v2599, 3
  %vm2621 = vcmp.lt.s32.totalorder %v2599, 4
  %v2622 = vsel %vm2618, %v2602, %v2605
  %v2623 = vsel %vm2621, %v2611, 2102212464
  %v2624 = vsel %vm2620, %v2608, %v2623
  %v2625 = vsel %vm2619, %v2622, %v2624
  %v2626 = vsel %vm2618, %v2605, %v2608
  %v2627 = vsel %vm2621, %v2614, 920167782
  %v2628 = vsel %vm2620, %v2611, %v2627
  %v2629 = vsel %vm2619, %v2626, %v2628
  %v2630 = vsel %vm2618, %v2608, %v2611
  %v2631 = vsel %vm2621, %v2617, 1326507024
  %v2632 = vsel %vm2620, %v2614, %v2631
  %v2633 = vsel %vm2619, %v2630, %v2632
  %v2634 = vshll.u32 %v2594, 8
  %v2635 = vmul.u32.u64.compose %v2634, %v2633
  %v2636 = vextract.low.u32 %v2635
  %v2637 = vextract.high.u32 %v2635
  %v2638 = vmul.u32.u64.compose %v2634, %v2629
  %v2639 = vextract.low.u32 %v2638
  %v2640 = vextract.high.u32 %v2638
  %v2641 = vmul.u32 %v2634, %v2625
  %v2642 = vadd.s32 %v2637, %v2639
  %vm2643 = vc.u32 %v2637, %v2639
  %v2644 = vadd.s32 %v2640, 1
  %v2645 = vsel %vm2643, %v2644, %v2640
  %v2646 = vadd.s32 %v2641, %v2645
  %v2647 = vadd.s32 %v2646, 536870912
  %v2648 = vshrl.u32 %v2647, 30
  %v2649 = vshll.u32 %v2648, 30
  %v2650 = vsub.s32 %v2646, %v2649
  %vm2651 = vcmp.lt.s32.totalorder %v2650, 0
  %v2652 = vsub.s32 0, %v2650
  %v2653 = vsel %vm2651, %v2652, %v2650
  %v2654 = vclz %v2653
  %v2655 = vsub.s32 %v2654, 2
  %vm2656 = vcmp.gt.s32.totalorder 0, %v2655
  %v2657 = vsel %vm2656, 0, %v2655
  %v2658 = vsub.s32 32, %v2657
  %v2659 = vshll.u32 %v2650, %v2657
  %v2660 = vshrl.u32 %v2642, %v2658
  %v2661 = vor.u32 %v2659, %v2660
  %v2662 = vsub.s32 4294967266, %v2657
  %v2663 = vadd.s32 %v2662, 127
  %v2664 = vshll.u32 %v2663, 23
  %v2665 = vor.u32 4788187, %v2664
  %v2666 = vand.u32 2147483647, %v2665
  %v2668 = vcvt.s32.f32 %v2661
  %v2669 = vmul.f32 %v2668, %v2666
  %v2670 = vxor.u32 %v2669, 2147483648
  %v2671 = vsel %vm2588, %v2670, %v2669
  %v2672 = vsub.s32 4, %v2648
  %v2673 = vsel %vm2588, %v2672, %v2648
  %v2674 = vsel %vm2587, %v1637, %v2671
  %v2675 = vsel %vm2587, 0, %v2673
  %v2676 = vcosq.f32.pop %v2674
  %v2677 = vsinq.f32.pop %v2674
  %vm2678 = vweird.f32 %v1637
  %v2679 = vadd.s32 %v2675, 3
  %v2680 = vand.u32 %v2679, 3
  %vm2681 = vcmp.lt.s32.totalorder %v2680, 2
  %vm2682 = vcmp.eq.s32.totalorder %v2680, 0
  %v2683 = vxor.u32 %v2677, 2147483648
  %v2684 = vsel %vm2682, %v2676, %v2683
  %vm2685 = vcmp.eq.s32.totalorder %v2680, 2
  %v2686 = vxor.u32 %v2676, 2147483648
  %v2687 = vsel %vm2685, %v2686, %v2677
  %v2688 = vsel %vm2681, %v2684, %v2687
  %v2689 = vsel %vm2678, nan, %v2688
  %v2690 = vand.u32 2147483647, %v1642
  %vm2691 = vcmp.le.f32.partialorder %v2690, 0.7853982
  %vm2692 = vcmp.lt.s32.totalorder %v1642, 0
  %v2693 = vand.u32 %v1642, 2139095040
  %v2694 = vshrl.u32 %v2693, 23
  %v2695 = vsub.s32 %v2694, 127
  %v2696 = vand.u32 2147483647, %v1642
  %v2697 = vand.u32 %v2696, 8388607
  %v2698 = vor.u32 %v2697, 8388608
  %v2699 = vsub.s32 0, %v2698
  %v2700 = vadd.s32 %v2695, 1
  %vm2701 = vcmp.gt.s32.totalorder %v2700, 0
  %v2702 = vsel %vm2701, %v2700, 0
  %v2703 = vshrl.u32 %v2702, 5
  %v2704 = vand.u32 %v2702, 31
  %v2705 = vsub.s32 32, %v2704
  %v2706 = vshrl.u32 683565275, %v2705
  %v2707 = vshll.u32 683565275, %v2704
  %v2708 = vshrl.u32 2475754826, %v2705
  %v2709 = vor.u32 %v2707, %v2708
  %v2710 = vshll.u32 2475754826, %v2704
  %v2711 = vshrl.u32 2131351028, %v2705
  %v2712 = vor.u32 %v2710, %v2711
  %v2713 = vshll.u32 2131351028, %v2704
  %v2714 = vshrl.u32 2102212464, %v2705
  %v2715 = vor.u32 %v2713, %v2714
  %v2716 = vshll.u32 2102212464, %v2704
  %v2717 = vshrl.u32 920167782, %v2705
  %v2718 = vor.u32 %v2716, %v2717
  %v2719 = vshll.u32 920167782, %v2704
  %v2720 = vshrl.u32 1326507024, %v2705
  %v2721 = vor.u32 %v2719, %v2720
  %vm2722 = vcmp.lt.s32.totalorder %v2703, 1
  %vm2723 = vcmp.lt.s32.totalorder %v2703, 2
  %vm2724 = vcmp.lt.s32.totalorder %v2703, 3
  %vm2725 = vcmp.lt.s32.totalorder %v2703, 4
  %v2726 = vsel %vm2722, %v2706, %v2709
  %v2727 = vsel %vm2725, %v2715, 2102212464
  %v2728 = vsel %vm2724, %v2712, %v2727
  %v2729 = vsel %vm2723, %v2726, %v2728
  %v2730 = vsel %vm2722, %v2709, %v2712
  %v2731 = vsel %vm2725, %v2718, 920167782
  %v2732 = vsel %vm2724, %v2715, %v2731
  %v2733 = vsel %vm2723, %v2730, %v2732
  %v2734 = vsel %vm2722, %v2712, %v2715
  %v2735 = vsel %vm2725, %v2721, 1326507024
  %v2736 = vsel %vm2724, %v2718, %v2735
  %v2737 = vsel %vm2723, %v2734, %v2736
  %v2738 = vshll.u32 %v2698, 8
  %v2739 = vmul.u32.u64.compose %v2738, %v2737
  %v2740 = vextract.low.u32 %v2739
  %v2741 = vextract.high.u32 %v2739
  %v2742 = vmul.u32.u64.compose %v2738, %v2733
  %v2743 = vextract.low.u32 %v2742
  %v2744 = vextract.high.u32 %v2742
  %v2745 = vmul.u32 %v2738, %v2729
  %v2746 = vadd.s32 %v2741, %v2743
  %vm2747 = vc.u32 %v2741, %v2743
  %v2748 = vadd.s32 %v2744, 1
  %v2749 = vsel %vm2747, %v2748, %v2744
  %v2750 = vadd.s32 %v2745, %v2749
  %v2751 = vadd.s32 %v2750, 536870912
  %v2752 = vshrl.u32 %v2751, 30
  %v2753 = vshll.u32 %v2752, 30
  %v2754 = vsub.s32 %v2750, %v2753
  %vm2755 = vcmp.lt.s32.totalorder %v2754, 0
  %v2756 = vsub.s32 0, %v2754
  %v2757 = vsel %vm2755, %v2756, %v2754
  %v2758 = vclz %v2757
  %v2759 = vsub.s32 %v2758, 2
  %vm2760 = vcmp.gt.s32.totalorder 0, %v2759
  %v2761 = vsel %vm2760, 0, %v2759
  %v2762 = vsub.s32 32, %v2761
  %v2763 = vshll.u32 %v2754, %v2761
  %v2764 = vshrl.u32 %v2746, %v2762
  %v2765 = vor.u32 %v2763, %v2764
  %v2766 = vsub.s32 4294967266, %v2761
  %v2767 = vadd.s32 %v2766, 127
  %v2768 = vshll.u32 %v2767, 23
  %v2769 = vor.u32 4788187, %v2768
  %v2770 = vand.u32 2147483647, %v2769
  %v2772 = vcvt.s32.f32 %v2765
  %v2773 = vmul.f32 %v2772, %v2770
  %v2774 = vxor.u32 %v2773, 2147483648
  %v2775 = vsel %vm2692, %v2774, %v2773
  %v2776 = vsub.s32 4, %v2752
  %v2777 = vsel %vm2692, %v2776, %v2752
  %v2778 = vsel %vm2691, %v1642, %v2775
  %v2779 = vsel %vm2691, 0, %v2777
  %v2780 = vcosq.f32.pop %v2778
  %v2781 = vsinq.f32.pop %v2778
  %vm2782 = vweird.f32 %v1642
  %v2783 = vadd.s32 %v2779, 3
  %v2784 = vand.u32 %v2783, 3
  %vm2785 = vcmp.lt.s32.totalorder %v2784, 2
  %vm2786 = vcmp.eq.s32.totalorder %v2784, 0
  %v2787 = vxor.u32 %v2781, 2147483648
  %v2788 = vsel %vm2786, %v2780, %v2787
  %vm2789 = vcmp.eq.s32.totalorder %v2784, 2
  %v2790 = vxor.u32 %v2780, 2147483648
  %v2791 = vsel %vm2789, %v2790, %v2781
  %v2792 = vsel %vm2785, %v2788, %v2791
  %v2793 = vsel %vm2782, nan, %v2792
  %v2794 = vand.u32 2147483647, %v1647
  %vm2795 = vcmp.le.f32.partialorder %v2794, 0.7853982
  %vm2796 = vcmp.lt.s32.totalorder %v1647, 0
  %v2797 = vand.u32 %v1647, 2139095040
  %v2798 = vshrl.u32 %v2797, 23
  %v2799 = vsub.s32 %v2798, 127
  %v2800 = vand.u32 2147483647, %v1647
  %v2801 = vand.u32 %v2800, 8388607
  %v2802 = vor.u32 %v2801, 8388608
  %v2803 = vsub.s32 0, %v2802
  %v2804 = vadd.s32 %v2799, 1
  %vm2805 = vcmp.gt.s32.totalorder %v2804, 0
  %v2806 = vsel %vm2805, %v2804, 0
  %v2807 = vshrl.u32 %v2806, 5
  %v2808 = vand.u32 %v2806, 31
  %v2809 = vsub.s32 32, %v2808
  %v2810 = vshrl.u32 683565275, %v2809
  %v2811 = vshll.u32 683565275, %v2808
  %v2812 = vshrl.u32 2475754826, %v2809
  %v2813 = vor.u32 %v2811, %v2812
  %v2814 = vshll.u32 2475754826, %v2808
  %v2815 = vshrl.u32 2131351028, %v2809
  %v2816 = vor.u32 %v2814, %v2815
  %v2817 = vshll.u32 2131351028, %v2808
  %v2818 = vshrl.u32 2102212464, %v2809
  %v2819 = vor.u32 %v2817, %v2818
  %v2820 = vshll.u32 2102212464, %v2808
  %v2821 = vshrl.u32 920167782, %v2809
  %v2822 = vor.u32 %v2820, %v2821
  %v2823 = vshll.u32 920167782, %v2808
  %v2824 = vshrl.u32 1326507024, %v2809
  %v2825 = vor.u32 %v2823, %v2824
  %vm2826 = vcmp.lt.s32.totalorder %v2807, 1
  %vm2827 = vcmp.lt.s32.totalorder %v2807, 2
  %vm2828 = vcmp.lt.s32.totalorder %v2807, 3
  %vm2829 = vcmp.lt.s32.totalorder %v2807, 4
  %v2830 = vsel %vm2826, %v2810, %v2813
  %v2831 = vsel %vm2829, %v2819, 2102212464
  %v2832 = vsel %vm2828, %v2816, %v2831
  %v2833 = vsel %vm2827, %v2830, %v2832
  %v2834 = vsel %vm2826, %v2813, %v2816
  %v2835 = vsel %vm2829, %v2822, 920167782
  %v2836 = vsel %vm2828, %v2819, %v2835
  %v2837 = vsel %vm2827, %v2834, %v2836
  %v2838 = vsel %vm2826, %v2816, %v2819
  %v2839 = vsel %vm2829, %v2825, 1326507024
  %v2840 = vsel %vm2828, %v2822, %v2839
  %v2841 = vsel %vm2827, %v2838, %v2840
  %v2842 = vshll.u32 %v2802, 8
  %v2843 = vmul.u32.u64.compose %v2842, %v2841
  %v2844 = vextract.low.u32 %v2843
  %v2845 = vextract.high.u32 %v2843
  %v2846 = vmul.u32.u64.compose %v2842, %v2837
  %v2847 = vextract.low.u32 %v2846
  %v2848 = vextract.high.u32 %v2846
  %v2849 = vmul.u32 %v2842, %v2833
  %v2850 = vadd.s32 %v2845, %v2847
  %vm2851 = vc.u32 %v2845, %v2847
  %v2852 = vadd.s32 %v2848, 1
  %v2853 = vsel %vm2851, %v2852, %v2848
  %v2854 = vadd.s32 %v2849, %v2853
  %v2855 = vadd.s32 %v2854, 536870912
  %v2856 = vshrl.u32 %v2855, 30
  %v2857 = vshll.u32 %v2856, 30
  %v2858 = vsub.s32 %v2854, %v2857
  %vm2859 = vcmp.lt.s32.totalorder %v2858, 0
  %v2860 = vsub.s32 0, %v2858
  %v2861 = vsel %vm2859, %v2860, %v2858
  %v2862 = vclz %v2861
  %v2863 = vsub.s32 %v2862, 2
  %vm2864 = vcmp.gt.s32.totalorder 0, %v2863
  %v2865 = vsel %vm2864, 0, %v2863
  %v2866 = vsub.s32 32, %v2865
  %v2867 = vshll.u32 %v2858, %v2865
  %v2868 = vshrl.u32 %v2850, %v2866
  %v2869 = vor.u32 %v2867, %v2868
  %v2870 = vsub.s32 4294967266, %v2865
  %v2871 = vadd.s32 %v2870, 127
  %v2872 = vshll.u32 %v2871, 23
  %v2873 = vor.u32 4788187, %v2872
  %v2874 = vand.u32 2147483647, %v2873
  %v2876 = vcvt.s32.f32 %v2869
  %v2877 = vmul.f32 %v2876, %v2874
  %v2878 = vxor.u32 %v2877, 2147483648
  %v2879 = vsel %vm2796, %v2878, %v2877
  %v2880 = vsub.s32 4, %v2856
  %v2881 = vsel %vm2796, %v2880, %v2856
  %v2882 = vsel %vm2795, %v1647, %v2879
  %v2883 = vsel %vm2795, 0, %v2881
  %v2884 = vcosq.f32.pop %v2882
  %v2885 = vsinq.f32.pop %v2882
  %vm2886 = vweird.f32 %v1647
  %v2887 = vadd.s32 %v2883, 3
  %v2888 = vand.u32 %v2887, 3
  %vm2889 = vcmp.lt.s32.totalorder %v2888, 2
  %vm2890 = vcmp.eq.s32.totalorder %v2888, 0
  %v2891 = vxor.u32 %v2885, 2147483648
  %v2892 = vsel %vm2890, %v2884, %v2891
  %vm2893 = vcmp.eq.s32.totalorder %v2888, 2
  %v2894 = vxor.u32 %v2884, 2147483648
  %v2895 = vsel %vm2893, %v2894, %v2885
  %v2896 = vsel %vm2889, %v2892, %v2895
  %v2897 = vsel %vm2886, nan, %v2896
  %v2899 = vlaneseq
  %v2900 = vshrl.u32 %v2899, 7
  %v2901 = vsub.s32 0, %v2900
  %v2902 = vrot.slane %v86, %v2901
  %2904 = vmatprep.subr.mxu0 0.0
  %2905 = vmatpush1.msra.mxu0 %v70
  %2906 = vmatprep.subr.mxu0 0.0
  %2907 = vmatpush1.msra.mxu0 %v71
  %2908 = vmatprep.subr.mxu0 0.0
  %2909 = vmatpush1.msra.mxu0 %v72
  %2910 = vmatprep.subr.mxu0 0.0
  %2911 = vmatpush1.msra.mxu0 %v73
  %2912 = vmatprep.subr.mxu0 0.0
  %2913 = vmatpush1.msra.mxu0 %v74
  %2914 = vmatprep.subr.mxu0 0.0
  %2915 = vmatpush1.msra.mxu0 %v75
  %2916 = vmatprep.subr.mxu0 0.0
  %2917 = vmatpush1.msra.mxu0 %v76
  %2918 = vmatprep.subr.mxu0 0.0
  %2919 = vmatpush1.msra.mxu0 %v77
  %2920 = vmatprep.subr.mxu0 0.0
  %2921 = vmatpush1.msra.mxu0 %v78
  %2922 = vmatprep.subr.mxu0 0.0
  %2923 = vmatpush1.msra.mxu0 %v79
  %2924 = vmatprep.subr.mxu0 0.0
  %2925 = vmatpush1.msra.mxu0 %v80
  %2926 = vmatprep.subr.mxu0 0.0
  %2927 = vmatpush1.msra.mxu0 %v81
  %2928 = vmatprep.subr.mxu0 0.0
  %2929 = vmatpush1.msra.mxu0 %v82
  %2930 = vmatprep.subr.mxu0 0.0
  %2931 = vmatpush1.msra.mxu0 %v83
  %2932 = vmatprep.subr.mxu0 0.0
  %2933 = vmatpush1.msra.mxu0 %v84
  %2934 = vmatprep.subr.mxu0 0.0
  %2935 = vmatpush1.msra.mxu0 %v85
  %2936 = vmatprep.subr.mxu0 0.0
  %2937 = vmatpush1.msra.mxu0 0.0
  %2938 = vmatprep.subr.mxu0 0.0
  %2939 = vmatpush1.msra.mxu0 0.0
  %2940 = vmatprep.subr.mxu0 0.0
  %2941 = vmatpush1.msra.mxu0 0.0
  %2942 = vmatprep.subr.mxu0 0.0
  %2943 = vmatpush1.msra.mxu0 0.0
  %2944 = vmatprep.subr.mxu0 0.0
  %2945 = vmatpush1.msra.mxu0 0.0
  %2946 = vmatprep.subr.mxu0 0.0
  %2947 = vmatpush1.msra.mxu0 0.0
  %2948 = vmatprep.subr.mxu0 0.0
  %2949 = vmatpush1.msra.mxu0 0.0
  %2950 = vmatprep.subr.mxu0 0.0
  %2951 = vmatpush1.msra.mxu0 0.0
  %2952 = vmatprep.subr.mxu0 0.0
  %2953 = vmatpush1.msra.mxu0 0.0
  %2954 = vmatprep.subr.mxu0 0.0
  %2955 = vmatpush1.msra.mxu0 0.0
  %2956 = vmatprep.subr.mxu0 0.0
  %2957 = vmatpush1.msra.mxu0 0.0
  %2958 = vmatprep.subr.mxu0 0.0
  %2959 = vmatpush1.msra.mxu0 0.0
  %2960 = vmatprep.subr.mxu0 0.0
  %2961 = vmatpush1.msra.mxu0 0.0
  %2962 = vmatprep.subr.mxu0 0.0
  %2963 = vmatpush1.msra.mxu0 0.0
  %2964 = vmatprep.subr.mxu0 0.0
  %2965 = vmatpush1.msra.mxu0 0.0
  %2966 = vmatprep.subr.mxu0 0.0
  %2967 = vmatpush1.msra.mxu0 0.0
  %2968 = vmatprep.mubr.f32.mxu0 0.0
  %2969 = vmatmul.mubr.f32.gmra.mrb[0].mxu0 %v1753
  %v2970 = vpop.f32.mrb[0].mxu0
  %v2971 = vadd.f32 %v2902, %v2970
  %v2972 = vpop.f32.mrb[0].mxu0
  %2973 = vmatprep.mubr.f32.mxu0 0.0
  %2974 = vmatmul.mubr.f32.gmra.mrb[0].mxu0 %v1857
  %v2975 = vpop.f32.mrb[0].mxu0
  %v2976 = vadd.f32 %v2902, %v2975
  %v2977 = vpop.f32.mrb[0].mxu0
  %2978 = vmatprep.mubr.f32.mxu0 0.0
  %2979 = vmatmul.mubr.f32.gmra.mrb[0].mxu0 %v1961
  %v2980 = vpop.f32.mrb[0].mxu0
  %v2981 = vadd.f32 %v2902, %v2980
  %v2982 = vpop.f32.mrb[0].mxu0
  %2983 = vmatprep.mubr.f32.mxu0 0.0
  %2984 = vmatmul.mubr.f32.gmra.mrb[0].mxu0 %v2065
  %v2985 = vpop.f32.mrb[0].mxu0
  %v2986 = vadd.f32 %v2902, %v2985
  %v2987 = vpop.f32.mrb[0].mxu0
  %2988 = vmatprep.mubr.f32.mxu0 0.0
  %2989 = vmatmul.mubr.f32.gmra.mrb[0].mxu0 %v2169
  %v2990 = vpop.f32.mrb[0].mxu0
  %v2991 = vadd.f32 %v2902, %v2990
  %v2992 = vpop.f32.mrb[0].mxu0
  %2993 = vmatprep.mubr.f32.mxu0 0.0
  %2994 = vmatmul.mubr.f32.gmra.mrb[0].mxu0 %v2273
  %v2995 = vpop.f32.mrb[0].mxu0
  %v2996 = vadd.f32 %v2902, %v2995
  %v2997 = vpop.f32.mrb[0].mxu0
  %2998 = vmatprep.mubr.f32.mxu0 0.0
  %2999 = vmatmul.mubr.f32.gmra.mrb[0].mxu0 %v2377
  %v3000 = vpop.f32.mrb[0].mxu0
  %v3001 = vadd.f32 %v2902, %v3000
  %v3002 = vpop.f32.mrb[0].mxu0
  %3003 = vmatprep.mubr.f32.mxu0 0.0
  %3004 = vmatmul.mubr.f32.gmra.mrb[0].mxu0 %v2481
  %v3005 = vpop.f32.mrb[0].mxu0
  %v3006 = vadd.f32 %v2902, %v3005
  %v3007 = vpop.f32.mrb[0].mxu0
  %3008 = vmatprep.mubr.f32.mxu0 0.0
  %3009 = vmatmul.mubr.f32.gmra.mrb[0].mxu0 %v2585
  %v3010 = vpop.f32.mrb[0].mxu0
  %v3011 = vadd.f32 %v2902, %v3010
  %v3012 = vpop.f32.mrb[0].mxu0
  %3013 = vmatprep.mubr.f32.mxu0 0.0
  %3014 = vmatmul.mubr.f32.gmra.mrb[0].mxu0 %v2689
  %v3015 = vpop.f32.mrb[0].mxu0
  %v3016 = vadd.f32 %v2902, %v3015
  %v3017 = vpop.f32.mrb[0].mxu0
  %3018 = vmatprep.mubr.f32.mxu0 0.0
  %3019 = vmatmul.mubr.f32.gmra.mrb[0].mxu0 %v2793
  %v3020 = vpop.f32.mrb[0].mxu0
  %v3021 = vadd.f32 %v2902, %v3020
  %v3022 = vpop.f32.mrb[0].mxu0
  %3023 = vmatprep.mubr.f32.mxu0 0.0
  %3024 = vmatmul.mubr.f32.gmra.mrb[0].mxu0 %v2897
  %v3025 = vpop.f32.mrb[0].mxu0
  %v3026 = vadd.f32 %v2902, %v3025
  %v3027 = vpop.f32.mrb[0].mxu0
  %3028 = vdwg.mxu0
  %3029 = vst [vmem:[%s12] sm:$0xff] %v3011
  %3030 = vst [vmem:[%s12 + $0x8] sm:$0xff] %v3016
  %3031 = vst [vmem:[%s12 + $0x10] sm:$0xff] %v3021
  %3032 = vst [vmem:[%s12 + $0x18] sm:$0xff] %v3026
  %v3033 = vld [vmem:[%s9] sm:$0xff]
  %v3034 = vld [vmem:[%s9 + $0x8] sm:$0xff]
  %v3035 = vld [vmem:[%s9 + $0x10] sm:$0xff]
  %v3036 = vld [vmem:[%s9 + $0x18] sm:$0xff]
  %v3037 = vld [vmem:[%s9 + $0x20] sm:$0xff]
  %v3038 = vld [vmem:[%s9 + $0x28] sm:$0xff]
  %v3039 = vld [vmem:[%s9 + $0x30] sm:$0xff]
  %v3040 = vld [vmem:[%s9 + $0x38] sm:$0xff]
  %vm3041 = vcmp.ne.s32.totalorder %v3033, 0
  %vm3042 = vcmp.ne.s32.totalorder %v3034, 0
  %vm3043 = vcmp.ne.s32.totalorder %v3035, 0
  %vm3044 = vcmp.ne.s32.totalorder %v3036, 0
  %vm3045 = vcmp.ne.s32.totalorder %v3037, 0
  %vm3046 = vcmp.ne.s32.totalorder %v3038, 0
  %vm3047 = vcmp.ne.s32.totalorder %v3039, 0
  %vm3048 = vcmp.ne.s32.totalorder %v3040, 0
  %v3049 = vsel %vm3041, 1, 0
  %v3050 = vsel %vm3042, 1, 0
  %v3051 = vsel %vm3043, 1, 0
  %v3052 = vsel %vm3044, 1, 0
  %v3053 = vsel %vm3045, 1, 0
  %v3054 = vsel %vm3046, 1, 0
  %v3055 = vsel %vm3047, 1, 0
  %v3056 = vsel %vm3048, 1, 0
  %3057 = vset.pattern.permute.xlu0 0
  %3058 = vperm.xlu0 %3057, %v3049
  %v3059 = vpop.permute.xlu0 %3058
  %3060 = vset.pattern.permute.xlu0 0
  %3061 = vperm.xlu0 %3060, %v3050
  %v3062 = vpop.permute.xlu0 %3061
  %3063 = vset.pattern.permute.xlu0 0
  %3064 = vperm.xlu0 %3063, %v3051
  %v3065 = vpop.permute.xlu0 %3064
  %3066 = vset.pattern.permute.xlu0 0
  %3067 = vperm.xlu0 %3066, %v3052
  %v3068 = vpop.permute.xlu0 %3067
  %3069 = vset.pattern.permute.xlu0 0
  %3070 = vperm.xlu0 %3069, %v3053
  %v3071 = vpop.permute.xlu0 %3070
  %3072 = vset.pattern.permute.xlu0 0
  %3073 = vperm.xlu0 %3072, %v3054
  %v3074 = vpop.permute.xlu0 %3073
  %3075 = vset.pattern.permute.xlu0 0
  %3076 = vperm.xlu0 %3075, %v3055
  %v3077 = vpop.permute.xlu0 %3076
  %3078 = vset.pattern.permute.xlu0 0
  %3079 = vperm.xlu0 %3078, %v3056
  %v3080 = vpop.permute.xlu0 %3079
  %vm3081 = vcmp.eq.s32.totalorder %v3059, 1
  %vm3082 = vcmp.eq.s32.totalorder %v3062, 1
  %vm3083 = vcmp.eq.s32.totalorder %v3065, 1
  %vm3084 = vcmp.eq.s32.totalorder %v3068, 1
  %vm3085 = vcmp.eq.s32.totalorder %v3071, 1
  %vm3086 = vcmp.eq.s32.totalorder %v3074, 1
  %vm3087 = vcmp.eq.s32.totalorder %v3077, 1
  %vm3088 = vcmp.eq.s32.totalorder %v3080, 1
  %v3089 = vsel %vm3081, %v2971, 0.0
  %v3090 = vsel %vm3082, %v2976, 0.0
  %v3091 = vsel %vm3083, %v2981, 0.0
  %v3092 = vsel %vm3084, %v2986, 0.0
  %v3093 = vsel %vm3085, %v2991, 0.0
  %v3094 = vsel %vm3086, %v2996, 0.0
  %v3095 = vsel %vm3087, %v3001, 0.0
  %v3096 = vsel %vm3088, %v3006, 0.0
  %v3097 = vld [vmem:[%s8] sm:$0xff]
  %v3098 = vld [vmem:[%s8 + $0x8] sm:$0xff]
  %v3099 = vld [vmem:[%s8 + $0x10] sm:$0xff]
  %v3100 = vld [vmem:[%s8 + $0x18] sm:$0xff]
  %v3101 = vld [vmem:[%s8 + $0x20] sm:$0xff]
  %v3102 = vld [vmem:[%s8 + $0x28] sm:$0xff]
  %v3103 = vld [vmem:[%s8 + $0x30] sm:$0xff]
  %v3104 = vld [vmem:[%s8 + $0x38] sm:$0xff]
  %v3105 = vsel %vm3081, %v3097, 0.0
  %v3106 = vsel %vm3082, %v3098, 0.0
  %v3107 = vsel %vm3083, %v3099, 0.0
  %v3108 = vsel %vm3084, %v3100, 0.0
  %v3109 = vsel %vm3085, %v3101, 0.0
  %v3110 = vsel %vm3086, %v3102, 0.0
  %v3111 = vsel %vm3087, %v3103, 0.0
  %v3112 = vsel %vm3088, %v3104, 0.0
  %v3113 = vlaneseq
  %v3114 = vshrl.u32 %v3113, 7
  %v3115 = vadd.s32 %v3114, 8
  %v3116 = vadd.s32 %v3114, 16
  %v3117 = vadd.s32 %v3114, 24
  %v3118 = vadd.s32 %v3114, 32
  %v3119 = vadd.s32 %v3114, 40
  %v3120 = vadd.s32 %v3114, 48
  %v3121 = vadd.s32 %v3114, 56
  %v3122 = vadd.s32 %v3114, 64
  %v3123 = vadd.s32 %v3114, 72
  %v3124 = vadd.s32 %v3114, 80
  %v3125 = vadd.s32 %v3114, 88
  %v3126 = vadd.s32 %v3114, 96
  %v3127 = vadd.s32 %v3114, 104
  %v3128 = vadd.s32 %v3114, 112
  %v3129 = vadd.s32 %v3114, 120
  %v3130 = vlaneseq
  %v3131 = vand.u32 %v3130, 127
  %vm3132 = vcmp.eq.s32.totalorder %v3114, %v3131
  %vm3133 = vcmp.eq.s32.totalorder %v3115, %v3131
  %vm3134 = vcmp.eq.s32.totalorder %v3116, %v3131
  %vm3135 = vcmp.eq.s32.totalorder %v3117, %v3131
  %vm3136 = vcmp.eq.s32.totalorder %v3118, %v3131
  %vm3137 = vcmp.eq.s32.totalorder %v3119, %v3131
  %vm3138 = vcmp.eq.s32.totalorder %v3120, %v3131
  %vm3139 = vcmp.eq.s32.totalorder %v3121, %v3131
  %vm3140 = vcmp.eq.s32.totalorder %v3122, %v3131
  %vm3141 = vcmp.eq.s32.totalorder %v3123, %v3131
  %vm3142 = vcmp.eq.s32.totalorder %v3124, %v3131
  %vm3143 = vcmp.eq.s32.totalorder %v3125, %v3131
  %vm3144 = vcmp.eq.s32.totalorder %v3126, %v3131
  %vm3145 = vcmp.eq.s32.totalorder %v3127, %v3131
  %vm3146 = vcmp.eq.s32.totalorder %v3128, %v3131
  %vm3147 = vcmp.eq.s32.totalorder %v3129, %v3131
  %v3148 = vsel %vm3132, 1, 0
  %v3149 = vsel %vm3133, 1, 0
  %v3150 = vsel %vm3134, 1, 0
  %v3151 = vsel %vm3135, 1, 0
  %v3152 = vsel %vm3136, 1, 0
  %v3153 = vsel %vm3137, 1, 0
  %v3154 = vsel %vm3138, 1, 0
  %v3155 = vsel %vm3139, 1, 0
  %v3156 = vsel %vm3140, 1, 0
  %v3157 = vsel %vm3141, 1, 0
  %v3158 = vsel %vm3142, 1, 0
  %v3159 = vsel %vm3143, 1, 0
  %v3160 = vsel %vm3144, 1, 0
  %v3161 = vsel %vm3145, 1, 0
  %v3162 = vsel %vm3146, 1, 0
  %v3163 = vsel %vm3147, 1, 0
  %v3164 = vcvt.s32.f32 %v3148
  %v3165 = vcvt.s32.f32 %v3149
  %v3166 = vcvt.s32.f32 %v3150
  %v3167 = vcvt.s32.f32 %v3151
  %v3168 = vcvt.s32.f32 %v3152
  %v3169 = vcvt.s32.f32 %v3153
  %v3170 = vcvt.s32.f32 %v3154
  %v3171 = vcvt.s32.f32 %v3155
  %v3172 = vcvt.s32.f32 %v3156
  %v3173 = vcvt.s32.f32 %v3157
  %v3174 = vcvt.s32.f32 %v3158
  %v3175 = vcvt.s32.f32 %v3159
  %v3176 = vcvt.s32.f32 %v3160
  %v3177 = vcvt.s32.f32 %v3161
  %v3178 = vcvt.s32.f32 %v3162
  %v3179 = vcvt.s32.f32 %v3163
  %s3180 = sld [smem:[#allocation2]]
  %v3181 = vstv %s3180
  %v3182 = vmul.f32 %v3164, %v3181
  %v3183 = vmul.f32 %v3165, %v3181
  %v3184 = vmul.f32 %v3166, %v3181
  %v3185 = vmul.f32 %v3167, %v3181
  %v3186 = vmul.f32 %v3168, %v3181
  %v3187 = vmul.f32 %v3169, %v3181
  %v3188 = vmul.f32 %v3170, %v3181
  %v3189 = vmul.f32 %v3171, %v3181
  %v3190 = vmul.f32 %v3172, %v3181
  %v3191 = vmul.f32 %v3173, %v3181
  %v3192 = vmul.f32 %v3174, %v3181
  %v3193 = vmul.f32 %v3175, %v3181
  %v3194 = vmul.f32 %v3176, %v3181
  %v3195 = vmul.f32 %v3177, %v3181
  %v3196 = vmul.f32 %v3178, %v3181
  %v3197 = vmul.f32 %v3179, %v3181
  %3198 = vxpose.xlu0.b32.start [1/16] %v3089, 128
  %3199 = vxpose.xlu0.b32.cont [2/16] %v3090, 128
  %3200 = vxpose.xlu0.b32.cont [3/16] %v3091, 128
  %3201 = vxpose.xlu0.b32.cont [4/16] %v3092, 128
  %3202 = vxpose.xlu0.b32.cont [5/16] %v3093, 128
  %3203 = vxpose.xlu0.b32.cont [6/16] %v3094, 128
  %3204 = vxpose.xlu0.b32.cont [7/16] %v3095, 128
  %3205 = vxpose.xlu0.b32.cont [8/16] %v3096, 128
  %3206 = vxpose.xlu0.b32.cont [9/16] 0.0, 128
  %3207 = vxpose.xlu0.b32.cont [10/16] 0.0, 128
  %3208 = vxpose.xlu0.b32.cont [11/16] 0.0, 128
  %3209 = vxpose.xlu0.b32.cont [12/16] 0.0, 128
  %3210 = vxpose.xlu0.b32.cont [13/16] 0.0, 128
  %3211 = vxpose.xlu0.b32.cont [14/16] 0.0, 128
  %3212 = vxpose.xlu0.b32.cont [15/16] 0.0, 128
  %3213 = vxpose.xlu0.b32.end [16/16] 0.0, 128
  %v3214 = vpop.trf.xlu0
  %v3215 = vpop.trf.xlu0
  %v3216 = vpop.trf.xlu0
  %v3217 = vpop.trf.xlu0
  %v3218 = vpop.trf.xlu0
  %v3219 = vpop.trf.xlu0
  %v3220 = vpop.trf.xlu0
  %v3221 = vpop.trf.xlu0
  %v3222 = vpop.trf.xlu0
  %v3223 = vpop.trf.xlu0
  %v3224 = vpop.trf.xlu0
  %v3225 = vpop.trf.xlu0
  %v3226 = vpop.trf.xlu0
  %v3227 = vpop.trf.xlu0
  %v3228 = vpop.trf.xlu0
  %v3229 = vpop.trf.xlu0
  %vm3230 = vcmask 523264
  %v3232 = vsel %vm3230, %v3214, 0
  %v3235 = vsel %vm3230, %v3215, 0
  %v3238 = vsel %vm3230, %v3216, 0
  %v3241 = vsel %vm3230, %v3217, 0
  %v3244 = vsel %vm3230, %v3218, 0
  %v3247 = vsel %vm3230, %v3219, 0
  %v3250 = vsel %vm3230, %v3220, 0
  %v3253 = vsel %vm3230, %v3221, 0
  %v3256 = vsel %vm3230, %v3222, 0
  %v3259 = vsel %vm3230, %v3223, 0
  %v3262 = vsel %vm3230, %v3224, 0
  %v3265 = vsel %vm3230, %v3225, 0
  %v3268 = vsel %vm3230, %v3226, 0
  %v3271 = vsel %vm3230, %v3227, 0
  %v3274 = vsel %vm3230, %v3228, 0
  %v3277 = vsel %vm3230, %v3229, 0
  %3279 = vmatprep.subr.mxu0 0.0
  %3280 = vmatpush1.msra.mxu0 %v3089
  %3281 = vmatprep.subr.mxu0 0.0
  %3282 = vmatpush1.msra.mxu0 %v3090
  %3283 = vmatprep.subr.mxu0 0.0
  %3284 = vmatpush1.msra.mxu0 %v3091
  %3285 = vmatprep.subr.mxu0 0.0
  %3286 = vmatpush1.msra.mxu0 %v3092
  %3287 = vmatprep.subr.mxu0 0.0
  %3288 = vmatpush1.msra.mxu0 %v3093
  %3289 = vmatprep.subr.mxu0 0.0
  %3290 = vmatpush1.msra.mxu0 %v3094
  %3291 = vmatprep.subr.mxu0 0.0
  %3292 = vmatpush1.msra.mxu0 %v3095
  %3293 = vmatprep.subr.mxu0 0.0
  %3294 = vmatpush1.msra.mxu0 %v3096
  %3295 = vmatprep.subr.mxu0 0.0
  %3296 = vmatpush1.msra.mxu0 0.0
  %3297 = vmatprep.subr.mxu0 0.0
  %3298 = vmatpush1.msra.mxu0 0.0
  %3299 = vmatprep.subr.mxu0 0.0
  %3300 = vmatpush1.msra.mxu0 0.0
  %3301 = vmatprep.subr.mxu0 0.0
  %3302 = vmatpush1.msra.mxu0 0.0
  %3303 = vmatprep.subr.mxu0 0.0
  %3304 = vmatpush1.msra.mxu0 0.0
  %3305 = vmatprep.subr.mxu0 0.0
  %3306 = vmatpush1.msra.mxu0 0.0
  %3307 = vmatprep.subr.mxu0 0.0
  %3308 = vmatpush1.msra.mxu0 0.0
  %3309 = vmatprep.subr.mxu0 0.0
  %3310 = vmatpush1.msra.mxu0 0.0
  %3311 = vmatprep.subr.mxu0 0.0
  %3312 = vmatpush1.msra.mxu0 0.0
  %3313 = vmatprep.subr.mxu0 0.0
  %3314 = vmatpush1.msra.mxu0 0.0
  %3315 = vmatprep.subr.mxu0 0.0
  %3316 = vmatpush1.msra.mxu0 0.0
  %3317 = vmatprep.subr.mxu0 0.0
  %3318 = vmatpush1.msra.mxu0 0.0
  %3319 = vmatprep.subr.mxu0 0.0
  %3320 = vmatpush1.msra.mxu0 0.0
  %3321 = vmatprep.subr.mxu0 0.0
  %3322 = vmatpush1.msra.mxu0 0.0
  %3323 = vmatprep.subr.mxu0 0.0
  %3324 = vmatpush1.msra.mxu0 0.0
  %3325 = vmatprep.subr.mxu0 0.0
  %3326 = vmatpush1.msra.mxu0 0.0
  %3327 = vmatprep.subr.mxu0 0.0
  %3328 = vmatpush1.msra.mxu0 0.0
  %3329 = vmatprep.subr.mxu0 0.0
  %3330 = vmatpush1.msra.mxu0 0.0
  %3331 = vmatprep.subr.mxu0 0.0
  %3332 = vmatpush1.msra.mxu0 0.0
  %3333 = vmatprep.subr.mxu0 0.0
  %3334 = vmatpush1.msra.mxu0 0.0
  %3335 = vmatprep.subr.mxu0 0.0
  %3336 = vmatpush1.msra.mxu0 0.0
  %3337 = vmatprep.subr.mxu0 0.0
  %3338 = vmatpush1.msra.mxu0 0.0
  %3339 = vmatprep.subr.mxu0 0.0
  %3340 = vmatpush1.msra.mxu0 0.0
  %3341 = vmatprep.subr.mxu0 0.0
  %3342 = vmatpush1.msra.mxu0 0.0
  %3343 = vmatprep.mubr.f32.mxu0 0.0
  %3344 = vmatmul.mubr.f32.gmra.mrb[0].mxu0 %v3232
  %v3345 = vpop.f32.mrb[0].mxu0
  %v3346 = vadd.f32 %v3182, %v3345
  %v3347 = vpop.f32.mrb[0].mxu0
  %3348 = vmatprep.mubr.f32.mxu0 0.0
  %3349 = vmatmul.mubr.f32.gmra.mrb[0].mxu0 %v3235
  %v3350 = vpop.f32.mrb[0].mxu0
  %v3351 = vadd.f32 %v3183, %v3350
  %v3352 = vpop.f32.mrb[0].mxu0
  %3353 = vmatprep.mubr.f32.mxu0 0.0
  %3354 = vmatmul.mubr.f32.gmra.mrb[0].mxu0 %v3238
  %v3355 = vpop.f32.mrb[0].mxu0
  %v3356 = vadd.f32 %v3184, %v3355
  %v3357 = vpop.f32.mrb[0].mxu0
  %3358 = vmatprep.mubr.f32.mxu0 0.0
  %3359 = vmatmul.mubr.f32.gmra.mrb[0].mxu0 %v3241
  %v3360 = vpop.f32.mrb[0].mxu0
  %v3361 = vadd.f32 %v3185, %v3360
  %v3362 = vpop.f32.mrb[0].mxu0
  %3363 = vmatprep.mubr.f32.mxu0 0.0
  %3364 = vmatmul.mubr.f32.gmra.mrb[0].mxu0 %v3244
  %v3365 = vpop.f32.mrb[0].mxu0
  %v3366 = vadd.f32 %v3186, %v3365
  %v3367 = vpop.f32.mrb[0].mxu0
  %3368 = vmatprep.mubr.f32.mxu0 0.0
  %3369 = vmatmul.mubr.f32.gmra.mrb[0].mxu0 %v3247
  %v3370 = vpop.f32.mrb[0].mxu0
  %v3371 = vadd.f32 %v3187, %v3370
  %v3372 = vpop.f32.mrb[0].mxu0
  %3373 = vmatprep.mubr.f32.mxu0 0.0
  %3374 = vmatmul.mubr.f32.gmra.mrb[0].mxu0 %v3250
  %v3375 = vpop.f32.mrb[0].mxu0
  %v3376 = vadd.f32 %v3188, %v3375
  %v3377 = vpop.f32.mrb[0].mxu0
  %3378 = vmatprep.mubr.f32.mxu0 0.0
  %3379 = vmatmul.mubr.f32.gmra.mrb[0].mxu0 %v3253
  %v3380 = vpop.f32.mrb[0].mxu0
  %v3381 = vadd.f32 %v3189, %v3380
  %v3382 = vpop.f32.mrb[0].mxu0
  %3383 = vmatprep.mubr.f32.mxu0 0.0
  %3384 = vmatmul.mubr.f32.gmra.mrb[0].mxu0 %v3256
  %v3385 = vpop.f32.mrb[0].mxu0
  %v3386 = vadd.f32 %v3190, %v3385
  %v3387 = vpop.f32.mrb[0].mxu0
  %3388 = vmatprep.mubr.f32.mxu0 0.0
  %3389 = vmatmul.mubr.f32.gmra.mrb[0].mxu0 %v3259
  %v3390 = vpop.f32.mrb[0].mxu0
  %v3391 = vadd.f32 %v3191, %v3390
  %v3392 = vpop.f32.mrb[0].mxu0
  %3393 = vmatprep.mubr.f32.mxu0 0.0
  %3394 = vmatmul.mubr.f32.gmra.mrb[0].mxu0 %v3262
  %v3395 = vpop.f32.mrb[0].mxu0
  %v3396 = vadd.f32 %v3192, %v3395
  %v3397 = vpop.f32.mrb[0].mxu0
  %3398 = vmatprep.mubr.f32.mxu0 0.0
  %3399 = vmatmul.mubr.f32.gmra.mrb[0].mxu0 %v3265
  %v3400 = vpop.f32.mrb[0].mxu0
  %v3401 = vadd.f32 %v3193, %v3400
  %v3402 = vpop.f32.mrb[0].mxu0
  %3403 = vmatprep.mubr.f32.mxu0 0.0
  %3404 = vmatmul.mubr.f32.gmra.mrb[0].mxu0 %v3268
  %v3405 = vpop.f32.mrb[0].mxu0
  %v3406 = vadd.f32 %v3194, %v3405
  %v3407 = vpop.f32.mrb[0].mxu0
  %3408 = vmatprep.mubr.f32.mxu0 0.0
  %3409 = vmatmul.mubr.f32.gmra.mrb[0].mxu0 %v3271
  %v3410 = vpop.f32.mrb[0].mxu0
  %v3411 = vadd.f32 %v3195, %v3410
  %v3412 = vpop.f32.mrb[0].mxu0
  %3413 = vmatprep.mubr.f32.mxu0 0.0
  %3414 = vmatmul.mubr.f32.gmra.mrb[0].mxu0 %v3274
  %v3415 = vpop.f32.mrb[0].mxu0
  %v3416 = vadd.f32 %v3196, %v3415
  %v3417 = vpop.f32.mrb[0].mxu0
  %3418 = vmatprep.mubr.f32.mxu0 0.0
  %3419 = vmatmul.mubr.f32.gmra.mrb[0].mxu0 %v3277
  %v3420 = vpop.f32.mrb[0].mxu0
  %v3421 = vadd.f32 %v3197, %v3420
  %v3422 = vpop.f32.mrb[0].mxu0
  %3423 = vdwg.mxu0
  %3424 = vst [vmem:[%s10] sm:$0xff] %v3346
  %3425 = vst [vmem:[%s10 + $0x8] sm:$0xff] %v3351
  %3426 = vst [vmem:[%s10 + $0x10] sm:$0xff] %v3356
  %3427 = vst [vmem:[%s10 + $0x18] sm:$0xff] %v3361
  %3428 = vst [vmem:[%s10 + $0x20] sm:$0xff] %v3366
  %3429 = vst [vmem:[%s10 + $0x28] sm:$0xff] %v3371
  %3430 = vst [vmem:[%s10 + $0x30] sm:$0xff] %v3376
  %3431 = vst [vmem:[%s10 + $0x38] sm:$0xff] %v3381
  %3432 = vst [vmem:[%s10 + $0x40] sm:$0xff] %v3386
  %3433 = vst [vmem:[%s10 + $0x48] sm:$0xff] %v3391
  %3434 = vst [vmem:[%s10 + $0x50] sm:$0xff] %v3396
  %3435 = vst [vmem:[%s10 + $0x58] sm:$0xff] %v3401
  %3436 = vst [vmem:[%s10 + $0x60] sm:$0xff] %v3406
  %3437 = vst [vmem:[%s10 + $0x68] sm:$0xff] %v3411
  %3438 = vst [vmem:[%s10 + $0x70] sm:$0xff] %v3416
  %3439 = vst [vmem:[%s10 + $0x78] sm:$0xff] %v3421
  %3440 = vmatprep.subr.mxu0 0.0
  %3441 = vmatpush1.msra.mxu0 %v3105
  %3442 = vmatprep.subr.mxu0 0.0
  %3443 = vmatpush1.msra.mxu0 %v3106
  %3444 = vmatprep.subr.mxu0 0.0
  %3445 = vmatpush1.msra.mxu0 %v3107
  %3446 = vmatprep.subr.mxu0 0.0
  %3447 = vmatpush1.msra.mxu0 %v3108
  %3448 = vmatprep.subr.mxu0 0.0
  %3449 = vmatpush1.msra.mxu0 %v3109
  %3450 = vmatprep.subr.mxu0 0.0
  %3451 = vmatpush1.msra.mxu0 %v3110
  %3452 = vmatprep.subr.mxu0 0.0
  %3453 = vmatpush1.msra.mxu0 %v3111
  %3454 = vmatprep.subr.mxu0 0.0
  %3455 = vmatpush1.msra.mxu0 %v3112
  %3456 = vmatprep.subr.mxu0 0.0
  %3457 = vmatpush1.msra.mxu0 0.0
  %3458 = vmatprep.subr.mxu0 0.0
  %3459 = vmatpush1.msra.mxu0 0.0
  %3460 = vmatprep.subr.mxu0 0.0
  %3461 = vmatpush1.msra.mxu0 0.0
  %3462 = vmatprep.subr.mxu0 0.0
  %3463 = vmatpush1.msra.mxu0 0.0
  %3464 = vmatprep.subr.mxu0 0.0
  %3465 = vmatpush1.msra.mxu0 0.0
  %3466 = vmatprep.subr.mxu0 0.0
  %3467 = vmatpush1.msra.mxu0 0.0
  %3468 = vmatprep.subr.mxu0 0.0
  %3469 = vmatpush1.msra.mxu0 0.0
  %3470 = vmatprep.subr.mxu0 0.0
  %3471 = vmatpush1.msra.mxu0 0.0
  %3472 = vmatprep.subr.mxu0 0.0
  %3473 = vmatpush1.msra.mxu0 0.0
  %3474 = vmatprep.subr.mxu0 0.0
  %3475 = vmatpush1.msra.mxu0 0.0
  %3476 = vmatprep.subr.mxu0 0.0
  %3477 = vmatpush1.msra.mxu0 0.0
  %3478 = vmatprep.subr.mxu0 0.0
  %3479 = vmatpush1.msra.mxu0 0.0
  %3480 = vmatprep.subr.mxu0 0.0
  %3481 = vmatpush1.msra.mxu0 0.0
  %3482 = vmatprep.subr.mxu0 0.0
  %3483 = vmatpush1.msra.mxu0 0.0
  %3484 = vmatprep.subr.mxu0 0.0
  %3485 = vmatpush1.msra.mxu0 0.0
  %3486 = vmatprep.subr.mxu0 0.0
  %3487 = vmatpush1.msra.mxu0 0.0
  %3488 = vmatprep.subr.mxu0 0.0
  %3489 = vmatpush1.msra.mxu0 0.0
  %3490 = vmatprep.subr.mxu0 0.0
  %3491 = vmatpush1.msra.mxu0 0.0
  %3492 = vmatprep.subr.mxu0 0.0
  %3493 = vmatpush1.msra.mxu0 0.0
  %3494 = vmatprep.subr.mxu0 0.0
  %3495 = vmatpush1.msra.mxu0 0.0
  %3496 = vmatprep.subr.mxu0 0.0
  %3497 = vmatpush1.msra.mxu0 0.0
  %3498 = vmatprep.subr.mxu0 0.0
  %3499 = vmatpush1.msra.mxu0 0.0
  %3500 = vmatprep.subr.mxu0 0.0
  %3501 = vmatpush1.msra.mxu0 0.0
  %3502 = vmatprep.subr.mxu0 0.0
  %3503 = vmatpush1.msra.mxu0 0.0
  %3504 = vmatprep.mubr.f32.mxu0 0.0
  %3505 = vmatmul.mubr.f32.gmra.mrb[0].mxu0 %v3232
  %v3506 = vpop.f32.mrb[0].mxu0
  %v3507 = vadd.f32 0.0, %v3506
  %v3508 = vpop.f32.mrb[0].mxu0
  %3509 = vmatprep.mubr.f32.mxu0 0.0
  %3510 = vmatmul.mubr.f32.gmra.mrb[0].mxu0 %v3235
  %v3511 = vpop.f32.mrb[0].mxu0
  %v3512 = vadd.f32 0.0, %v3511
  %v3513 = vpop.f32.mrb[0].mxu0
  %3514 = vmatprep.mubr.f32.mxu0 0.0
  %3515 = vmatmul.mubr.f32.gmra.mrb[0].mxu0 %v3238
  %v3516 = vpop.f32.mrb[0].mxu0
  %v3517 = vadd.f32 0.0, %v3516
  %v3518 = vpop.f32.mrb[0].mxu0
  %3519 = vmatprep.mubr.f32.mxu0 0.0
  %3520 = vmatmul.mubr.f32.gmra.mrb[0].mxu0 %v3241
  %v3521 = vpop.f32.mrb[0].mxu0
  %v3522 = vadd.f32 0.0, %v3521
  %v3523 = vpop.f32.mrb[0].mxu0
  %3524 = vmatprep.mubr.f32.mxu0 0.0
  %3525 = vmatmul.mubr.f32.gmra.mrb[0].mxu0 %v3244
  %v3526 = vpop.f32.mrb[0].mxu0
  %v3527 = vadd.f32 0.0, %v3526
  %v3528 = vpop.f32.mrb[0].mxu0
  %3529 = vmatprep.mubr.f32.mxu0 0.0
  %3530 = vmatmul.mubr.f32.gmra.mrb[0].mxu0 %v3247
  %v3531 = vpop.f32.mrb[0].mxu0
  %v3532 = vadd.f32 0.0, %v3531
  %v3533 = vpop.f32.mrb[0].mxu0
  %3534 = vmatprep.mubr.f32.mxu0 0.0
  %3535 = vmatmul.mubr.f32.gmra.mrb[0].mxu0 %v3250
  %v3536 = vpop.f32.mrb[0].mxu0
  %v3537 = vadd.f32 0.0, %v3536
  %v3538 = vpop.f32.mrb[0].mxu0
  %3539 = vmatprep.mubr.f32.mxu0 0.0
  %3540 = vmatmul.mubr.f32.gmra.mrb[0].mxu0 %v3253
  %v3541 = vpop.f32.mrb[0].mxu0
  %v3542 = vadd.f32 0.0, %v3541
  %v3543 = vpop.f32.mrb[0].mxu0
  %3544 = vmatprep.mubr.f32.mxu0 0.0
  %3545 = vmatmul.mubr.f32.gmra.mrb[0].mxu0 %v3256
  %v3546 = vpop.f32.mrb[0].mxu0
  %v3547 = vadd.f32 0.0, %v3546
  %v3548 = vpop.f32.mrb[0].mxu0
  %3549 = vmatprep.mubr.f32.mxu0 0.0
  %3550 = vmatmul.mubr.f32.gmra.mrb[0].mxu0 %v3259
  %v3551 = vpop.f32.mrb[0].mxu0
  %v3552 = vadd.f32 0.0, %v3551
  %v3553 = vpop.f32.mrb[0].mxu0
  %3554 = vmatprep.mubr.f32.mxu0 0.0
  %3555 = vmatmul.mubr.f32.gmra.mrb[0].mxu0 %v3262
  %v3556 = vpop.f32.mrb[0].mxu0
  %v3557 = vadd.f32 0.0, %v3556
  %v3558 = vpop.f32.mrb[0].mxu0
  %3559 = vmatprep.mubr.f32.mxu0 0.0
  %3560 = vmatmul.mubr.f32.gmra.mrb[0].mxu0 %v3265
  %v3561 = vpop.f32.mrb[0].mxu0
  %v3562 = vadd.f32 0.0, %v3561
  %v3563 = vpop.f32.mrb[0].mxu0
  %3564 = vmatprep.mubr.f32.mxu0 0.0
  %3565 = vmatmul.mubr.f32.gmra.mrb[0].mxu0 %v3268
  %v3566 = vpop.f32.mrb[0].mxu0
  %v3567 = vadd.f32 0.0, %v3566
  %v3568 = vpop.f32.mrb[0].mxu0
  %3569 = vmatprep.mubr.f32.mxu0 0.0
  %3570 = vmatmul.mubr.f32.gmra.mrb[0].mxu0 %v3271
  %v3571 = vpop.f32.mrb[0].mxu0
  %v3572 = vadd.f32 0.0, %v3571
  %v3573 = vpop.f32.mrb[0].mxu0
  %3574 = vmatprep.mubr.f32.mxu0 0.0
  %3575 = vmatmul.mubr.f32.gmra.mrb[0].mxu0 %v3274
  %v3576 = vpop.f32.mrb[0].mxu0
  %v3577 = vadd.f32 0.0, %v3576
  %v3578 = vpop.f32.mrb[0].mxu0
  %3579 = vmatprep.mubr.f32.mxu0 0.0
  %3580 = vmatmul.mubr.f32.gmra.mrb[0].mxu0 %v3277
  %v3581 = vpop.f32.mrb[0].mxu0
  %v3582 = vadd.f32 0.0, %v3581
  %v3583 = vpop.f32.mrb[0].mxu0
  %3584 = vdwg.mxu0
  %3585 = vst [vmem:[%s11] sm:$0xff] %v3507
  %3586 = vst [vmem:[%s11 + $0x8] sm:$0xff] %v3512
  %3587 = vst [vmem:[%s11 + $0x10] sm:$0xff] %v3517
  %3588 = vst [vmem:[%s11 + $0x18] sm:$0xff] %v3522
  %3589 = vst [vmem:[%s11 + $0x20] sm:$0xff] %v3527
  %3590 = vst [vmem:[%s11 + $0x28] sm:$0xff] %v3532
  %3591 = vst [vmem:[%s11 + $0x30] sm:$0xff] %v3537
  %3592 = vst [vmem:[%s11 + $0x38] sm:$0xff] %v3542
  %3593 = vst [vmem:[%s11 + $0x40] sm:$0xff] %v3547
  %3594 = vst [vmem:[%s11 + $0x48] sm:$0xff] %v3552
  %3595 = vst [vmem:[%s11 + $0x50] sm:$0xff] %v3557
  %3596 = vst [vmem:[%s11 + $0x58] sm:$0xff] %v3562
  %3597 = vst [vmem:[%s11 + $0x60] sm:$0xff] %v3567
  %3598 = vst [vmem:[%s11 + $0x68] sm:$0xff] %v3572
  %3599 = vst [vmem:[%s11 + $0x70] sm:$0xff] %v3577
  %3600 = vst [vmem:[%s11 + $0x78] sm:$0xff] %v3582
  // Predicated region
  $region42: #{deeptime_forward.2} parent=0 // pred_check
    _
  $region43: #{deeptime_forward.2} parent=0 // pred_check_branch
    %3602 = sbr.rel (0) target = $region45
  $region44: #{deeptime_forward.2} parent=0 // pred_region
    _
  $region45: #{deeptime_forward.2} parent=0 // pred_fallthru
    _
  // Predicated region
  $region46: #{deeptime_forward.2} parent=0 // pred_check
    _
  $region47: #{deeptime_forward.2} parent=0 // pred_check_branch
    %3604 = sbr.rel (0) target = $region49
  $region48: #{deeptime_forward.2} parent=0 // pred_region
    _
  $region49: #{deeptime_forward.2} parent=0 // pred_fallthru
    _
  // Predicated region
  $region50: #{deeptime_forward.2} parent=0 // pred_check
    _
  $region51: #{deeptime_forward.2} parent=0 // pred_check_branch
    %3606 = sbr.rel (0) target = $region53
  $region52: #{deeptime_forward.2} parent=0 // pred_region
    _
  $region53: #{deeptime_forward.2} parent=0 // pred_fallthru
    _
  // Predicated region
  $region54: #{deeptime_forward.2} parent=0 // pred_check
    _
  $region55: #{deeptime_forward.2} parent=0 // pred_check_branch
    %3608 = sbr.rel (0) target = $region57
  $region56: #{deeptime_forward.2} parent=0 // pred_region
    _
  $region57: #{deeptime_forward.2} parent=0 // pred_fallthru
    _
  // Predicated region
  $region58: #{deeptime_forward.2} parent=0 // pred_check
    _
  $region59: #{deeptime_forward.2} parent=0 // pred_check_branch
    %3610 = sbr.rel (0) target = $region61
  $region60: #{deeptime_forward.2} parent=0 // pred_region
    _
  $region61: #{deeptime_forward.2} parent=0 // pred_fallthru
    _
  // Predicated region
  $region62: #{deeptime_forward.2} parent=0 // pred_check
    _
  $region63: #{deeptime_forward.2} parent=0 // pred_check_branch
    %3612 = sbr.rel (0) target = $region65
  $region64: #{deeptime_forward.2} parent=0 // pred_region
    _
  $region65: #{deeptime_forward.2} parent=0 // pred_fallthru
    _

</llo_original>
